<compile_context>
chip_gen: v6e
topology: v6e:2x2x1
jax: 0.10.0
libtpu: 0.0.40
codegen_flags: <defaults>
</compile_context>

<pallas_src>
import math
import functools

import jax
import jax.numpy as jnp
from jax import lax
from jax.experimental import pallas as pl
from jax.experimental.pallas import tpu as pltpu

NEG_INF = -1e9
LN_EPS = 1e-5
VMEM_LIMIT_BYTES = 32 * 1024 * 1024     # explicit per review (v7x: 64 MiB phys)
MAX_TILE_ROWS = 512                      # row tile cap; scores stay <= 1 MiB


# ----------------------------------------------------------------------------
# In-kernel helpers
# ----------------------------------------------------------------------------

def _layernorm(x, g, b):
    # Two-pass LayerNorm (review: avoid E[x^2]-mu^2 catastrophic cancellation).
    mu = jnp.mean(x, axis=-1, keepdims=True)
    xc = x - mu
    var = jnp.mean(xc * xc, axis=-1, keepdims=True)
    return xc * lax.rsqrt(var + LN_EPS) * g + b


def _softmax_parts(s):
    """Return (unnormalized probs in bf16, f32 reciprocal of the row sums)."""
    m = jnp.max(s, axis=-1, keepdims=True)
    p = jnp.exp((s - m).astype(jnp.bfloat16))          # bf16 EUP on v6e/v7x
    denom = jnp.sum(p, axis=-1, keepdims=True, dtype=jnp.float32)
    return p, pl.reciprocal(denom, approx=True)


# ----------------------------------------------------------------------------
# Fused encoder stack: all layers in one pallas_call, grid = (row_tiles, depth)
# ----------------------------------------------------------------------------

def _enc_stack_kernel(x_ref, bias_ref, wqkv_ref, bqkv_ref, w1_ref, b1_ref,
                      w2_ref, b2_ref, ln1g_ref, ln1b_ref, ln2g_ref, ln2b_ref,
                      o_ref, xs_ref):
    layer = pl.program_id(1)

    @pl.when(layer == 0)
    def _():
        xs_ref[...] = x_ref[...]                        # load tile once per block

    x = xs_ref[...]                                     # (rows, d) f32
    rows, d = x.shape
    scale = 1.0 / math.sqrt(d)

    # Fused QKV projection (bf16 MXU inputs, f32 accumulation).
    qkv = jnp.dot(x.astype(jnp.bfloat16), wqkv_ref[0],
                  preferred_element_type=jnp.float32) + bqkv_ref[0]
    q = qkv[:, 0:d]
    k = qkv[:, d:2 * d]
    v = qkv[:, 2 * d:3 * d]

    # Scores within the row tile only (no cross-batch dense matmul).
    s = lax.dot_general(q.astype(jnp.bfloat16), k.astype(jnp.bfloat16),
                        dimension_numbers=(((1,), (1,)), ((), ())),
                        preferred_element_type=jnp.float32) * scale
    s = s + bias_ref[0]                                 # compact per-tile bias

    p, inv = _softmax_parts(s)
    attn = jnp.dot(p, v.astype(jnp.bfloat16),
                   preferred_element_type=jnp.float32) * inv

    h = _layernorm(x + attn, ln1g_ref[0], ln1b_ref[0])

    f = jnp.dot(h.astype(jnp.bfloat16), w1_ref[0],
                preferred_element_type=jnp.float32) + b1_ref[0]
    f = jnp.maximum(f, 0.0)
    f = jnp.dot(f.astype(jnp.bfloat16), w2_ref[0],
                preferred_element_type=jnp.float32) + b2_ref[0]
    y = _layernorm(h + f, ln2g_ref[0], ln2b_ref[0])

    xs_ref[...] = y                                     # carry to next layer

    @pl.when(layer == pl.num_programs(1) - 1)
    def _():
        o_ref[...] = y.astype(o_ref.dtype)


def _pick_seqs_per_block(n_seq, seq_len, max_rows):
    best = 1
    for s in range(1, n_seq + 1):
        if n_seq % s:
            continue
        rows = s * seq_len
        if rows > max_rows:
            break
        if rows % 8 == 0 or s == n_seq:
            best = s
    return best


def fused_encoder_stack(x2d, bias, stack, seq_len, *, max_rows=MAX_TILE_ROWS):
    """x2d: (n_seq*seq_len, d) flattened sequences.  bias: (n_seq, L, L) or None."""
    n_rows, d = x2d.shape
    n_seq = n_rows // seq_len
    depth = stack["wqkv"].shape[0]
    h = stack["w1"].shape[2]

    if bias is not None:
        # One sequence per grid step -> compact (L, L) bias maps 1:1 onto scores.
        s_per = 1
        rows_pb = seq_len
        bias_spec = pl.BlockSpec((1, seq_len, seq_len), lambda i, l: (i, 0, 0))
    else:
        # Pack several short sequences per tile; tiny shared block-diag mask,
        # DMA'd once (constant index map over both grid axes).
        s_per = _pick_seqs_per_block(n_seq, seq_len, max_rows)
        rows_pb = s_per * seq_len
        seq_id = jnp.arange(rows_pb, dtype=jnp.int32) // seq_len
        bias = jnp.where(seq_id[:, None] == seq_id[None, :],
                         0.0, NEG_INF).astype(jnp.float32)[None]
        bias_spec = pl.BlockSpec((1, rows_pb, rows_pb), lambda i, l: (0, 0, 0))
    nb = n_seq // s_per

    # TODO(synk): seq_len should be padded to a multiple of 8 upstream if a
    # non-multiple-of-8 sequence length is ever used with multi-sequence tiles.
    w_map = lambda i, l: (l, 0, 0)
    in_specs = [
        pl.BlockSpec((rows_pb, d), lambda i, l: (i, 0)),
        bias_spec,
        pl.BlockSpec((1, d, 3 * d), w_map),
        pl.BlockSpec((1, 1, 3 * d), w_map),
        pl.BlockSpec((1, d, h), w_map),
        pl.BlockSpec((1, 1, h), w_map),
        pl.BlockSpec((1, h, d), w_map),
        pl.BlockSpec((1, 1, d), w_map),
        pl.BlockSpec((1, 1, d), w_map),
        pl.BlockSpec((1, 1, d), w_map),
        pl.BlockSpec((1, 1, d), w_map),
        pl.BlockSpec((1, 1, d), w_map),
    ]
    # TODO(synk): pipeline_mode=pl.Buffered(3) on the weight specs once depth
    # is large enough for the weight DMA to be exposed at layer boundaries.
    return pl.pallas_call(
        _enc_stack_kernel,
        out_shape=jax.ShapeDtypeStruct((n_rows, d), jnp.float32),
        grid=(nb, depth),
        in_specs=in_specs,
        out_specs=pl.BlockSpec((rows_pb, d), lambda i, l: (i, 0)),
        scratch_shapes=[pltpu.VMEM((rows_pb, d), jnp.float32)],
        compiler_params=pltpu.CompilerParams(
            dimension_semantics=("parallel", "arbitrary"),
            vmem_limit_bytes=VMEM_LIMIT_BYTES),
    )(x2d, bias, stack["wqkv"], stack["bqkv"], stack["w1"], stack["b1"],
      stack["w2"], stack["b2"], stack["ln1_g"], stack["ln1_b"],
      stack["ln2_g"], stack["ln2_b"])


# ----------------------------------------------------------------------------
# Fused target-aware decoder + matching-score kernel (per-sequence grid)
# ----------------------------------------------------------------------------

def _trg_dec_kernel(mem_ref, trg_ref, bias_ref, wq_ref, bq_ref,
                    wkv_ref, bkv_ref, lng_ref, lnb_ref, o_ref):
    mem = mem_ref[0].astype(jnp.float32)                # (T, D2)
    trg = trg_ref[0]                                    # (T, D2) f32
    t, d = trg.shape
    scale = 1.0 / math.sqrt(d)

    q = jnp.dot(trg.astype(jnp.bfloat16), wq_ref[...],
                preferred_element_type=jnp.float32) + bq_ref[...]
    kv = jnp.dot(mem.astype(jnp.bfloat16), wkv_ref[...],
                 preferred_element_type=jnp.float32) + bkv_ref[...]
    k = kv[:, 0:d]
    v = kv[:, d:2 * d]

    s = lax.dot_general(q.astype(jnp.bfloat16), k.astype(jnp.bfloat16),
                        dimension_numbers=(((1,), (1,)), ((), ())),
                        preferred_element_type=jnp.float32) * scale
    s = s + bias_ref[0]
    p, inv = _softmax_parts(s)
    attn = jnp.dot(p, v.astype(jnp.bfloat16),
                   preferred_element_type=jnp.float32) * inv

    # TODO(synk): TrgAwaDecoder internals not provided; residual + LN on the
    # memory stream kept (same derivation as the previous version).
    dec = _layernorm(mem + attn, lng_ref[...], lnb_ref[...])

    # Matching score fused in, stored lane-major as a (1, 1, T) block.
    o_ref[...] = jnp.sum(dec * trg, axis=-1).reshape(1, 1, t)


def fused_trg_decoder(mem, trg, bias, p):
    B, T, d2 = trg.shape
    out = pl.pallas_call(
        _trg_dec_kernel,
        out_shape=jax.ShapeDtypeStruct((B, 1, T), jnp.float32),
        grid=(B,),
        in_specs=[
            pl.BlockSpec((1, T, d2), lambda b: (b, 0, 0)),
            pl.BlockSpec((1, T, d2), lambda b: (b, 0, 0)),
            pl.BlockSpec((1, T, T), lambda b: (b, 0, 0)),
            pl.BlockSpec((d2, d2), lambda b: (0, 0)),
            pl.BlockSpec((1, d2), lambda b: (0, 0)),
            pl.BlockSpec((d2, 2 * d2), lambda b: (0, 0)),
            pl.BlockSpec((1, 2 * d2), lambda b: (0, 0)),
            pl.BlockSpec((1, d2), lambda b: (0, 0)),
            pl.BlockSpec((1, d2), lambda b: (0, 0)),
        ],
        out_specs=pl.BlockSpec((1, 1, T), lambda b: (b, 0, 0)),
        compiler_params=pltpu.CompilerParams(
            dimension_semantics=("parallel",),
            vmem_limit_bytes=VMEM_LIMIT_BYTES),
    )(mem, trg, bias, p["wq"], p["bq"], p["wkv"], p["bkv"], p["ln_g"], p["ln_b"])
    return out.reshape(B, T)


# ----------------------------------------------------------------------------
# PosDecoder projection: (M, D2)bf16 @ (D2, n_pad)bf16, tiled over M and N
# ----------------------------------------------------------------------------

def _pos_dec_kernel(x_ref, w_ref, b_ref, o_ref):
    o_ref[...] = (jnp.dot(x_ref[...], w_ref[...],
                          preferred_element_type=jnp.float32)
                  + b_ref[...]).astype(o_ref.dtype)


def pallas_pos_decoder(x_bf16, w_bf16, b, n_loc):
    m, k = x_bf16.shape
    n_pad = w_bf16.shape[1]                              # multiple of 128
    tn = n_pad
    for cand in (512, 256, 128):
        if n_pad % cand == 0:
            tn = cand
            break
    tm = m
    for cand in (512, 256, 128, 64, 32, 16):
        if m % cand == 0:
            tm = cand
            break
    # bf16 logits halve the dominant HBM write; the unpadded (m, n_loc) output
    # avoids a post-hoc slice copy (the overhanging last N tile is masked).
    return pl.pallas_call(
        _pos_dec_kernel,
        out_shape=jax.ShapeDtypeStruct((m, n_loc), jnp.bfloat16),
        grid=(m // tm, n_pad // tn),
        in_specs=[pl.BlockSpec((tm, k), lambda i, j: (i, 0)),
                  pl.BlockSpec((k, tn), lambda i, j: (0, j)),
                  pl.BlockSpec((1, tn), lambda i, j: (0, j))],
        out_specs=pl.BlockSpec((tm, tn), lambda i, j: (i, j)),
        compiler_params=pltpu.CompilerParams(
            dimension_semantics=("parallel", "parallel"),
            vmem_limit_bytes=VMEM_LIMIT_BYTES),
    )(x_bf16, w_bf16, b)


# ----------------------------------------------------------------------------
# Parameter construction (layer weights stacked on a leading depth axis)
# ----------------------------------------------------------------------------

def _w(key, din, dout):
    return jax.random.normal(key, (din, dout), jnp.float32) / math.sqrt(din)


def init_encoder_stack(key, d, exp_factor, depth):
    h = d * exp_factor
    wqkv, w1, w2 = [], [], []
    for k in jax.random.split(key, depth):
        ks = jax.random.split(k, 5)
        wqkv.append(jnp.concatenate(
            [_w(ks[0], d, d), _w(ks[1], d, d), _w(ks[2], d, d)], axis=1))
        w1.append(_w(ks[3], d, h))
        w2.append(_w(ks[4], h, d))
    return dict(
        wqkv=jnp.stack(wqkv).astype(jnp.bfloat16),
        bqkv=jnp.zeros((depth, 1, 3 * d), jnp.float32),
        w1=jnp.stack(w1).astype(jnp.bfloat16),
        b1=jnp.zeros((depth, 1, h), jnp.float32),
        w2=jnp.stack(w2).astype(jnp.bfloat16),
        b2=jnp.zeros((depth, 1, d), jnp.float32),
        ln1_g=jnp.ones((depth, 1, d), jnp.float32),
        ln1_b=jnp.zeros((depth, 1, d), jnp.float32),
        ln2_g=jnp.ones((depth, 1, d), jnp.float32),
        ln2_b=jnp.zeros((depth, 1, d), jnp.float32),
    )


def init_params(key, n_loc, n_quadkey, features, exp_factor, depth):
    d2 = features * 2
    ks = jax.random.split(key, 8)
    emb_loc = (jax.random.normal(ks[0], (n_loc, features), jnp.float32) * 0.02
               ).at[0].set(0.0)                          # zeros_pad=True
    emb_qk = (jax.random.normal(ks[1], (n_quadkey, features), jnp.float32) * 0.02
              ).at[0].set(0.0)
    geo_layers = init_encoder_stack(ks[2], features, exp_factor, 2)   # depth=2
    inr_layers = init_encoder_stack(ks[3], d2, exp_factor, depth)
    wq, wk, wv = _w(ks[4], d2, d2), _w(ks[5], d2, d2), _w(ks[6], d2, d2)
    trg_dec = dict(
        wq=wq.astype(jnp.bfloat16), bq=jnp.zeros((1, d2), jnp.float32),
        wkv=jnp.concatenate([wk, wv], axis=1).astype(jnp.bfloat16),
        bkv=jnp.zeros((1, 2 * d2), jnp.float32),
        ln_g=jnp.ones((1, d2), jnp.float32),
        ln_b=jnp.zeros((1, d2), jnp.float32))
    pw = _w(ks[7], d2, n_loc)
    n_pad = ((n_loc + 127) // 128) * 128
    pos_dec = dict(
        w=jnp.pad(pw, ((0, 0), (0, n_pad - n_loc))).astype(jnp.bfloat16),
        b=jnp.zeros((1, n_pad), jnp.float32))
    return dict(emb_loc=emb_loc, emb_quadkey=emb_qk, geo_layers=geo_layers,
                inr_layers=inr_layers, trg_dec=trg_dec, pos_dec=pos_dec)


# ----------------------------------------------------------------------------
# XLA-side glue (embedding gathers, TAPE, compact mask/bias construction)
# ----------------------------------------------------------------------------

def embed(table, idx, features):
    # Embedding(..., zeros_pad=True, scale=True)
    return jnp.take(table, idx, axis=0) * math.sqrt(features)


def tape_apply(src, src_time):
    """Time-Aware Positional Encoding (dropout is a no-op in eval)."""
    B, L, D = src.shape
    pos = jnp.arange(L, dtype=jnp.float32)[None, :, None]
    i = jnp.arange(0, D, 2, dtype=jnp.float32)
    div = jnp.exp(-i * (math.log(10000.0) / D))
    t = src_time[:, :, None].astype(jnp.float32)
    pe_even = jnp.broadcast_to(jnp.sin(pos * div), (B, L, D // 2))
    pe_odd = jnp.cos(t * div)
    pe = jnp.stack([pe_even, pe_odd], axis=-1).reshape(B, L, D)
    # TODO(synk): TAPE internals not provided; sin(position)/cos(time)
    # interleave kept from the previous derivation (ds unused).
    return src + pe


@functools.partial(jax.jit, static_argnames=("features", "n_loc"))
def stisan_forward(params, src_loc, src_quadkey, src_time, pad_mask, attn_mask,
                   trg_loc, trg_quadkey, key_pad_mask, mem_mask, ds,
                   w_mat, c_mat, features, n_loc):
    B, L = src_loc.shape
    T = trg_loc.shape[1]
    K = src_quadkey.shape[2]
    D = features
    D2 = 2 * D

    # --- embeddings ---
    src_loc_emb = embed(params["emb_loc"], src_loc, D)            # (B, L, D)
    trg_loc_emb = embed(params["emb_loc"], trg_loc, D)            # (B, T, D)

    # --- geography encoder: src AND trg quadkey n-grams in one fused call ---
    src_qk = embed(params["emb_quadkey"], src_quadkey, D)         # (B, L, K, D)
    trg_qk = embed(params["emb_quadkey"], trg_quadkey, D)         # (B, T, K, D)
    qk = jnp.concatenate([src_qk.reshape(B * L * K, D),
                          trg_qk.reshape(B * T * K, D)], axis=0)
    qk = fused_encoder_stack(qk, None, params["geo_layers"], seq_len=K)
    # TODO(synk): GeoEncoder internals not provided; mean-pool over quadkey
    # n-grams assumed (standard STiSAN behaviour).
    qk = qk.reshape(B * (L + T), K, D).mean(axis=1)
    src_qk_emb = qk[:B * L].reshape(B, L, D)
    trg_qk_emb = qk[B * L:].reshape(B, T, D)

    src = jnp.concatenate([src_loc_emb, src_qk_emb], axis=-1)     # (B, L, 2D)
    trg = jnp.concatenate([trg_loc_emb, trg_qk_emb], axis=-1)     # (B, T, 2D)

    # --- time-aware positional encoding ---
    src = tape_apply(src, src_time)

    # --- relation matrix (the per-sample python loop vectorised) ---
    # TODO(synk): k_t/k_g clipping not applied (the reference forward never
    # uses them either).
    r_mat = (7.0 - w_mat) + (24.0 - c_mat)                        # (B, L, L)

    # --- interval-aware self-attention block (compact per-sequence bias) ---
    src_mask = jnp.logical_or(attn_mask[None, :, :], pad_mask[:, None, :])
    inr_bias = (r_mat + jnp.where(src_mask, NEG_INF, 0.0)).astype(jnp.float32)
    src_enc = fused_encoder_stack(src.reshape(B * L, D2), inr_bias,
                                  params["inr_layers"], seq_len=L)  # (B*L, 2D)

    # --- PosDecoder ---
    # TODO(synk): PosDecoder internals not provided; linear projection to
    # n_loc logits is used (ds unused here).
    srcout = pallas_pos_decoder(src_enc.astype(jnp.bfloat16),
                                params["pos_dec"]["w"], params["pos_dec"]["b"],
                                n_loc).reshape(B, L, n_loc)

    # --- eval branch: last valid step, repeated across targets ---
    # TODO(synk): training branch (src.repeat over negatives) not implemented.
    src_last = src_enc.reshape(B, L, D2)[jnp.arange(B), ds - 1]   # (B, 2D)
    mem = jnp.broadcast_to(src_last[:, None, :], (B, T, D2))

    dec_bias = jnp.where(jnp.logical_or(mem_mask[None, :, :],
                                        key_pad_mask[:, None, :]),
                         NEG_INF, 0.0).astype(jnp.float32)        # (B, T, T)

    # --- target-aware decoder + matching score (single fused kernel) ---
    output = fused_trg_decoder(mem, trg, dec_bias, params["trg_dec"])
    return output, srcout


# ----------------------------------------------------------------------------
# Driver
# ----------------------------------------------------------------------------

if __name__ == "__main__":
    n_loc, n_quadkey = 50, 30
    features, exp_factor, depth = 32, 4, 2
    B, L, K, T = 2, 8, 4, 8

    key = jax.random.PRNGKey(0)
    kp, k1, k2, k3, k4, k5, k6, k7 = jax.random.split(key, 8)

    params = init_params(kp, n_loc, n_quadkey, features, exp_factor, depth)

    src_loc = jax.random.randint(k1, (B, L), 1, n_loc, dtype=jnp.int32)
    src_quadkey = jax.random.randint(k2, (B, L, K), 1, n_quadkey, dtype=jnp.int32)
    src_time = jax.random.uniform(k3, (B, L), jnp.float32, 0.0, 100.0)
    trg_loc = jax.random.randint(k4, (B, T), 1, n_loc, dtype=jnp.int32)
    trg_quadkey = jax.random.randint(k5, (B, T, K), 1, n_quadkey, dtype=jnp.int32)
    w_mat = jax.random.uniform(k6, (B, L, L), jnp.float32, 0.0, 7.0)
    c_mat = jax.random.uniform(k7, (B, L, L), jnp.float32, 0.0, 24.0)

    ds = jnp.array([L, L - 2], dtype=jnp.int32)                   # valid lengths
    pad_mask = jnp.arange(L)[None, :] >= ds[:, None]              # (B, L) True=pad
    attn_mask = jnp.triu(jnp.ones((L, L), dtype=bool), k=1)       # causal
    key_pad_mask = jnp.zeros((B, T), dtype=bool)                  # no target pad
    mem_mask = jnp.zeros((T, T), dtype=bool)                      # no memory mask

    output, srcout = stisan_forward(
        params, src_loc, src_quadkey, src_time, pad_mask, attn_mask,
        trg_loc, trg_quadkey, key_pad_mask, mem_mask, ds, w_mat, c_mat,
        features=features, n_loc=n_loc)

    jax.block_until_ready((output, srcout))
    assert output.shape == (B, T)
    assert srcout.shape == (B, L, n_loc)
    print("KERNEL_OK")
</pallas_src>

<mosaic_0001>
module attributes {stable_mosaic.version = 11 : i64} {
  func.func @_enc_stack_kernel(%arg0: i32, %arg1: i32, %arg2: memref<128x32xf32, #tpu.memory_space<vmem>>, %arg3: memref<1x128x128xf32, #tpu.memory_space<vmem>>, %arg4: memref<1x32x96xbf16, #tpu.memory_space<vmem>>, %arg5: memref<1x1x96xf32, #tpu.memory_space<vmem>>, %arg6: memref<1x32x128xbf16, #tpu.memory_space<vmem>>, %arg7: memref<1x1x128xf32, #tpu.memory_space<vmem>>, %arg8: memref<1x128x32xbf16, #tpu.memory_space<vmem>>, %arg9: memref<1x1x32xf32, #tpu.memory_space<vmem>>, %arg10: memref<1x1x32xf32, #tpu.memory_space<vmem>>, %arg11: memref<1x1x32xf32, #tpu.memory_space<vmem>>, %arg12: memref<1x1x32xf32, #tpu.memory_space<vmem>>, %arg13: memref<1x1x32xf32, #tpu.memory_space<vmem>>, %arg14: memref<128x32xf32, #tpu.memory_space<vmem>>, %arg15: memref<128x32xf32, #tpu.memory_space<vmem>>) attributes {dimension_semantics = [#tpu.dimension_semantics<parallel>, #tpu.dimension_semantics<arbitrary>], iteration_bounds = array<i64: 1, 2>, scalar_prefetch = 0 : i64, scratch_operands = 1 : i64, tpu.core_type = #tpu.core_type<tc>, window_params = [{transform_indices = @transform_0, window_bounds = array<i64: 128, 32>}, {pipeline_mode = #tpu.pipeline_mode<synchronous>, transform_indices = @transform_1, window_bounds = array<i64: 1, 128, 128>}, {transform_indices = @transform_2, window_bounds = array<i64: 1, 32, 96>}, {transform_indices = @transform_3, window_bounds = array<i64: 1, 1, 96>}, {transform_indices = @transform_4, window_bounds = array<i64: 1, 32, 128>}, {transform_indices = @transform_5, window_bounds = array<i64: 1, 1, 128>}, {transform_indices = @transform_6, window_bounds = array<i64: 1, 128, 32>}, {transform_indices = @transform_7, window_bounds = array<i64: 1, 1, 32>}, {transform_indices = @transform_8, window_bounds = array<i64: 1, 1, 32>}, {transform_indices = @transform_9, window_bounds = array<i64: 1, 1, 32>}, {transform_indices = @transform_10, window_bounds = array<i64: 1, 1, 32>}, {transform_indices = @transform_11, window_bounds = array<i64: 1, 1, 32>}, {transform_indices = @transform_12, window_bounds = array<i64: 128, 32>}]} {
    %c0_i32 = arith.constant 0 : i32
    %0 = arith.cmpi eq, %arg1, %c0_i32 : i32
    %1 = arith.extui %0 : i1 to i32
    %c0_i32_0 = arith.constant 0 : i32
    %2 = arith.cmpi ne, %1, %c0_i32_0 : i32
    scf.if %2 {
      %c0_56 = arith.constant 0 : index
      %c0_57 = arith.constant 0 : index
      %109 = vector.load %arg2[%c0_56, %c0_57] : memref<128x32xf32, #tpu.memory_space<vmem>>, vector<128x32xf32>
      %c0_58 = arith.constant 0 : index
      %c0_59 = arith.constant 0 : index
      %110 = vector.load %arg15[%c0_58, %c0_59] : memref<128x32xf32, #tpu.memory_space<vmem>>, vector<128x32xf32>
      tpu.vector_store %arg15[%c0_58, %c0_59], %109 {strides = array<i32>} : memref<128x32xf32, #tpu.memory_space<vmem>>, vector<128x32xf32>,
    } else {
    }
    %c0 = arith.constant 0 : index
    %c0_1 = arith.constant 0 : index
    %3 = vector.load %arg15[%c0, %c0_1] : memref<128x32xf32, #tpu.memory_space<vmem>>, vector<128x32xf32>
    %4 = arith.truncf %3 : vector<128x32xf32> to vector<128x32xbf16>
    %c0_2 = arith.constant 0 : index
    %c0_3 = arith.constant 0 : index
    %c0_4 = arith.constant 0 : index
    %5 = vector.load %arg4[%c0_2, %c0_3, %c0_4] : memref<1x32x96xbf16, #tpu.memory_space<vmem>>, vector<1x32x96xbf16>
    %6 = vector.shape_cast %5 : vector<1x32x96xbf16> to vector<32x96xbf16>
    %cst = arith.constant dense<0.000000e+00> : vector<128x96xf32>
    %7 = tpu.matmul %4, %6, %cst {dimension_numbers = #tpu.dot_dimension_numbers<[1], [0], [0], [1], [0, 0, 1, 1], [], []>} : vector<128x32xbf16>, vector<32x96xbf16>, vector<128x96xf32> -> vector<128x96xf32>
    %c0_5 = arith.constant 0 : index
    %c0_6 = arith.constant 0 : index
    %c0_7 = arith.constant 0 : index
    %8 = vector.load %arg5[%c0_5, %c0_6, %c0_7] : memref<1x1x96xf32, #tpu.memory_space<vmem>>, vector<1x1x96xf32>
    %9 = vector.shape_cast %8 : vector<1x1x96xf32> to vector<1x96xf32>
    %10 = vector.broadcast %9 : vector<1x96xf32> to vector<128x96xf32>
    %11 = arith.addf %7, %10 : vector<128x96xf32>
    %12 = vector.extract_strided_slice %11 {offsets = [0, 0], sizes = [128, 32], strides = [1, 1]} : vector<128x96xf32> to vector<128x32xf32>
    %13 = vector.extract_strided_slice %11 {offsets = [0, 32], sizes = [128, 32], strides = [1, 1]} : vector<128x96xf32> to vector<128x32xf32>
    %14 = vector.extract_strided_slice %11 {offsets = [0, 64], sizes = [128, 32], strides = [1, 1]} : vector<128x96xf32> to vector<128x32xf32>
    %15 = arith.truncf %12 : vector<128x32xf32> to vector<128x32xbf16>
    %16 = arith.truncf %13 : vector<128x32xf32> to vector<128x32xbf16>
    %cst_8 = arith.constant dense<0.000000e+00> : vector<128x128xf32>
    %17 = tpu.matmul %15, %16, %cst_8 {dimension_numbers = #tpu.dot_dimension_numbers<[1], [1], [0], [0], [0, 0, 1, 0], [], []>} : vector<128x32xbf16>, vector<128x32xbf16>, vector<128x128xf32> -> vector<128x128xf32>
    %cst_9 = arith.constant 0.176776692 : f32
    %18 = vector.broadcast %cst_9 : f32 to vector<128x128xf32>
    %19 = arith.mulf %17, %18 : vector<128x128xf32>
    %c0_10 = arith.constant 0 : index
    %c0_11 = arith.constant 0 : index
    %c0_12 = arith.constant 0 : index
    %20 = vector.load %arg3[%c0_10, %c0_11, %c0_12] : memref<1x128x128xf32, #tpu.memory_space<vmem>>, vector<1x128x128xf32>
    %21 = vector.shape_cast %20 : vector<1x128x128xf32> to vector<128x128xf32>
    %22 = arith.addf %19, %21 : vector<128x128xf32>
    %cst_13 = arith.constant dense<0xFF800000> : vector<128xf32>
    %23 = vector.multi_reduction <maximumf>, %22, %cst_13 [1] : vector<128x128xf32> to vector<128xf32>
    %24 = vector.shape_cast %23 : vector<128xf32> to vector<128x1xf32>
    %25 = vector.broadcast %24 : vector<128x1xf32> to vector<128x128xf32>
    %26 = arith.subf %22, %25 : vector<128x128xf32>
    %27 = arith.truncf %26 : vector<128x128xf32> to vector<128x128xbf16>
    %28 = math.exp %27 : vector<128x128xbf16>
    %29 = arith.extf %28 : vector<128x128xbf16> to vector<128x128xf32>
    %cst_14 = arith.constant dense<0.000000e+00> : vector<128xf32>
    %30 = vector.multi_reduction <add>, %29, %cst_14 [1] : vector<128x128xf32> to vector<128xf32>
    %31 = vector.shape_cast %30 : vector<128xf32> to vector<128x1xf32>
    %32 = tpu.reciprocal %31 {approx = true} : vector<128x1xf32> -> vector<128x1xf32>
    %33 = arith.truncf %14 : vector<128x32xf32> to vector<128x32xbf16>
    %cst_15 = arith.constant dense<0.000000e+00> : vector<128x32xf32>
    %34 = tpu.matmul %28, %33, %cst_15 {dimension_numbers = #tpu.dot_dimension_numbers<[1], [0], [0], [1], [0, 0, 1, 1], [], []>} : vector<128x128xbf16>, vector<128x32xbf16>, vector<128x32xf32> -> vector<128x32xf32>
    %35 = vector.broadcast %32 : vector<128x1xf32> to vector<128x32xf32>
    %36 = arith.mulf %34, %35 : vector<128x32xf32>
    %37 = arith.addf %3, %36 : vector<128x32xf32>
    %c0_16 = arith.constant 0 : index
    %c0_17 = arith.constant 0 : index
    %c0_18 = arith.constant 0 : index
    %38 = vector.load %arg10[%c0_16, %c0_17, %c0_18] : memref<1x1x32xf32, #tpu.memory_space<vmem>>, vector<1x1x32xf32>
    %39 = vector.shape_cast %38 : vector<1x1x32xf32> to vector<1x32xf32>
    %c0_19 = arith.constant 0 : index
    %c0_20 = arith.constant 0 : index
    %c0_21 = arith.constant 0 : index
    %40 = vector.load %arg11[%c0_19, %c0_20, %c0_21] : memref<1x1x32xf32, #tpu.memory_space<vmem>>, vector<1x1x32xf32>
    %41 = vector.shape_cast %40 : vector<1x1x32xf32> to vector<1x32xf32>
    %cst_22 = arith.constant dense<0.000000e+00> : vector<128xf32>
    %42 = vector.multi_reduction <add>, %37, %cst_22 [1] : vector<128x32xf32> to vector<128xf32>
    %43 = vector.shape_cast %42 : vector<128xf32> to vector<128x1xf32>
    %cst_23 = arith.constant 3.200000e+01 : f32
    %44 = vector.broadcast %cst_23 : f32 to vector<128x1xf32>
    %45 = arith.divf %43, %44 : vector<128x1xf32>
    %46 = vector.broadcast %45 : vector<128x1xf32> to vector<128x32xf32>
    %47 = arith.subf %37, %46 : vector<128x32xf32>
    %48 = arith.mulf %47, %47 : vector<128x32xf32>
    %cst_24 = arith.constant dense<0.000000e+00> : vector<128xf32>
    %49 = vector.multi_reduction <add>, %48, %cst_24 [1] : vector<128x32xf32> to vector<128xf32>
    %50 = vector.shape_cast %49 : vector<128xf32> to vector<128x1xf32>
    %cst_25 = arith.constant 3.200000e+01 : f32
    %51 = vector.broadcast %cst_25 : f32 to vector<128x1xf32>
    %52 = arith.divf %50, %51 : vector<128x1xf32>
    %cst_26 = arith.constant 9.99999974E-6 : f32
    %53 = vector.broadcast %cst_26 : f32 to vector<128x1xf32>
    %54 = arith.addf %52, %53 : vector<128x1xf32>
    %55 = math.rsqrt %54 : vector<128x1xf32>
    %56 = vector.broadcast %55 : vector<128x1xf32> to vector<128x32xf32>
    %57 = arith.mulf %47, %56 : vector<128x32xf32>
    %58 = vector.broadcast %39 : vector<1x32xf32> to vector<128x32xf32>
    %59 = arith.mulf %57, %58 : vector<128x32xf32>
    %60 = vector.broadcast %41 : vector<1x32xf32> to vector<128x32xf32>
    %61 = arith.addf %59, %60 : vector<128x32xf32>
    %62 = arith.truncf %61 : vector<128x32xf32> to vector<128x32xbf16>
    %c0_27 = arith.constant 0 : index
    %c0_28 = arith.constant 0 : index
    %c0_29 = arith.constant 0 : index
    %63 = vector.load %arg6[%c0_27, %c0_28, %c0_29] : memref<1x32x128xbf16, #tpu.memory_space<vmem>>, vector<1x32x128xbf16>
    %64 = vector.shape_cast %63 : vector<1x32x128xbf16> to vector<32x128xbf16>
    %cst_30 = arith.constant dense<0.000000e+00> : vector<128x128xf32>
    %65 = tpu.matmul %62, %64, %cst_30 {dimension_numbers = #tpu.dot_dimension_numbers<[1], [0], [0], [1], [0, 0, 1, 1], [], []>} : vector<128x32xbf16>, vector<32x128xbf16>, vector<128x128xf32> -> vector<128x128xf32>
    %c0_31 = arith.constant 0 : index
    %c0_32 = arith.constant 0 : index
    %c0_33 = arith.constant 0 : index
    %66 = vector.load %arg7[%c0_31, %c0_32, %c0_33] : memref<1x1x128xf32, #tpu.memory_space<vmem>>, vector<1x1x128xf32>
    %67 = vector.shape_cast %66 : vector<1x1x128xf32> to vector<1x128xf32>
    %68 = vector.broadcast %67 : vector<1x128xf32> to vector<128x128xf32>
    %69 = arith.addf %65, %68 : vector<128x128xf32>
    %cst_34 = arith.constant 0.000000e+00 : f32
    %70 = vector.broadcast %cst_34 : f32 to vector<128x128xf32>
    %71 = arith.maximumf %69, %70 : vector<128x128xf32>
    %72 = arith.truncf %71 : vector<128x128xf32> to vector<128x128xbf16>
    %c0_35 = arith.constant 0 : index
    %c0_36 = arith.constant 0 : index
    %c0_37 = arith.constant 0 : index
    %73 = vector.load %arg8[%c0_35, %c0_36, %c0_37] : memref<1x128x32xbf16, #tpu.memory_space<vmem>>, vector<1x128x32xbf16>
    %74 = vector.shape_cast %73 : vector<1x128x32xbf16> to vector<128x32xbf16>
    %cst_38 = arith.constant dense<0.000000e+00> : vector<128x32xf32>
    %75 = tpu.matmul %72, %74, %cst_38 {dimension_numbers = #tpu.dot_dimension_numbers<[1], [0], [0], [1], [0, 0, 1, 1], [], []>} : vector<128x128xbf16>, vector<128x32xbf16>, vector<128x32xf32> -> vector<128x32xf32>
    %c0_39 = arith.constant 0 : index
    %c0_40 = arith.constant 0 : index
    %c0_41 = arith.constant 0 : index
    %76 = vector.load %arg9[%c0_39, %c0_40, %c0_41] : memref<1x1x32xf32, #tpu.memory_space<vmem>>, vector<1x1x32xf32>
    %77 = vector.shape_cast %76 : vector<1x1x32xf32> to vector<1x32xf32>
    %78 = vector.broadcast %77 : vector<1x32xf32> to vector<128x32xf32>
    %79 = arith.addf %75, %78 : vector<128x32xf32>
    %80 = arith.addf %61, %79 : vector<128x32xf32>
    %c0_42 = arith.constant 0 : index
    %c0_43 = arith.constant 0 : index
    %c0_44 = arith.constant 0 : index
    %81 = vector.load %arg12[%c0_42, %c0_43, %c0_44] : memref<1x1x32xf32, #tpu.memory_space<vmem>>, vector<1x1x32xf32>
    %82 = vector.shape_cast %81 : vector<1x1x32xf32> to vector<1x32xf32>
    %c0_45 = arith.constant 0 : index
    %c0_46 = arith.constant 0 : index
    %c0_47 = arith.constant 0 : index
    %83 = vector.load %arg13[%c0_45, %c0_46, %c0_47] : memref<1x1x32xf32, #tpu.memory_space<vmem>>, vector<1x1x32xf32>
    %84 = vector.shape_cast %83 : vector<1x1x32xf32> to vector<1x32xf32>
    %cst_48 = arith.constant dense<0.000000e+00> : vector<128xf32>
    %85 = vector.multi_reduction <add>, %80, %cst_48 [1] : vector<128x32xf32> to vector<128xf32>
    %86 = vector.shape_cast %85 : vector<128xf32> to vector<128x1xf32>
    %cst_49 = arith.constant 3.200000e+01 : f32
    %87 = vector.broadcast %cst_49 : f32 to vector<128x1xf32>
    %88 = arith.divf %86, %87 : vector<128x1xf32>
    %89 = vector.broadcast %88 : vector<128x1xf32> to vector<128x32xf32>
    %90 = arith.subf %80, %89 : vector<128x32xf32>
    %91 = arith.mulf %90, %90 : vector<128x32xf32>
    %cst_50 = arith.constant dense<0.000000e+00> : vector<128xf32>
    %92 = vector.multi_reduction <add>, %91, %cst_50 [1] : vector<128x32xf32> to vector<128xf32>
    %93 = vector.shape_cast %92 : vector<128xf32> to vector<128x1xf32>
    %cst_51 = arith.constant 3.200000e+01 : f32
    %94 = vector.broadcast %cst_51 : f32 to vector<128x1xf32>
    %95 = arith.divf %93, %94 : vector<128x1xf32>
    %cst_52 = arith.constant 9.99999974E-6 : f32
    %96 = vector.broadcast %cst_52 : f32 to vector<128x1xf32>
    %97 = arith.addf %95, %96 : vector<128x1xf32>
    %98 = math.rsqrt %97 : vector<128x1xf32>
    %99 = vector.broadcast %98 : vector<128x1xf32> to vector<128x32xf32>
    %100 = arith.mulf %90, %99 : vector<128x32xf32>
    %101 = vector.broadcast %82 : vector<1x32xf32> to vector<128x32xf32>
    %102 = arith.mulf %100, %101 : vector<128x32xf32>
    %103 = vector.broadcast %84 : vector<1x32xf32> to vector<128x32xf32>
    %104 = arith.addf %102, %103 : vector<128x32xf32>
    %c0_53 = arith.constant 0 : index
    %c0_54 = arith.constant 0 : index
    %105 = vector.load %arg15[%c0_53, %c0_54] : memref<128x32xf32, #tpu.memory_space<vmem>>, vector<128x32xf32>
    tpu.vector_store %arg15[%c0_53, %c0_54], %104 {strides = array<i32>} : memref<128x32xf32, #tpu.memory_space<vmem>>, vector<128x32xf32>,
    %c1_i32 = arith.constant 1 : i32
    %106 = arith.cmpi eq, %arg1, %c1_i32 : i32
    %107 = arith.extui %106 : i1 to i32
    %c0_i32_55 = arith.constant 0 : i32
    %108 = arith.cmpi ne, %107, %c0_i32_55 : i32
    scf.if %108 {
      %c0_56 = arith.constant 0 : index
      %c0_57 = arith.constant 0 : index
      %109 = vector.load %arg14[%c0_56, %c0_57] : memref<128x32xf32, #tpu.memory_space<vmem>>, vector<128x32xf32>
      tpu.vector_store %arg14[%c0_56, %c0_57], %104 {strides = array<i32>} : memref<128x32xf32, #tpu.memory_space<vmem>>, vector<128x32xf32>,
    } else {
    }
    return
  }
  func.func @transform_0(%arg0: i32, %arg1: i32) -> (i32, i32) {
    %c0_i32 = arith.constant 0 : i32
    %c0_i32_0 = arith.constant 0 : i32
    return %arg0, %c0_i32 : i32, i32
  }
  func.func @transform_1(%arg0: i32, %arg1: i32) -> (i32, i32, i32) {
    %c0_i32 = arith.constant 0 : i32
    %c0_i32_0 = arith.constant 0 : i32
    %c0_i32_1 = arith.constant 0 : i32
    %c0_i32_2 = arith.constant 0 : i32
    return %c0_i32, %c0_i32_0, %c0_i32_1 : i32, i32, i32
  }
  func.func @transform_2(%arg0: i32, %arg1: i32) -> (i32, i32, i32) {
    %c0_i32 = arith.constant 0 : i32
    %c0_i32_0 = arith.constant 0 : i32
    %c0_i32_1 = arith.constant 0 : i32
    return %arg1, %c0_i32, %c0_i32_0 : i32, i32, i32
  }
  func.func @transform_3(%arg0: i32, %arg1: i32) -> (i32, i32, i32) {
    %c0_i32 = arith.constant 0 : i32
    %c0_i32_0 = arith.constant 0 : i32
    %c0_i32_1 = arith.constant 0 : i32
    return %arg1, %c0_i32, %c0_i32_0 : i32, i32, i32
  }
  func.func @transform_4(%arg0: i32, %arg1: i32) -> (i32, i32, i32) {
    %c0_i32 = arith.constant 0 : i32
    %c0_i32_0 = arith.constant 0 : i32
    %c0_i32_1 = arith.constant 0 : i32
    return %arg1, %c0_i32, %c0_i32_0 : i32, i32, i32
  }
  func.func @transform_5(%arg0: i32, %arg1: i32) -> (i32, i32, i32) {
    %c0_i32 = arith.constant 0 : i32
    %c0_i32_0 = arith.constant 0 : i32
    %c0_i32_1 = arith.constant 0 : i32
    return %arg1, %c0_i32, %c0_i32_0 : i32, i32, i32
  }
  func.func @transform_6(%arg0: i32, %arg1: i32) -> (i32, i32, i32) {
    %c0_i32 = arith.constant 0 : i32
    %c0_i32_0 = arith.constant 0 : i32
    %c0_i32_1 = arith.constant 0 : i32
    return %arg1, %c0_i32, %c0_i32_0 : i32, i32, i32
  }
  func.func @transform_7(%arg0: i32, %arg1: i32) -> (i32, i32, i32) {
    %c0_i32 = arith.constant 0 : i32
    %c0_i32_0 = arith.constant 0 : i32
    %c0_i32_1 = arith.constant 0 : i32
    return %arg1, %c0_i32, %c0_i32_0 : i32, i32, i32
  }
  func.func @transform_8(%arg0: i32, %arg1: i32) -> (i32, i32, i32) {
    %c0_i32 = arith.constant 0 : i32
    %c0_i32_0 = arith.constant 0 : i32
    %c0_i32_1 = arith.constant 0 : i32
    return %arg1, %c0_i32, %c0_i32_0 : i32, i32, i32
  }
  func.func @transform_9(%arg0: i32, %arg1: i32) -> (i32, i32, i32) {
    %c0_i32 = arith.constant 0 : i32
    %c0_i32_0 = arith.constant 0 : i32
    %c0_i32_1 = arith.constant 0 : i32
    return %arg1, %c0_i32, %c0_i32_0 : i32, i32, i32
  }
  func.func @transform_10(%arg0: i32, %arg1: i32) -> (i32, i32, i32) {
    %c0_i32 = arith.constant 0 : i32
    %c0_i32_0 = arith.constant 0 : i32
    %c0_i32_1 = arith.constant 0 : i32
    return %arg1, %c0_i32, %c0_i32_0 : i32, i32, i32
  }
  func.func @transform_11(%arg0: i32, %arg1: i32) -> (i32, i32, i32) {
    %c0_i32 = arith.constant 0 : i32
    %c0_i32_0 = arith.constant 0 : i32
    %c0_i32_1 = arith.constant 0 : i32
    return %arg1, %c0_i32, %c0_i32_0 : i32, i32, i32
  }
  func.func @transform_12(%arg0: i32, %arg1: i32) -> (i32, i32) {
    %c0_i32 = arith.constant 0 : i32
    %c0_i32_0 = arith.constant 0 : i32
    return %arg0, %c0_i32 : i32, i32
  }
}

module attributes {stable_mosaic.version = 11 : i64} {
  func.func @_enc_stack_kernel(%arg0: i32, %arg1: i32, %arg2: memref<8x64xf32, #tpu.memory_space<vmem>>, %arg3: memref<1x8x8xf32, #tpu.memory_space<vmem>>, %arg4: memref<1x64x192xbf16, #tpu.memory_space<vmem>>, %arg5: memref<1x1x192xf32, #tpu.memory_space<vmem>>, %arg6: memref<1x64x256xbf16, #tpu.memory_space<vmem>>, %arg7: memref<1x1x256xf32, #tpu.memory_space<vmem>>, %arg8: memref<1x256x64xbf16, #tpu.memory_space<vmem>>, %arg9: memref<1x1x64xf32, #tpu.memory_space<vmem>>, %arg10: memref<1x1x64xf32, #tpu.memory_space<vmem>>, %arg11: memref<1x1x64xf32, #tpu.memory_space<vmem>>, %arg12: memref<1x1x64xf32, #tpu.memory_space<vmem>>, %arg13: memref<1x1x64xf32, #tpu.memory_space<vmem>>, %arg14: memref<8x64xf32, #tpu.memory_space<vmem>>, %arg15: memref<8x64xf32, #tpu.memory_space<vmem>>) attributes {dimension_semantics = [#tpu.dimension_semantics<parallel>, #tpu.dimension_semantics<arbitrary>], iteration_bounds = array<i64: 2, 2>, scalar_prefetch = 0 : i64, scratch_operands = 1 : i64, tpu.core_type = #tpu.core_type<tc>, window_params = [{transform_indices = @transform_0, window_bounds = array<i64: 8, 64>}, {transform_indices = @transform_1, window_bounds = array<i64: 1, 8, 8>}, {transform_indices = @transform_2, window_bounds = array<i64: 1, 64, 192>}, {transform_indices = @transform_3, window_bounds = array<i64: 1, 1, 192>}, {transform_indices = @transform_4, window_bounds = array<i64: 1, 64, 256>}, {transform_indices = @transform_5, window_bounds = array<i64: 1, 1, 256>}, {transform_indices = @transform_6, window_bounds = array<i64: 1, 256, 64>}, {transform_indices = @transform_7, window_bounds = array<i64: 1, 1, 64>}, {transform_indices = @transform_8, window_bounds = array<i64: 1, 1, 64>}, {transform_indices = @transform_9, window_bounds = array<i64: 1, 1, 64>}, {transform_indices = @transform_10, window_bounds = array<i64: 1, 1, 64>}, {transform_indices = @transform_11, window_bounds = array<i64: 1, 1, 64>}, {transform_indices = @transform_12, window_bounds = array<i64: 8, 64>}]} {
    %c0_i32 = arith.constant 0 : i32
    %0 = arith.cmpi eq, %arg1, %c0_i32 : i32
    %1 = arith.extui %0 : i1 to i32
    %c0_i32_0 = arith.constant 0 : i32
    %2 = arith.cmpi ne, %1, %c0_i32_0 : i32
    scf.if %2 {
      %c0_56 = arith.constant 0 : index
      %c0_57 = arith.constant 0 : index
      %109 = vector.load %arg2[%c0_56, %c0_57] : memref<8x64xf32, #tpu.memory_space<vmem>>, vector<8x64xf32>
      %c0_58 = arith.constant 0 : index
      %c0_59 = arith.constant 0 : index
      %110 = vector.load %arg15[%c0_58, %c0_59] : memref<8x64xf32, #tpu.memory_space<vmem>>, vector<8x64xf32>
      tpu.vector_store %arg15[%c0_58, %c0_59], %109 {strides = array<i32>} : memref<8x64xf32, #tpu.memory_space<vmem>>, vector<8x64xf32>,
    } else {
    }
    %c0 = arith.constant 0 : index
    %c0_1 = arith.constant 0 : index
    %3 = vector.load %arg15[%c0, %c0_1] : memref<8x64xf32, #tpu.memory_space<vmem>>, vector<8x64xf32>
    %4 = arith.truncf %3 : vector<8x64xf32> to vector<8x64xbf16>
    %c0_2 = arith.constant 0 : index
    %c0_3 = arith.constant 0 : index
    %c0_4 = arith.constant 0 : index
    %5 = vector.load %arg4[%c0_2, %c0_3, %c0_4] : memref<1x64x192xbf16, #tpu.memory_space<vmem>>, vector<1x64x192xbf16>
    %6 = vector.shape_cast %5 : vector<1x64x192xbf16> to vector<64x192xbf16>
    %cst = arith.constant dense<0.000000e+00> : vector<8x192xf32>
    %7 = tpu.matmul %4, %6, %cst {dimension_numbers = #tpu.dot_dimension_numbers<[1], [0], [0], [1], [0, 0, 1, 1], [], []>} : vector<8x64xbf16>, vector<64x192xbf16>, vector<8x192xf32> -> vector<8x192xf32>
    %c0_5 = arith.constant 0 : index
    %c0_6 = arith.constant 0 : index
    %c0_7 = arith.constant 0 : index
    %8 = vector.load %arg5[%c0_5, %c0_6, %c0_7] : memref<1x1x192xf32, #tpu.memory_space<vmem>>, vector<1x1x192xf32>
    %9 = vector.shape_cast %8 : vector<1x1x192xf32> to vector<1x192xf32>
    %10 = vector.broadcast %9 : vector<1x192xf32> to vector<8x192xf32>
    %11 = arith.addf %7, %10 : vector<8x192xf32>
    %12 = vector.extract_strided_slice %11 {offsets = [0, 0], sizes = [8, 64], strides = [1, 1]} : vector<8x192xf32> to vector<8x64xf32>
    %13 = vector.extract_strided_slice %11 {offsets = [0, 64], sizes = [8, 64], strides = [1, 1]} : vector<8x192xf32> to vector<8x64xf32>
    %14 = vector.extract_strided_slice %11 {offsets = [0, 128], sizes = [8, 64], strides = [1, 1]} : vector<8x192xf32> to vector<8x64xf32>
    %15 = arith.truncf %12 : vector<8x64xf32> to vector<8x64xbf16>
    %16 = arith.truncf %13 : vector<8x64xf32> to vector<8x64xbf16>
    %cst_8 = arith.constant dense<0.000000e+00> : vector<8x8xf32>
    %17 = tpu.matmul %15, %16, %cst_8 {dimension_numbers = #tpu.dot_dimension_numbers<[1], [1], [0], [0], [0, 0, 1, 0], [], []>} : vector<8x64xbf16>, vector<8x64xbf16>, vector<8x8xf32> -> vector<8x8xf32>
    %cst_9 = arith.constant 1.250000e-01 : f32
    %18 = vector.broadcast %cst_9 : f32 to vector<8x8xf32>
    %19 = arith.mulf %17, %18 : vector<8x8xf32>
    %c0_10 = arith.constant 0 : index
    %c0_11 = arith.constant 0 : index
    %c0_12 = arith.constant 0 : index
    %20 = vector.load %arg3[%c0_10, %c0_11, %c0_12] : memref<1x8x8xf32, #tpu.memory_space<vmem>>, vector<1x8x8xf32>
    %21 = vector.shape_cast %20 : vector<1x8x8xf32> to vector<8x8xf32>
    %22 = arith.addf %19, %21 : vector<8x8xf32>
    %cst_13 = arith.constant dense<0xFF800000> : vector<8xf32>
    %23 = vector.multi_reduction <maximumf>, %22, %cst_13 [1] : vector<8x8xf32> to vector<8xf32>
    %24 = vector.shape_cast %23 : vector<8xf32> to vector<8x1xf32>
    %25 = vector.broadcast %24 : vector<8x1xf32> to vector<8x8xf32>
    %26 = arith.subf %22, %25 : vector<8x8xf32>
    %27 = arith.truncf %26 : vector<8x8xf32> to vector<8x8xbf16>
    %28 = math.exp %27 : vector<8x8xbf16>
    %29 = arith.extf %28 : vector<8x8xbf16> to vector<8x8xf32>
    %cst_14 = arith.constant dense<0.000000e+00> : vector<8xf32>
    %30 = vector.multi_reduction <add>, %29, %cst_14 [1] : vector<8x8xf32> to vector<8xf32>
    %31 = vector.shape_cast %30 : vector<8xf32> to vector<8x1xf32>
    %32 = tpu.reciprocal %31 {approx = true} : vector<8x1xf32> -> vector<8x1xf32>
    %33 = arith.truncf %14 : vector<8x64xf32> to vector<8x64xbf16>
    %cst_15 = arith.constant dense<0.000000e+00> : vector<8x64xf32>
    %34 = tpu.matmul %28, %33, %cst_15 {dimension_numbers = #tpu.dot_dimension_numbers<[1], [0], [0], [1], [0, 0, 1, 1], [], []>} : vector<8x8xbf16>, vector<8x64xbf16>, vector<8x64xf32> -> vector<8x64xf32>
    %35 = vector.broadcast %32 : vector<8x1xf32> to vector<8x64xf32>
    %36 = arith.mulf %34, %35 : vector<8x64xf32>
    %37 = arith.addf %3, %36 : vector<8x64xf32>
    %c0_16 = arith.constant 0 : index
    %c0_17 = arith.constant 0 : index
    %c0_18 = arith.constant 0 : index
    %38 = vector.load %arg10[%c0_16, %c0_17, %c0_18] : memref<1x1x64xf32, #tpu.memory_space<vmem>>, vector<1x1x64xf32>
    %39 = vector.shape_cast %38 : vector<1x1x64xf32> to vector<1x64xf32>
    %c0_19 = arith.constant 0 : index
    %c0_20 = arith.constant 0 : index
    %c0_21 = arith.constant 0 : index
    %40 = vector.load %arg11[%c0_19, %c0_20, %c0_21] : memref<1x1x64xf32, #tpu.memory_space<vmem>>, vector<1x1x64xf32>
    %41 = vector.shape_cast %40 : vector<1x1x64xf32> to vector<1x64xf32>
    %cst_22 = arith.constant dense<0.000000e+00> : vector<8xf32>
    %42 = vector.multi_reduction <add>, %37, %cst_22 [1] : vector<8x64xf32> to vector<8xf32>
    %43 = vector.shape_cast %42 : vector<8xf32> to vector<8x1xf32>
    %cst_23 = arith.constant 6.400000e+01 : f32
    %44 = vector.broadcast %cst_23 : f32 to vector<8x1xf32>
    %45 = arith.divf %43, %44 : vector<8x1xf32>
    %46 = vector.broadcast %45 : vector<8x1xf32> to vector<8x64xf32>
    %47 = arith.subf %37, %46 : vector<8x64xf32>
    %48 = arith.mulf %47, %47 : vector<8x64xf32>
    %cst_24 = arith.constant dense<0.000000e+00> : vector<8xf32>
    %49 = vector.multi_reduction <add>, %48, %cst_24 [1] : vector<8x64xf32> to vector<8xf32>
    %50 = vector.shape_cast %49 : vector<8xf32> to vector<8x1xf32>
    %cst_25 = arith.constant 6.400000e+01 : f32
    %51 = vector.broadcast %cst_25 : f32 to vector<8x1xf32>
    %52 = arith.divf %50, %51 : vector<8x1xf32>
    %cst_26 = arith.constant 9.99999974E-6 : f32
    %53 = vector.broadcast %cst_26 : f32 to vector<8x1xf32>
    %54 = arith.addf %52, %53 : vector<8x1xf32>
    %55 = math.rsqrt %54 : vector<8x1xf32>
    %56 = vector.broadcast %55 : vector<8x1xf32> to vector<8x64xf32>
    %57 = arith.mulf %47, %56 : vector<8x64xf32>
    %58 = vector.broadcast %39 : vector<1x64xf32> to vector<8x64xf32>
    %59 = arith.mulf %57, %58 : vector<8x64xf32>
    %60 = vector.broadcast %41 : vector<1x64xf32> to vector<8x64xf32>
    %61 = arith.addf %59, %60 : vector<8x64xf32>
    %62 = arith.truncf %61 : vector<8x64xf32> to vector<8x64xbf16>
    %c0_27 = arith.constant 0 : index
    %c0_28 = arith.constant 0 : index
    %c0_29 = arith.constant 0 : index
    %63 = vector.load %arg6[%c0_27, %c0_28, %c0_29] : memref<1x64x256xbf16, #tpu.memory_space<vmem>>, vector<1x64x256xbf16>
    %64 = vector.shape_cast %63 : vector<1x64x256xbf16> to vector<64x256xbf16>
    %cst_30 = arith.constant dense<0.000000e+00> : vector<8x256xf32>
    %65 = tpu.matmul %62, %64, %cst_30 {dimension_numbers = #tpu.dot_dimension_numbers<[1], [0], [0], [1], [0, 0, 1, 1], [], []>} : vector<8x64xbf16>, vector<64x256xbf16>, vector<8x256xf32> -> vector<8x256xf32>
    %c0_31 = arith.constant 0 : index
    %c0_32 = arith.constant 0 : index
    %c0_33 = arith.constant 0 : index
    %66 = vector.load %arg7[%c0_31, %c0_32, %c0_33] : memref<1x1x256xf32, #tpu.memory_space<vmem>>, vector<1x1x256xf32>
    %67 = vector.shape_cast %66 : vector<1x1x256xf32> to vector<1x256xf32>
    %68 = vector.broadcast %67 : vector<1x256xf32> to vector<8x256xf32>
    %69 = arith.addf %65, %68 : vector<8x256xf32>
    %cst_34 = arith.constant 0.000000e+00 : f32
    %70 = vector.broadcast %cst_34 : f32 to vector<8x256xf32>
    %71 = arith.maximumf %69, %70 : vector<8x256xf32>
    %72 = arith.truncf %71 : vector<8x256xf32> to vector<8x256xbf16>
    %c0_35 = arith.constant 0 : index
    %c0_36 = arith.constant 0 : index
    %c0_37 = arith.constant 0 : index
    %73 = vector.load %arg8[%c0_35, %c0_36, %c0_37] : memref<1x256x64xbf16, #tpu.memory_space<vmem>>, vector<1x256x64xbf16>
    %74 = vector.shape_cast %73 : vector<1x256x64xbf16> to vector<256x64xbf16>
    %cst_38 = arith.constant dense<0.000000e+00> : vector<8x64xf32>
    %75 = tpu.matmul %72, %74, %cst_38 {dimension_numbers = #tpu.dot_dimension_numbers<[1], [0], [0], [1], [0, 0, 1, 1], [], []>} : vector<8x256xbf16>, vector<256x64xbf16>, vector<8x64xf32> -> vector<8x64xf32>
    %c0_39 = arith.constant 0 : index
    %c0_40 = arith.constant 0 : index
    %c0_41 = arith.constant 0 : index
    %76 = vector.load %arg9[%c0_39, %c0_40, %c0_41] : memref<1x1x64xf32, #tpu.memory_space<vmem>>, vector<1x1x64xf32>
    %77 = vector.shape_cast %76 : vector<1x1x64xf32> to vector<1x64xf32>
    %78 = vector.broadcast %77 : vector<1x64xf32> to vector<8x64xf32>
    %79 = arith.addf %75, %78 : vector<8x64xf32>
    %80 = arith.addf %61, %79 : vector<8x64xf32>
    %c0_42 = arith.constant 0 : index
    %c0_43 = arith.constant 0 : index
    %c0_44 = arith.constant 0 : index
    %81 = vector.load %arg12[%c0_42, %c0_43, %c0_44] : memref<1x1x64xf32, #tpu.memory_space<vmem>>, vector<1x1x64xf32>
    %82 = vector.shape_cast %81 : vector<1x1x64xf32> to vector<1x64xf32>
    %c0_45 = arith.constant 0 : index
    %c0_46 = arith.constant 0 : index
    %c0_47 = arith.constant 0 : index
    %83 = vector.load %arg13[%c0_45, %c0_46, %c0_47] : memref<1x1x64xf32, #tpu.memory_space<vmem>>, vector<1x1x64xf32>
    %84 = vector.shape_cast %83 : vector<1x1x64xf32> to vector<1x64xf32>
    %cst_48 = arith.constant dense<0.000000e+00> : vector<8xf32>
    %85 = vector.multi_reduction <add>, %80, %cst_48 [1] : vector<8x64xf32> to vector<8xf32>
    %86 = vector.shape_cast %85 : vector<8xf32> to vector<8x1xf32>
    %cst_49 = arith.constant 6.400000e+01 : f32
    %87 = vector.broadcast %cst_49 : f32 to vector<8x1xf32>
    %88 = arith.divf %86, %87 : vector<8x1xf32>
    %89 = vector.broadcast %88 : vector<8x1xf32> to vector<8x64xf32>
    %90 = arith.subf %80, %89 : vector<8x64xf32>
    %91 = arith.mulf %90, %90 : vector<8x64xf32>
    %cst_50 = arith.constant dense<0.000000e+00> : vector<8xf32>
    %92 = vector.multi_reduction <add>, %91, %cst_50 [1] : vector<8x64xf32> to vector<8xf32>
    %93 = vector.shape_cast %92 : vector<8xf32> to vector<8x1xf32>
    %cst_51 = arith.constant 6.400000e+01 : f32
    %94 = vector.broadcast %cst_51 : f32 to vector<8x1xf32>
    %95 = arith.divf %93, %94 : vector<8x1xf32>
    %cst_52 = arith.constant 9.99999974E-6 : f32
    %96 = vector.broadcast %cst_52 : f32 to vector<8x1xf32>
    %97 = arith.addf %95, %96 : vector<8x1xf32>
    %98 = math.rsqrt %97 : vector<8x1xf32>
    %99 = vector.broadcast %98 : vector<8x1xf32> to vector<8x64xf32>
    %100 = arith.mulf %90, %99 : vector<8x64xf32>
    %101 = vector.broadcast %82 : vector<1x64xf32> to vector<8x64xf32>
    %102 = arith.mulf %100, %101 : vector<8x64xf32>
    %103 = vector.broadcast %84 : vector<1x64xf32> to vector<8x64xf32>
    %104 = arith.addf %102, %103 : vector<8x64xf32>
    %c0_53 = arith.constant 0 : index
    %c0_54 = arith.constant 0 : index
    %105 = vector.load %arg15[%c0_53, %c0_54] : memref<8x64xf32, #tpu.memory_space<vmem>>, vector<8x64xf32>
    tpu.vector_store %arg15[%c0_53, %c0_54], %104 {strides = array<i32>} : memref<8x64xf32, #tpu.memory_space<vmem>>, vector<8x64xf32>,
    %c1_i32 = arith.constant 1 : i32
    %106 = arith.cmpi eq, %arg1, %c1_i32 : i32
    %107 = arith.extui %106 : i1 to i32
    %c0_i32_55 = arith.constant 0 : i32
    %108 = arith.cmpi ne, %107, %c0_i32_55 : i32
    scf.if %108 {
      %c0_56 = arith.constant 0 : index
      %c0_57 = arith.constant 0 : index
      %109 = vector.load %arg14[%c0_56, %c0_57] : memref<8x64xf32, #tpu.memory_space<vmem>>, vector<8x64xf32>
      tpu.vector_store %arg14[%c0_56, %c0_57], %104 {strides = array<i32>} : memref<8x64xf32, #tpu.memory_space<vmem>>, vector<8x64xf32>,
    } else {
    }
    return
  }
  func.func @transform_0(%arg0: i32, %arg1: i32) -> (i32, i32) {
    %c0_i32 = arith.constant 0 : i32
    %c0_i32_0 = arith.constant 0 : i32
    return %arg0, %c0_i32 : i32, i32
  }
  func.func @transform_1(%arg0: i32, %arg1: i32) -> (i32, i32, i32) {
    %c0_i32 = arith.constant 0 : i32
    %c0_i32_0 = arith.constant 0 : i32
    %c0_i32_1 = arith.constant 0 : i32
    return %arg0, %c0_i32, %c0_i32_0 : i32, i32, i32
  }
  func.func @transform_2(%arg0: i32, %arg1: i32) -> (i32, i32, i32) {
    %c0_i32 = arith.constant 0 : i32
    %c0_i32_0 = arith.constant 0 : i32
    %c0_i32_1 = arith.constant 0 : i32
    return %arg1, %c0_i32, %c0_i32_0 : i32, i32, i32
  }
  func.func @transform_3(%arg0: i32, %arg1: i32) -> (i32, i32, i32) {
    %c0_i32 = arith.constant 0 : i32
    %c0_i32_0 = arith.constant 0 : i32
    %c0_i32_1 = arith.constant 0 : i32
    return %arg1, %c0_i32, %c0_i32_0 : i32, i32, i32
  }
  func.func @transform_4(%arg0: i32, %arg1: i32) -> (i32, i32, i32) {
    %c0_i32 = arith.constant 0 : i32
    %c0_i32_0 = arith.constant 0 : i32
    %c0_i32_1 = arith.constant 0 : i32
    return %arg1, %c0_i32, %c0_i32_0 : i32, i32, i32
  }
  func.func @transform_5(%arg0: i32, %arg1: i32) -> (i32, i32, i32) {
    %c0_i32 = arith.constant 0 : i32
    %c0_i32_0 = arith.constant 0 : i32
    %c0_i32_1 = arith.constant 0 : i32
    return %arg1, %c0_i32, %c0_i32_0 : i32, i32, i32
  }
  func.func @transform_6(%arg0: i32, %arg1: i32) -> (i32, i32, i32) {
    %c0_i32 = arith.constant 0 : i32
    %c0_i32_0 = arith.constant 0 : i32
    %c0_i32_1 = arith.constant 0 : i32
    return %arg1, %c0_i32, %c0_i32_0 : i32, i32, i32
  }
  func.func @transform_7(%arg0: i32, %arg1: i32) -> (i32, i32, i32) {
    %c0_i32 = arith.constant 0 : i32
    %c0_i32_0 = arith.constant 0 : i32
    %c0_i32_1 = arith.constant 0 : i32
    return %arg1, %c0_i32, %c0_i32_0 : i32, i32, i32
  }
  func.func @transform_8(%arg0: i32, %arg1: i32) -> (i32, i32, i32) {
    %c0_i32 = arith.constant 0 : i32
    %c0_i32_0 = arith.constant 0 : i32
    %c0_i32_1 = arith.constant 0 : i32
    return %arg1, %c0_i32, %c0_i32_0 : i32, i32, i32
  }
  func.func @transform_9(%arg0: i32, %arg1: i32) -> (i32, i32, i32) {
    %c0_i32 = arith.constant 0 : i32
    %c0_i32_0 = arith.constant 0 : i32
    %c0_i32_1 = arith.constant 0 : i32
    return %arg1, %c0_i32, %c0_i32_0 : i32, i32, i32
  }
  func.func @transform_10(%arg0: i32, %arg1: i32) -> (i32, i32, i32) {
    %c0_i32 = arith.constant 0 : i32
    %c0_i32_0 = arith.constant 0 : i32
    %c0_i32_1 = arith.constant 0 : i32
    return %arg1, %c0_i32, %c0_i32_0 : i32, i32, i32
  }
  func.func @transform_11(%arg0: i32, %arg1: i32) -> (i32, i32, i32) {
    %c0_i32 = arith.constant 0 : i32
    %c0_i32_0 = arith.constant 0 : i32
    %c0_i32_1 = arith.constant 0 : i32
    return %arg1, %c0_i32, %c0_i32_0 : i32, i32, i32
  }
  func.func @transform_12(%arg0: i32, %arg1: i32) -> (i32, i32) {
    %c0_i32 = arith.constant 0 : i32
    %c0_i32_0 = arith.constant 0 : i32
    return %arg0, %c0_i32 : i32, i32
  }
}

module attributes {stable_mosaic.version = 11 : i64} {
  func.func @_trg_dec_kernel(%arg0: i32, %arg1: memref<1x8x64xf32, #tpu.memory_space<vmem>>, %arg2: memref<1x8x64xf32, #tpu.memory_space<vmem>>, %arg3: memref<1x8x8xf32, #tpu.memory_space<vmem>>, %arg4: memref<64x64xbf16, #tpu.memory_space<vmem>>, %arg5: memref<1x64xf32, #tpu.memory_space<vmem>>, %arg6: memref<64x128xbf16, #tpu.memory_space<vmem>>, %arg7: memref<1x128xf32, #tpu.memory_space<vmem>>, %arg8: memref<1x64xf32, #tpu.memory_space<vmem>>, %arg9: memref<1x64xf32, #tpu.memory_space<vmem>>, %arg10: memref<1x1x8xf32, #tpu.memory_space<vmem>>) attributes {dimension_semantics = [#tpu.dimension_semantics<parallel>], iteration_bounds = array<i64: 2>, scalar_prefetch = 0 : i64, scratch_operands = 0 : i64, tpu.core_type = #tpu.core_type<tc>, window_params = [{transform_indices = @transform_0, window_bounds = array<i64: 1, 8, 64>}, {transform_indices = @transform_1, window_bounds = array<i64: 1, 8, 64>}, {transform_indices = @transform_2, window_bounds = array<i64: 1, 8, 8>}, {pipeline_mode = #tpu.pipeline_mode<synchronous>, transform_indices = @transform_3, window_bounds = array<i64: 64, 64>}, {pipeline_mode = #tpu.pipeline_mode<synchronous>, transform_indices = @transform_4, window_bounds = array<i64: 1, 64>}, {pipeline_mode = #tpu.pipeline_mode<synchronous>, transform_indices = @transform_5, window_bounds = array<i64: 64, 128>}, {pipeline_mode = #tpu.pipeline_mode<synchronous>, transform_indices = @transform_6, window_bounds = array<i64: 1, 128>}, {pipeline_mode = #tpu.pipeline_mode<synchronous>, transform_indices = @transform_7, window_bounds = array<i64: 1, 64>}, {pipeline_mode = #tpu.pipeline_mode<synchronous>, transform_indices = @transform_8, window_bounds = array<i64: 1, 64>}, {transform_indices = @transform_9, window_bounds = array<i64: 1, 1, 8>}]} {
    %c0 = arith.constant 0 : index
    %c0_0 = arith.constant 0 : index
    %c0_1 = arith.constant 0 : index
    %0 = vector.load %arg1[%c0, %c0_0, %c0_1] : memref<1x8x64xf32, #tpu.memory_space<vmem>>, vector<1x8x64xf32>
    %1 = vector.shape_cast %0 : vector<1x8x64xf32> to vector<8x64xf32>
    %c0_2 = arith.constant 0 : index
    %c0_3 = arith.constant 0 : index
    %c0_4 = arith.constant 0 : index
    %2 = vector.load %arg2[%c0_2, %c0_3, %c0_4] : memref<1x8x64xf32, #tpu.memory_space<vmem>>, vector<1x8x64xf32>
    %3 = vector.shape_cast %2 : vector<1x8x64xf32> to vector<8x64xf32>
    %4 = arith.truncf %3 : vector<8x64xf32> to vector<8x64xbf16>
    %c0_5 = arith.constant 0 : index
    %c0_6 = arith.constant 0 : index
    %5 = vector.load %arg4[%c0_5, %c0_6] : memref<64x64xbf16, #tpu.memory_space<vmem>>, vector<64x64xbf16>
    %cst = arith.constant dense<0.000000e+00> : vector<8x64xf32>
    %6 = tpu.matmul %4, %5, %cst {dimension_numbers = #tpu.dot_dimension_numbers<[1], [0], [0], [1], [0, 0, 1, 1], [], []>} : vector<8x64xbf16>, vector<64x64xbf16>, vector<8x64xf32> -> vector<8x64xf32>
    %c0_7 = arith.constant 0 : index
    %c0_8 = arith.constant 0 : index
    %7 = vector.load %arg5[%c0_7, %c0_8] : memref<1x64xf32, #tpu.memory_space<vmem>>, vector<1x64xf32>
    %8 = vector.broadcast %7 : vector<1x64xf32> to vector<8x64xf32>
    %9 = arith.addf %6, %8 : vector<8x64xf32>
    %10 = arith.truncf %1 : vector<8x64xf32> to vector<8x64xbf16>
    %c0_9 = arith.constant 0 : index
    %c0_10 = arith.constant 0 : index
    %11 = vector.load %arg6[%c0_9, %c0_10] : memref<64x128xbf16, #tpu.memory_space<vmem>>, vector<64x128xbf16>
    %cst_11 = arith.constant dense<0.000000e+00> : vector<8x128xf32>
    %12 = tpu.matmul %10, %11, %cst_11 {dimension_numbers = #tpu.dot_dimension_numbers<[1], [0], [0], [1], [0, 0, 1, 1], [], []>} : vector<8x64xbf16>, vector<64x128xbf16>, vector<8x128xf32> -> vector<8x128xf32>
    %c0_12 = arith.constant 0 : index
    %c0_13 = arith.constant 0 : index
    %13 = vector.load %arg7[%c0_12, %c0_13] : memref<1x128xf32, #tpu.memory_space<vmem>>, vector<1x128xf32>
    %14 = vector.broadcast %13 : vector<1x128xf32> to vector<8x128xf32>
    %15 = arith.addf %12, %14 : vector<8x128xf32>
    %16 = vector.extract_strided_slice %15 {offsets = [0, 0], sizes = [8, 64], strides = [1, 1]} : vector<8x128xf32> to vector<8x64xf32>
    %17 = vector.extract_strided_slice %15 {offsets = [0, 64], sizes = [8, 64], strides = [1, 1]} : vector<8x128xf32> to vector<8x64xf32>
    %18 = arith.truncf %9 : vector<8x64xf32> to vector<8x64xbf16>
    %19 = arith.truncf %16 : vector<8x64xf32> to vector<8x64xbf16>
    %cst_14 = arith.constant dense<0.000000e+00> : vector<8x8xf32>
    %20 = tpu.matmul %18, %19, %cst_14 {dimension_numbers = #tpu.dot_dimension_numbers<[1], [1], [0], [0], [0, 0, 1, 0], [], []>} : vector<8x64xbf16>, vector<8x64xbf16>, vector<8x8xf32> -> vector<8x8xf32>
    %cst_15 = arith.constant 1.250000e-01 : f32
    %21 = vector.broadcast %cst_15 : f32 to vector<8x8xf32>
    %22 = arith.mulf %20, %21 : vector<8x8xf32>
    %c0_16 = arith.constant 0 : index
    %c0_17 = arith.constant 0 : index
    %c0_18 = arith.constant 0 : index
    %23 = vector.load %arg3[%c0_16, %c0_17, %c0_18] : memref<1x8x8xf32, #tpu.memory_space<vmem>>, vector<1x8x8xf32>
    %24 = vector.shape_cast %23 : vector<1x8x8xf32> to vector<8x8xf32>
    %25 = arith.addf %22, %24 : vector<8x8xf32>
    %cst_19 = arith.constant dense<0xFF800000> : vector<8xf32>
    %26 = vector.multi_reduction <maximumf>, %25, %cst_19 [1] : vector<8x8xf32> to vector<8xf32>
    %27 = vector.shape_cast %26 : vector<8xf32> to vector<8x1xf32>
    %28 = vector.broadcast %27 : vector<8x1xf32> to vector<8x8xf32>
    %29 = arith.subf %25, %28 : vector<8x8xf32>
    %30 = arith.truncf %29 : vector<8x8xf32> to vector<8x8xbf16>
    %31 = math.exp %30 : vector<8x8xbf16>
    %32 = arith.extf %31 : vector<8x8xbf16> to vector<8x8xf32>
    %cst_20 = arith.constant dense<0.000000e+00> : vector<8xf32>
    %33 = vector.multi_reduction <add>, %32, %cst_20 [1] : vector<8x8xf32> to vector<8xf32>
    %34 = vector.shape_cast %33 : vector<8xf32> to vector<8x1xf32>
    %35 = tpu.reciprocal %34 {approx = true} : vector<8x1xf32> -> vector<8x1xf32>
    %36 = arith.truncf %17 : vector<8x64xf32> to vector<8x64xbf16>
    %cst_21 = arith.constant dense<0.000000e+00> : vector<8x64xf32>
    %37 = tpu.matmul %31, %36, %cst_21 {dimension_numbers = #tpu.dot_dimension_numbers<[1], [0], [0], [1], [0, 0, 1, 1], [], []>} : vector<8x8xbf16>, vector<8x64xbf16>, vector<8x64xf32> -> vector<8x64xf32>
    %38 = vector.broadcast %35 : vector<8x1xf32> to vector<8x64xf32>
    %39 = arith.mulf %37, %38 : vector<8x64xf32>
    %40 = arith.addf %1, %39 : vector<8x64xf32>
    %c0_22 = arith.constant 0 : index
    %c0_23 = arith.constant 0 : index
    %41 = vector.load %arg8[%c0_22, %c0_23] : memref<1x64xf32, #tpu.memory_space<vmem>>, vector<1x64xf32>
    %c0_24 = arith.constant 0 : index
    %c0_25 = arith.constant 0 : index
    %42 = vector.load %arg9[%c0_24, %c0_25] : memref<1x64xf32, #tpu.memory_space<vmem>>, vector<1x64xf32>
    %cst_26 = arith.constant dense<0.000000e+00> : vector<8xf32>
    %43 = vector.multi_reduction <add>, %40, %cst_26 [1] : vector<8x64xf32> to vector<8xf32>
    %44 = vector.shape_cast %43 : vector<8xf32> to vector<8x1xf32>
    %cst_27 = arith.constant 6.400000e+01 : f32
    %45 = vector.broadcast %cst_27 : f32 to vector<8x1xf32>
    %46 = arith.divf %44, %45 : vector<8x1xf32>
    %47 = vector.broadcast %46 : vector<8x1xf32> to vector<8x64xf32>
    %48 = arith.subf %40, %47 : vector<8x64xf32>
    %49 = arith.mulf %48, %48 : vector<8x64xf32>
    %cst_28 = arith.constant dense<0.000000e+00> : vector<8xf32>
    %50 = vector.multi_reduction <add>, %49, %cst_28 [1] : vector<8x64xf32> to vector<8xf32>
    %51 = vector.shape_cast %50 : vector<8xf32> to vector<8x1xf32>
    %cst_29 = arith.constant 6.400000e+01 : f32
    %52 = vector.broadcast %cst_29 : f32 to vector<8x1xf32>
    %53 = arith.divf %51, %52 : vector<8x1xf32>
    %cst_30 = arith.constant 9.99999974E-6 : f32
    %54 = vector.broadcast %cst_30 : f32 to vector<8x1xf32>
    %55 = arith.addf %53, %54 : vector<8x1xf32>
    %56 = math.rsqrt %55 : vector<8x1xf32>
    %57 = vector.broadcast %56 : vector<8x1xf32> to vector<8x64xf32>
    %58 = arith.mulf %48, %57 : vector<8x64xf32>
    %59 = vector.broadcast %41 : vector<1x64xf32> to vector<8x64xf32>
    %60 = arith.mulf %58, %59 : vector<8x64xf32>
    %61 = vector.broadcast %42 : vector<1x64xf32> to vector<8x64xf32>
    %62 = arith.addf %60, %61 : vector<8x64xf32>
    %63 = arith.mulf %62, %3 : vector<8x64xf32>
    %cst_31 = arith.constant dense<0.000000e+00> : vector<8xf32>
    %64 = vector.multi_reduction <add>, %63, %cst_31 [1] : vector<8x64xf32> to vector<8xf32>
    %65 = vector.shape_cast %64 : vector<8xf32> to vector<1x1x8xf32>
    %c0_32 = arith.constant 0 : index
    %c0_33 = arith.constant 0 : index
    %c0_34 = arith.constant 0 : index
    %66 = vector.load %arg10[%c0_32, %c0_33, %c0_34] : memref<1x1x8xf32, #tpu.memory_space<vmem>>, vector<1x1x8xf32>
    tpu.vector_store %arg10[%c0_32, %c0_33, %c0_34], %65 {strides = array<i32>} : memref<1x1x8xf32, #tpu.memory_space<vmem>>, vector<1x1x8xf32>,
    return
  }
  func.func @transform_0(%arg0: i32) -> (i32, i32, i32) {
    %c0_i32 = arith.constant 0 : i32
    %c0_i32_0 = arith.constant 0 : i32
    %c0_i32_1 = arith.constant 0 : i32
    return %arg0, %c0_i32, %c0_i32_0 : i32, i32, i32
  }
  func.func @transform_1(%arg0: i32) -> (i32, i32, i32) {
    %c0_i32 = arith.constant 0 : i32
    %c0_i32_0 = arith.constant 0 : i32
    %c0_i32_1 = arith.constant 0 : i32
    return %arg0, %c0_i32, %c0_i32_0 : i32, i32, i32
  }
  func.func @transform_2(%arg0: i32) -> (i32, i32, i32) {
    %c0_i32 = arith.constant 0 : i32
    %c0_i32_0 = arith.constant 0 : i32
    %c0_i32_1 = arith.constant 0 : i32
    return %arg0, %c0_i32, %c0_i32_0 : i32, i32, i32
  }
  func.func @transform_3(%arg0: i32) -> (i32, i32) {
    %c0_i32 = arith.constant 0 : i32
    %c0_i32_0 = arith.constant 0 : i32
    %c0_i32_1 = arith.constant 0 : i32
    return %c0_i32, %c0_i32_0 : i32, i32
  }
  func.func @transform_4(%arg0: i32) -> (i32, i32) {
    %c0_i32 = arith.constant 0 : i32
    %c0_i32_0 = arith.constant 0 : i32
    %c0_i32_1 = arith.constant 0 : i32
    return %c0_i32, %c0_i32_0 : i32, i32
  }
  func.func @transform_5(%arg0: i32) -> (i32, i32) {
    %c0_i32 = arith.constant 0 : i32
    %c0_i32_0 = arith.constant 0 : i32
    %c0_i32_1 = arith.constant 0 : i32
    return %c0_i32, %c0_i32_0 : i32, i32
  }
  func.func @transform_6(%arg0: i32) -> (i32, i32) {
    %c0_i32 = arith.constant 0 : i32
    %c0_i32_0 = arith.constant 0 : i32
    %c0_i32_1 = arith.constant 0 : i32
    return %c0_i32, %c0_i32_0 : i32, i32
  }
  func.func @transform_7(%arg0: i32) -> (i32, i32) {
    %c0_i32 = arith.constant 0 : i32
    %c0_i32_0 = arith.constant 0 : i32
    %c0_i32_1 = arith.constant 0 : i32
    return %c0_i32, %c0_i32_0 : i32, i32
  }
  func.func @transform_8(%arg0: i32) -> (i32, i32) {
    %c0_i32 = arith.constant 0 : i32
    %c0_i32_0 = arith.constant 0 : i32
    %c0_i32_1 = arith.constant 0 : i32
    return %c0_i32, %c0_i32_0 : i32, i32
  }
  func.func @transform_9(%arg0: i32) -> (i32, i32, i32) {
    %c0_i32 = arith.constant 0 : i32
    %c0_i32_0 = arith.constant 0 : i32
    %c0_i32_1 = arith.constant 0 : i32
    return %arg0, %c0_i32, %c0_i32_0 : i32, i32, i32
  }
}

module attributes {stable_mosaic.version = 11 : i64} {
  func.func @_pos_dec_kernel(%arg0: i32, %arg1: i32, %arg2: memref<16x64xbf16, #tpu.memory_space<vmem>>, %arg3: memref<64x128xbf16, #tpu.memory_space<vmem>>, %arg4: memref<1x128xf32, #tpu.memory_space<vmem>>, %arg5: memref<16x128xbf16, #tpu.memory_space<vmem>>) attributes {dimension_semantics = [#tpu.dimension_semantics<parallel>, #tpu.dimension_semantics<parallel>], iteration_bounds = array<i64: 1, 1>, scalar_prefetch = 0 : i64, scratch_operands = 0 : i64, tpu.core_type = #tpu.core_type<tc>, window_params = [{transform_indices = @transform_0, window_bounds = array<i64: 16, 64>}, {transform_indices = @transform_1, window_bounds = array<i64: 64, 128>}, {transform_indices = @transform_2, window_bounds = array<i64: 1, 128>}, {transform_indices = @transform_3, window_bounds = array<i64: 16, 128>}]} {
    %c0 = arith.constant 0 : index
    %c0_0 = arith.constant 0 : index
    %0 = vector.load %arg2[%c0, %c0_0] : memref<16x64xbf16, #tpu.memory_space<vmem>>, vector<16x64xbf16>
    %c0_1 = arith.constant 0 : index
    %c0_2 = arith.constant 0 : index
    %1 = vector.load %arg3[%c0_1, %c0_2] : memref<64x128xbf16, #tpu.memory_space<vmem>>, vector<64x128xbf16>
    %cst = arith.constant dense<0.000000e+00> : vector<16x128xf32>
    %2 = tpu.matmul %0, %1, %cst {dimension_numbers = #tpu.dot_dimension_numbers<[1], [0], [0], [1], [0, 0, 1, 1], [], []>} : vector<16x64xbf16>, vector<64x128xbf16>, vector<16x128xf32> -> vector<16x128xf32>
    %c0_3 = arith.constant 0 : index
    %c0_4 = arith.constant 0 : index
    %3 = vector.load %arg4[%c0_3, %c0_4] : memref<1x128xf32, #tpu.memory_space<vmem>>, vector<1x128xf32>
    %4 = vector.broadcast %3 : vector<1x128xf32> to vector<16x128xf32>
    %5 = arith.addf %2, %4 : vector<16x128xf32>
    %6 = arith.truncf %5 : vector<16x128xf32> to vector<16x128xbf16>
    %c0_5 = arith.constant 0 : index
    %c0_6 = arith.constant 0 : index
    %7 = vector.load %arg5[%c0_5, %c0_6] : memref<16x128xbf16, #tpu.memory_space<vmem>>, vector<16x128xbf16>
    tpu.vector_store %arg5[%c0_5, %c0_6], %6 {strides = array<i32>} : memref<16x128xbf16, #tpu.memory_space<vmem>>, vector<16x128xbf16>,
    return
  }
  func.func @transform_0(%arg0: i32, %arg1: i32) -> (i32, i32) {
    %c0_i32 = arith.constant 0 : i32
    %c0_i32_0 = arith.constant 0 : i32
    return %arg0, %c0_i32 : i32, i32
  }
  func.func @transform_1(%arg0: i32, %arg1: i32) -> (i32, i32) {
    %c0_i32 = arith.constant 0 : i32
    %c0_i32_0 = arith.constant 0 : i32
    return %c0_i32, %arg1 : i32, i32
  }
  func.func @transform_2(%arg0: i32, %arg1: i32) -> (i32, i32) {
    %c0_i32 = arith.constant 0 : i32
    %c0_i32_0 = arith.constant 0 : i32
    return %c0_i32, %arg1 : i32, i32
  }
  func.func @transform_3(%arg0: i32, %arg1: i32) -> (i32, i32) {
    %c0_i32 = arith.constant 0 : i32
    return %arg0, %arg1 : i32, i32
  }
}

</mosaic_0001>

<llo_original>
// kernel: stisan_forward.5
$region0: #{stisan_forward.5}
  #allocation0 [shape = 'u32[]', space=smem, size = 0x4, offset = 0x4, fixed_abs, tag = 'smem constant byte address 0x4 - core index']
  #allocation1 [shape = 'u32[144,128]{1,0:T(1,128)}', space=vmem, size = 0x12000, scoped, tag = 'internal scratch']
  #allocation2 [shape = 'f32[8,64]{1,0:T(8,128)}', space=vmem, size = 0x1000, scoped, tag = 'scratch operand']
  %s0 = inlined_call_operand.vmem [shape: f32[16,64], index: 0, kind: input, shape index: {}]
  %s1 = inlined_call_operand.vmem [shape: f32[2,8,8], index: 1, kind: input, shape index: {}]
  %s2 = inlined_call_operand.vmem [shape: bf16[2,64,192], index: 2, kind: input, shape index: {}]
  %s3 = inlined_call_operand.vmem [shape: f32[2,1,192], index: 3, kind: input, shape index: {}]
  %s4 = inlined_call_operand.vmem [shape: bf16[2,64,256], index: 4, kind: input, shape index: {}]
  %s5 = inlined_call_operand.vmem [shape: f32[2,1,256], index: 5, kind: input, shape index: {}]
  %s6 = inlined_call_operand.vmem [shape: bf16[2,256,64], index: 6, kind: input, shape index: {}]
  %s7 = inlined_call_operand.vmem [shape: f32[2,1,64], index: 7, kind: input, shape index: {}]
  %s8 = inlined_call_operand.vmem [shape: f32[2,1,64], index: 8, kind: input, shape index: {}]
  %s9 = inlined_call_operand.vmem [shape: f32[2,1,64], index: 9, kind: input, shape index: {}]
  %s10 = inlined_call_operand.vmem [shape: f32[2,1,64], index: 10, kind: input, shape index: {}]
  %s11 = inlined_call_operand.vmem [shape: f32[2,1,64], index: 11, kind: input, shape index: {}]
  %s12 = inlined_call_operand.vmem [shape: f32[16,64], index: 12, kind: output, shape index: {}]
  %s13 = sld [smem:[#allocation0]]
  $region89: #{stisan_forward.5} parent=0
    _
  %s15 = ssub.s32 1, %s13
  %s16 = scalar_select 0, %s15, %s13
  loop: start=0, step=1, limit=6
  $region2: #{stisan_forward.5} parent=0 // loop_pre_header
    _
  $region3: #{stisan_forward.5} parent=0 // loop_header
    %s18 = sphi 0, %s22
    %p19 = scmp.ge.s32.totalorder %s18, 6
    %s25 = sphi 0, %s37
    %s26 = sphi 0, %s33
    %s27 = sphi 0, %s25
    %s28 = sphi 0, %s26
    %s29 = sphi 0, %s27
    %s30 = sphi 0, %s28
    %s40 = sphi 0, %s42
    %s43 = sphi 0, %s40
    %s44 = sphi 0, %s43
    %s60 = sphi 0, %s44
    %s66 = sphi 0, %s68
    %s69 = sphi 0, %s66
    %s70 = sphi 0, %s69
    %s86 = sphi 0, %s70
    %s92 = sphi 0, %s94
    %s95 = sphi 0, %s92
    %s96 = sphi 0, %s95
    %s112 = sphi 0, %s96
    %s118 = sphi 0, %s120
    %s121 = sphi 0, %s118
    %s122 = sphi 0, %s121
    %s138 = sphi 0, %s122
    %s144 = sphi 0, %s146
    %s147 = sphi 0, %s144
    %s148 = sphi 0, %s147
    %s164 = sphi 0, %s148
    %s170 = sphi 0, %s172
    %s173 = sphi 0, %s170
    %s174 = sphi 0, %s173
    %s190 = sphi 0, %s174
    %s196 = sphi 0, %s198
    %s199 = sphi 0, %s196
    %s200 = sphi 0, %s199
    %s216 = sphi 0, %s200
    %s222 = sphi 0, %s224
    %s225 = sphi 0, %s222
    %s226 = sphi 0, %s225
    %s242 = sphi 0, %s226
    %s248 = sphi 0, %s250
    %s251 = sphi 0, %s248
    %s252 = sphi 0, %s251
    %s268 = sphi 0, %s252
    %s274 = sphi 0, %s276
    %s277 = sphi 0, %s274
    %s278 = sphi 0, %s277
    %s294 = sphi 0, %s278
    %s300 = sphi 0, %s302
    %s303 = sphi 0, %s300
    %s304 = sphi 0, %s303
    %s320 = sphi 0, %s304
    %s326 = sphi 0, %s328
    %s329 = sphi 0, %s326
    %s330 = sphi 0, %s329
    %s346 = sphi 0, %s330
    %s352 = sphi 0, %s354
    %s355 = sphi 0, %s352
    %s356 = sphi 0, %s355
    %s372 = sphi 0, %s356
  $region4: #{stisan_forward.5} parent=0 // loop_header_branch
    %21 = sbr.rel (%p19) target = $region8
  $region5: #{stisan_forward.5} parent=0 // loop_body
    %s23 = ssub.s32 %s18, 1
    %s24 = ssub.s32 %s18, 2
    %s31 = sadd.s32 1, %s26
    %p32 = scmp.ge.s32.totalorder %s31, 2
    %s33 = scalar_select %p32, 0, %s31
    %s34 = sadd.s32 1, %s25
    %s35 = scalar_select %p32, %s34, %s25
    %p36 = scmp.ge.s32.totalorder %s35, 2
    %s37 = scalar_select %p36, 0, %s35
    %s38 = ssub.s32 %s25, %s37
    %p39 = scmp.eq.s32.totalorder %s38, 0
    %s41 = sadd.s32 %s40, 1
    %s42 = scalar_select %p39, %s40, %s41
    %p45 = pneg %p39
    %p46 = scmp.eq.s32.totalorder %s18, 3
    %p47 = por %p45, %p46
    %p48 = scmp.ne.s32.totalorder %s40, %s43
    %p49 = scmp.eq.s32.totalorder %s18, 0
    %p50 = por %p48, %p49
    %p51 = scmp.ne.s32.totalorder %s40, %s43
    %p52 = scmp.eq.s32.totalorder %s23, 3
    %p53 = por %p51, %p52
    %p54 = scmp.ne.s32.totalorder %s43, %s44
    %p55 = scmp.eq.s32.totalorder %s23, 0
    %p56 = por %p54, %p55
    %p57 = scmp.ne.s32.totalorder %s43, %s44
    %p58 = scmp.eq.s32.totalorder %s24, 3
    %p59 = por %p57, %p58
    %p61 = scmp.ne.s32.totalorder %s44, %s60
    %p62 = scmp.eq.s32.totalorder %s24, 0
    %p63 = por %p61, %p62
    %s64 = ssub.s32 %s25, %s37
    %p65 = scmp.eq.s32.totalorder %s64, 0
    %s67 = sadd.s32 %s66, 1
    %s68 = scalar_select %p65, %s66, %s67
    %p71 = pneg %p65
    %p72 = scmp.eq.s32.totalorder %s18, 3
    %p73 = por %p71, %p72
    %p74 = scmp.ne.s32.totalorder %s66, %s69
    %p75 = scmp.eq.s32.totalorder %s18, 0
    %p76 = por %p74, %p75
    %p77 = scmp.ne.s32.totalorder %s66, %s69
    %p78 = scmp.eq.s32.totalorder %s23, 3
    %p79 = por %p77, %p78
    %p80 = scmp.ne.s32.totalorder %s69, %s70
    %p81 = scmp.eq.s32.totalorder %s23, 0
    %p82 = por %p80, %p81
    %p83 = scmp.ne.s32.totalorder %s69, %s70
    %p84 = scmp.eq.s32.totalorder %s24, 3
    %p85 = por %p83, %p84
    %p87 = scmp.ne.s32.totalorder %s70, %s86
    %p88 = scmp.eq.s32.totalorder %s24, 0
    %p89 = por %p87, %p88
    %s90 = ssub.s32 %s26, %s33
    %p91 = scmp.eq.s32.totalorder %s90, 0
    %s93 = sadd.s32 %s92, 1
    %s94 = scalar_select %p91, %s92, %s93
    %p97 = pneg %p91
    %p98 = scmp.eq.s32.totalorder %s18, 3
    %p99 = por %p97, %p98
    %p100 = scmp.ne.s32.totalorder %s92, %s95
    %p101 = scmp.eq.s32.totalorder %s18, 0
    %p102 = por %p100, %p101
    %p103 = scmp.ne.s32.totalorder %s92, %s95
    %p104 = scmp.eq.s32.totalorder %s23, 3
    %p105 = por %p103, %p104
    %p106 = scmp.ne.s32.totalorder %s95, %s96
    %p107 = scmp.eq.s32.totalorder %s23, 0
    %p108 = por %p106, %p107
    %p109 = scmp.ne.s32.totalorder %s95, %s96
    %p110 = scmp.eq.s32.totalorder %s24, 3
    %p111 = por %p109, %p110
    %p113 = scmp.ne.s32.totalorder %s96, %s112
    %p114 = scmp.eq.s32.totalorder %s24, 0
    %p115 = por %p113, %p114
    %s116 = ssub.s32 %s26, %s33
    %p117 = scmp.eq.s32.totalorder %s116, 0
    %s119 = sadd.s32 %s118, 1
    %s120 = scalar_select %p117, %s118, %s119
    %p123 = pneg %p117
    %p124 = scmp.eq.s32.totalorder %s18, 3
    %p125 = por %p123, %p124
    %p126 = scmp.ne.s32.totalorder %s118, %s121
    %p127 = scmp.eq.s32.totalorder %s18, 0
    %p128 = por %p126, %p127
    %p129 = scmp.ne.s32.totalorder %s118, %s121
    %p130 = scmp.eq.s32.totalorder %s23, 3
    %p131 = por %p129, %p130
    %p132 = scmp.ne.s32.totalorder %s121, %s122
    %p133 = scmp.eq.s32.totalorder %s23, 0
    %p134 = por %p132, %p133
    %p135 = scmp.ne.s32.totalorder %s121, %s122
    %p136 = scmp.eq.s32.totalorder %s24, 3
    %p137 = por %p135, %p136
    %p139 = scmp.ne.s32.totalorder %s122, %s138
    %p140 = scmp.eq.s32.totalorder %s24, 0
    %p141 = por %p139, %p140
    %s142 = ssub.s32 %s26, %s33
    %p143 = scmp.eq.s32.totalorder %s142, 0
    %s145 = sadd.s32 %s144, 1
    %s146 = scalar_select %p143, %s144, %s145
    %p149 = pneg %p143
    %p150 = scmp.eq.s32.totalorder %s18, 3
    %p151 = por %p149, %p150
    %p152 = scmp.ne.s32.totalorder %s144, %s147
    %p153 = scmp.eq.s32.totalorder %s18, 0
    %p154 = por %p152, %p153
    %p155 = scmp.ne.s32.totalorder %s144, %s147
    %p156 = scmp.eq.s32.totalorder %s23, 3
    %p157 = por %p155, %p156
    %p158 = scmp.ne.s32.totalorder %s147, %s148
    %p159 = scmp.eq.s32.totalorder %s23, 0
    %p160 = por %p158, %p159
    %p161 = scmp.ne.s32.totalorder %s147, %s148
    %p162 = scmp.eq.s32.totalorder %s24, 3
    %p163 = por %p161, %p162
    %p165 = scmp.ne.s32.totalorder %s148, %s164
    %p166 = scmp.eq.s32.totalorder %s24, 0
    %p167 = por %p165, %p166
    %s168 = ssub.s32 %s26, %s33
    %p169 = scmp.eq.s32.totalorder %s168, 0
    %s171 = sadd.s32 %s170, 1
    %s172 = scalar_select %p169, %s170, %s171
    %p175 = pneg %p169
    %p176 = scmp.eq.s32.totalorder %s18, 3
    %p177 = por %p175, %p176
    %p178 = scmp.ne.s32.totalorder %s170, %s173
    %p179 = scmp.eq.s32.totalorder %s18, 0
    %p180 = por %p178, %p179
    %p181 = scmp.ne.s32.totalorder %s170, %s173
    %p182 = scmp.eq.s32.totalorder %s23, 3
    %p183 = por %p181, %p182
    %p184 = scmp.ne.s32.totalorder %s173, %s174
    %p185 = scmp.eq.s32.totalorder %s23, 0
    %p186 = por %p184, %p185
    %p187 = scmp.ne.s32.totalorder %s173, %s174
    %p188 = scmp.eq.s32.totalorder %s24, 3
    %p189 = por %p187, %p188
    %p191 = scmp.ne.s32.totalorder %s174, %s190
    %p192 = scmp.eq.s32.totalorder %s24, 0
    %p193 = por %p191, %p192
    %s194 = ssub.s32 %s26, %s33
    %p195 = scmp.eq.s32.totalorder %s194, 0
    %s197 = sadd.s32 %s196, 1
    %s198 = scalar_select %p195, %s196, %s197
    %p201 = pneg %p195
    %p202 = scmp.eq.s32.totalorder %s18, 3
    %p203 = por %p201, %p202
    %p204 = scmp.ne.s32.totalorder %s196, %s199
    %p205 = scmp.eq.s32.totalorder %s18, 0
    %p206 = por %p204, %p205
    %p207 = scmp.ne.s32.totalorder %s196, %s199
    %p208 = scmp.eq.s32.totalorder %s23, 3
    %p209 = por %p207, %p208
    %p210 = scmp.ne.s32.totalorder %s199, %s200
    %p211 = scmp.eq.s32.totalorder %s23, 0
    %p212 = por %p210, %p211
    %p213 = scmp.ne.s32.totalorder %s199, %s200
    %p214 = scmp.eq.s32.totalorder %s24, 3
    %p215 = por %p213, %p214
    %p217 = scmp.ne.s32.totalorder %s200, %s216
    %p218 = scmp.eq.s32.totalorder %s24, 0
    %p219 = por %p217, %p218
    %s220 = ssub.s32 %s26, %s33
    %p221 = scmp.eq.s32.totalorder %s220, 0
    %s223 = sadd.s32 %s222, 1
    %s224 = scalar_select %p221, %s222, %s223
    %p227 = pneg %p221
    %p228 = scmp.eq.s32.totalorder %s18, 3
    %p229 = por %p227, %p228
    %p230 = scmp.ne.s32.totalorder %s222, %s225
    %p231 = scmp.eq.s32.totalorder %s18, 0
    %p232 = por %p230, %p231
    %p233 = scmp.ne.s32.totalorder %s222, %s225
    %p234 = scmp.eq.s32.totalorder %s23, 3
    %p235 = por %p233, %p234
    %p236 = scmp.ne.s32.totalorder %s225, %s226
    %p237 = scmp.eq.s32.totalorder %s23, 0
    %p238 = por %p236, %p237
    %p239 = scmp.ne.s32.totalorder %s225, %s226
    %p240 = scmp.eq.s32.totalorder %s24, 3
    %p241 = por %p239, %p240
    %p243 = scmp.ne.s32.totalorder %s226, %s242
    %p244 = scmp.eq.s32.totalorder %s24, 0
    %p245 = por %p243, %p244
    %s246 = ssub.s32 %s26, %s33
    %p247 = scmp.eq.s32.totalorder %s246, 0
    %s249 = sadd.s32 %s248, 1
    %s250 = scalar_select %p247, %s248, %s249
    %p253 = pneg %p247
    %p254 = scmp.eq.s32.totalorder %s18, 3
    %p255 = por %p253, %p254
    %p256 = scmp.ne.s32.totalorder %s248, %s251
    %p257 = scmp.eq.s32.totalorder %s18, 0
    %p258 = por %p256, %p257
    %p259 = scmp.ne.s32.totalorder %s248, %s251
    %p260 = scmp.eq.s32.totalorder %s23, 3
    %p261 = por %p259, %p260
    %p262 = scmp.ne.s32.totalorder %s251, %s252
    %p263 = scmp.eq.s32.totalorder %s23, 0
    %p264 = por %p262, %p263
    %p265 = scmp.ne.s32.totalorder %s251, %s252
    %p266 = scmp.eq.s32.totalorder %s24, 3
    %p267 = por %p265, %p266
    %p269 = scmp.ne.s32.totalorder %s252, %s268
    %p270 = scmp.eq.s32.totalorder %s24, 0
    %p271 = por %p269, %p270
    %s272 = ssub.s32 %s26, %s33
    %p273 = scmp.eq.s32.totalorder %s272, 0
    %s275 = sadd.s32 %s274, 1
    %s276 = scalar_select %p273, %s274, %s275
    %p279 = pneg %p273
    %p280 = scmp.eq.s32.totalorder %s18, 3
    %p281 = por %p279, %p280
    %p282 = scmp.ne.s32.totalorder %s274, %s277
    %p283 = scmp.eq.s32.totalorder %s18, 0
    %p284 = por %p282, %p283
    %p285 = scmp.ne.s32.totalorder %s274, %s277
    %p286 = scmp.eq.s32.totalorder %s23, 3
    %p287 = por %p285, %p286
    %p288 = scmp.ne.s32.totalorder %s277, %s278
    %p289 = scmp.eq.s32.totalorder %s23, 0
    %p290 = por %p288, %p289
    %p291 = scmp.ne.s32.totalorder %s277, %s278
    %p292 = scmp.eq.s32.totalorder %s24, 3
    %p293 = por %p291, %p292
    %p295 = scmp.ne.s32.totalorder %s278, %s294
    %p296 = scmp.eq.s32.totalorder %s24, 0
    %p297 = por %p295, %p296
    %s298 = ssub.s32 %s26, %s33
    %p299 = scmp.eq.s32.totalorder %s298, 0
    %s301 = sadd.s32 %s300, 1
    %s302 = scalar_select %p299, %s300, %s301
    %p305 = pneg %p299
    %p306 = scmp.eq.s32.totalorder %s18, 3
    %p307 = por %p305, %p306
    %p308 = scmp.ne.s32.totalorder %s300, %s303
    %p309 = scmp.eq.s32.totalorder %s18, 0
    %p310 = por %p308, %p309
    %p311 = scmp.ne.s32.totalorder %s300, %s303
    %p312 = scmp.eq.s32.totalorder %s23, 3
    %p313 = por %p311, %p312
    %p314 = scmp.ne.s32.totalorder %s303, %s304
    %p315 = scmp.eq.s32.totalorder %s23, 0
    %p316 = por %p314, %p315
    %p317 = scmp.ne.s32.totalorder %s303, %s304
    %p318 = scmp.eq.s32.totalorder %s24, 3
    %p319 = por %p317, %p318
    %p321 = scmp.ne.s32.totalorder %s304, %s320
    %p322 = scmp.eq.s32.totalorder %s24, 0
    %p323 = por %p321, %p322
    %s324 = ssub.s32 %s26, %s33
    %p325 = scmp.eq.s32.totalorder %s324, 0
    %s327 = sadd.s32 %s326, 1
    %s328 = scalar_select %p325, %s326, %s327
    %p331 = pneg %p325
    %p332 = scmp.eq.s32.totalorder %s18, 3
    %p333 = por %p331, %p332
    %p334 = scmp.ne.s32.totalorder %s326, %s329
    %p335 = scmp.eq.s32.totalorder %s18, 0
    %p336 = por %p334, %p335
    %p337 = scmp.ne.s32.totalorder %s326, %s329
    %p338 = scmp.eq.s32.totalorder %s23, 3
    %p339 = por %p337, %p338
    %p340 = scmp.ne.s32.totalorder %s329, %s330
    %p341 = scmp.eq.s32.totalorder %s23, 0
    %p342 = por %p340, %p341
    %p343 = scmp.ne.s32.totalorder %s329, %s330
    %p344 = scmp.eq.s32.totalorder %s24, 3
    %p345 = por %p343, %p344
    %p347 = scmp.ne.s32.totalorder %s330, %s346
    %p348 = scmp.eq.s32.totalorder %s24, 0
    %p349 = por %p347, %p348
    %s350 = ssub.s32 %s25, %s37
    %p351 = scmp.eq.s32.totalorder %s350, 0
    %s353 = sadd.s32 %s352, 1
    %s354 = scalar_select %p351, %s352, %s353
    %p357 = pneg %p351
    %p358 = scmp.eq.s32.totalorder %s18, 3
    %p359 = por %p357, %p358
    %p360 = scmp.ne.s32.totalorder %s352, %s355
    %p361 = scmp.eq.s32.totalorder %s18, 0
    %p362 = por %p360, %p361
    %p363 = scmp.ne.s32.totalorder %s352, %s355
    %p364 = scmp.eq.s32.totalorder %s23, 3
    %p365 = por %p363, %p364
    %p366 = scmp.ne.s32.totalorder %s355, %s356
    %p367 = scmp.eq.s32.totalorder %s23, 0
    %p368 = por %p366, %p367
    %p369 = scmp.ne.s32.totalorder %s355, %s356
    %p370 = scmp.eq.s32.totalorder %s24, 3
    %p371 = por %p369, %p370
    %p373 = scmp.ne.s32.totalorder %s356, %s372
    %p374 = scmp.eq.s32.totalorder %s24, 0
    %p375 = por %p373, %p374
    %p376 = scmp.le.s32.totalorder 1, %s18
    %p377 = scmp.lt.s32.totalorder %s18, 5
    %p378 = pnand %p376, %p377
    %p379 = pneg %p378
    // Predicated region
    $region9: #{stisan_forward.5} parent=5 // pred_check
      _
    $region10: #{stisan_forward.5} parent=5 // pred_check_branch
      %381 = sbr.rel (%p378) target = $region12
    $region11: #{stisan_forward.5} parent=5 // pred_region
      %s382 = ssub.s32 %s18, 1
    $region12: #{stisan_forward.5} parent=5 // pred_fallthru
      _
    %p383 = scmp.lt.s32.totalorder %s18, 4
    // Predicated region
    $region13: #{stisan_forward.5} parent=5 // pred_check
      %p384 = pneg %p383
    $region14: #{stisan_forward.5} parent=5 // pred_check_branch
      %386 = sbr.rel (%p384) target = $region16
    $region15: #{stisan_forward.5} parent=5 // pred_region
      // Predicated region
      $region17: #{stisan_forward.5} parent=15 // pred_check
        %p387 = pneg %p50
      $region18: #{stisan_forward.5} parent=15 // pred_check_branch
        %389 = sbr.rel (%p387) target = $region20
      $region19: #{stisan_forward.5} parent=15 // pred_region
        %p390 = scmp.lt.s32.totalorder %s25, 1
        %s391 = scalar_select %p390, %s25, 1
        %s392 = smul.addr %s391, 8
        %s393 = scalar_lea.vmem %s0, %s392
      $region20: #{stisan_forward.5} parent=15 // pred_fallthru
        _
      // Predicated region
      $region21: #{stisan_forward.5} parent=15 // pred_check
        %p394 = pneg %p76
      $region22: #{stisan_forward.5} parent=15 // pred_check_branch
        %396 = sbr.rel (%p394) target = $region24
      $region23: #{stisan_forward.5} parent=15 // pred_region
        %p397 = scmp.lt.s32.totalorder %s25, 1
        %s398 = scalar_select %p397, %s25, 1
        %s399 = smul.addr %s398, 8
        %s400 = scalar_lea.vmem %s1, %s399
      $region24: #{stisan_forward.5} parent=15 // pred_fallthru
        _
      // Predicated region
      $region25: #{stisan_forward.5} parent=15 // pred_check
        %p401 = pneg %p102
      $region26: #{stisan_forward.5} parent=15 // pred_check_branch
        %403 = sbr.rel (%p401) target = $region28
      $region27: #{stisan_forward.5} parent=15 // pred_region
        %p404 = scmp.lt.s32.totalorder %s26, 1
        %s405 = scalar_select %p404, %s26, 1
        %s406 = smul.addr %s405, 16
        %s407 = smul.addr %s406, 4
        %s408 = scalar_lea.vmem %s2, %s407
      $region28: #{stisan_forward.5} parent=15 // pred_fallthru
        _
      // Predicated region
      $region29: #{stisan_forward.5} parent=15 // pred_check
        %p409 = pneg %p128
      $region30: #{stisan_forward.5} parent=15 // pred_check_branch
        %411 = sbr.rel (%p409) target = $region32
      $region31: #{stisan_forward.5} parent=15 // pred_region
        %p412 = scmp.lt.s32.totalorder %s26, 1
        %s413 = scalar_select %p412, %s26, 1
        %s414 = smul.addr %s413, 2
        %s415 = scalar_lea.vmem %s3, %s414
      $region32: #{stisan_forward.5} parent=15 // pred_fallthru
        _
      // Predicated region
      $region33: #{stisan_forward.5} parent=15 // pred_check
        %p416 = pneg %p154
      $region34: #{stisan_forward.5} parent=15 // pred_check_branch
        %418 = sbr.rel (%p416) target = $region36
      $region35: #{stisan_forward.5} parent=15 // pred_region
        %p419 = scmp.lt.s32.totalorder %s26, 1
        %s420 = scalar_select %p419, %s26, 1
        %s421 = smul.addr %s420, 16
        %s422 = smul.addr %s421, 4
        %s423 = scalar_lea.vmem %s4, %s422
      $region36: #{stisan_forward.5} parent=15 // pred_fallthru
        _
      // Predicated region
      $region37: #{stisan_forward.5} parent=15 // pred_check
        %p424 = pneg %p180
      $region38: #{stisan_forward.5} parent=15 // pred_check_branch
        %426 = sbr.rel (%p424) target = $region40
      $region39: #{stisan_forward.5} parent=15 // pred_region
        %p427 = scmp.lt.s32.totalorder %s26, 1
        %s428 = scalar_select %p427, %s26, 1
        %s429 = smul.addr %s428, 2
        %s430 = scalar_lea.vmem %s5, %s429
      $region40: #{stisan_forward.5} parent=15 // pred_fallthru
        _
      // Predicated region
      $region41: #{stisan_forward.5} parent=15 // pred_check
        %p431 = pneg %p206
      $region42: #{stisan_forward.5} parent=15 // pred_check_branch
        %433 = sbr.rel (%p431) target = $region44
      $region43: #{stisan_forward.5} parent=15 // pred_region
        %p434 = scmp.lt.s32.totalorder %s26, 1
        %s435 = scalar_select %p434, %s26, 1
        %s436 = smul.addr %s435, 32
        %s437 = smul.addr %s436, 4
        %s438 = scalar_lea.vmem %s6, %s437
      $region44: #{stisan_forward.5} parent=15 // pred_fallthru
        _
      // Predicated region
      $region45: #{stisan_forward.5} parent=15 // pred_check
        %p439 = pneg %p232
      $region46: #{stisan_forward.5} parent=15 // pred_check_branch
        %441 = sbr.rel (%p439) target = $region48
      $region47: #{stisan_forward.5} parent=15 // pred_region
        %p442 = scmp.lt.s32.totalorder %s26, 1
        %s443 = scalar_select %p442, %s26, 1
        %s444 = scalar_lea.vmem %s7, %s443
      $region48: #{stisan_forward.5} parent=15 // pred_fallthru
        _
      // Predicated region
      $region49: #{stisan_forward.5} parent=15 // pred_check
        %p445 = pneg %p258
      $region50: #{stisan_forward.5} parent=15 // pred_check_branch
        %447 = sbr.rel (%p445) target = $region52
      $region51: #{stisan_forward.5} parent=15 // pred_region
        %p448 = scmp.lt.s32.totalorder %s26, 1
        %s449 = scalar_select %p448, %s26, 1
        %s450 = scalar_lea.vmem %s8, %s449
      $region52: #{stisan_forward.5} parent=15 // pred_fallthru
        _
      // Predicated region
      $region53: #{stisan_forward.5} parent=15 // pred_check
        %p451 = pneg %p284
      $region54: #{stisan_forward.5} parent=15 // pred_check_branch
        %453 = sbr.rel (%p451) target = $region56
      $region55: #{stisan_forward.5} parent=15 // pred_region
        %p454 = scmp.lt.s32.totalorder %s26, 1
        %s455 = scalar_select %p454, %s26, 1
        %s456 = scalar_lea.vmem %s9, %s455
      $region56: #{stisan_forward.5} parent=15 // pred_fallthru
        _
      // Predicated region
      $region57: #{stisan_forward.5} parent=15 // pred_check
        %p457 = pneg %p310
      $region58: #{stisan_forward.5} parent=15 // pred_check_branch
        %459 = sbr.rel (%p457) target = $region60
      $region59: #{stisan_forward.5} parent=15 // pred_region
        %p460 = scmp.lt.s32.totalorder %s26, 1
        %s461 = scalar_select %p460, %s26, 1
        %s462 = scalar_lea.vmem %s10, %s461
      $region60: #{stisan_forward.5} parent=15 // pred_fallthru
        _
      // Predicated region
      $region61: #{stisan_forward.5} parent=15 // pred_check
        %p463 = pneg %p336
      $region62: #{stisan_forward.5} parent=15 // pred_check_branch
        %465 = sbr.rel (%p463) target = $region64
      $region63: #{stisan_forward.5} parent=15 // pred_region
        %p466 = scmp.lt.s32.totalorder %s26, 1
        %s467 = scalar_select %p466, %s26, 1
        %s468 = scalar_lea.vmem %s11, %s467
      $region64: #{stisan_forward.5} parent=15 // pred_fallthru
        _
    $region16: #{stisan_forward.5} parent=5 // pred_fallthru
      _
    %p469 = scmp.le.s32.totalorder 1, %s18
    %p470 = scmp.lt.s32.totalorder %s18, 5
    %p471 = pnand %p469, %p470
    %p472 = pneg %p471
    // Predicated region
    $region65: #{stisan_forward.5} parent=5 // pred_check
      _
    $region66: #{stisan_forward.5} parent=5 // pred_check_branch
      %474 = sbr.rel (%p471) target = $region68
    $region67: #{stisan_forward.5} parent=5 // pred_region
      %s475 = ssub.s32 %s18, 1
      %p476 = scmp.lt.s32.totalorder %s27, 1
      %s477 = scalar_select %p476, %s27, 1
      %s478 = smul.addr %s477, 8
      %s479 = scalar_lea.vmem %s0, %s478
      %p480 = pneg %p56
      %p481 = pneg %p53
      %p482 = scmp.lt.s32.totalorder %s27, 1
      %s483 = scalar_select %p482, %s27, 1
      %s484 = smul.addr %s483, 8
      %s485 = scalar_lea.vmem %s1, %s484
      %p486 = pneg %p82
      %p487 = pneg %p79
      %p488 = scmp.lt.s32.totalorder %s28, 1
      %s489 = scalar_select %p488, %s28, 1
      %s490 = smul.addr %s489, 16
      %s491 = smul.addr %s490, 4
      %s492 = scalar_lea.vmem %s2, %s491
      %p493 = pneg %p108
      %p494 = pneg %p105
      %p495 = scmp.lt.s32.totalorder %s28, 1
      %s496 = scalar_select %p495, %s28, 1
      %s497 = smul.addr %s496, 2
      %s498 = scalar_lea.vmem %s3, %s497
      %p499 = pneg %p134
      %p500 = pneg %p131
      %p501 = scmp.lt.s32.totalorder %s28, 1
      %s502 = scalar_select %p501, %s28, 1
      %s503 = smul.addr %s502, 16
      %s504 = smul.addr %s503, 4
      %s505 = scalar_lea.vmem %s4, %s504
      %p506 = pneg %p160
      %p507 = pneg %p157
      %p508 = scmp.lt.s32.totalorder %s28, 1
      %s509 = scalar_select %p508, %s28, 1
      %s510 = smul.addr %s509, 2
      %s511 = scalar_lea.vmem %s5, %s510
      %p512 = pneg %p186
      %p513 = pneg %p183
      %p514 = scmp.lt.s32.totalorder %s28, 1
      %s515 = scalar_select %p514, %s28, 1
      %s516 = smul.addr %s515, 32
      %s517 = smul.addr %s516, 4
      %s518 = scalar_lea.vmem %s6, %s517
      %p519 = pneg %p212
      %p520 = pneg %p209
      %p521 = scmp.lt.s32.totalorder %s28, 1
      %s522 = scalar_select %p521, %s28, 1
      %s523 = scalar_lea.vmem %s7, %s522
      %p524 = pneg %p238
      %p525 = pneg %p235
      %p526 = scmp.lt.s32.totalorder %s28, 1
      %s527 = scalar_select %p526, %s28, 1
      %s528 = scalar_lea.vmem %s8, %s527
      %p529 = pneg %p264
      %p530 = pneg %p261
      %p531 = scmp.lt.s32.totalorder %s28, 1
      %s532 = scalar_select %p531, %s28, 1
      %s533 = scalar_lea.vmem %s9, %s532
      %p534 = pneg %p290
      %p535 = pneg %p287
      %p536 = scmp.lt.s32.totalorder %s28, 1
      %s537 = scalar_select %p536, %s28, 1
      %s538 = scalar_lea.vmem %s10, %s537
      %p539 = pneg %p316
      %p540 = pneg %p313
      %p541 = scmp.lt.s32.totalorder %s28, 1
      %s542 = scalar_select %p541, %s28, 1
      %s543 = scalar_lea.vmem %s11, %s542
      %p544 = pneg %p342
      %p545 = pneg %p339
      %p546 = pneg %p368
      %p547 = pneg %p365
      %p548 = scmp.lt.s32.totalorder %s27, 1
      %s549 = scalar_select %p548, %s27, 1
      %s550 = smul.addr %s549, 8
      %s551 = scalar_lea.vmem %s12, %s550
      %p552 = scmp.lt.s32.totalorder %s27, 1
      %s553 = scalar_select %p552, %s27, 1
      %s554 = smul.addr %s553, 8
      %s555 = scalar_lea.vmem %s0, %s554
      %p556 = scmp.lt.s32.totalorder %s27, 1
      %s557 = scalar_select %p556, %s27, 1
      %s558 = smul.addr %s557, 8
      %s559 = scalar_lea.vmem %s1, %s558
      %p560 = scmp.lt.s32.totalorder %s28, 1
      %s561 = scalar_select %p560, %s28, 1
      %s562 = smul.addr %s561, 16
      %s563 = smul.addr %s562, 4
      %s564 = scalar_lea.vmem %s2, %s563
      %p565 = scmp.lt.s32.totalorder %s28, 1
      %s566 = scalar_select %p565, %s28, 1
      %s567 = smul.addr %s566, 2
      %s568 = scalar_lea.vmem %s3, %s567
      %p569 = scmp.lt.s32.totalorder %s28, 1
      %s570 = scalar_select %p569, %s28, 1
      %s571 = smul.addr %s570, 16
      %s572 = smul.addr %s571, 4
      %s573 = scalar_lea.vmem %s4, %s572
      %p574 = scmp.lt.s32.totalorder %s28, 1
      %s575 = scalar_select %p574, %s28, 1
      %s576 = smul.addr %s575, 2
      %s577 = scalar_lea.vmem %s5, %s576
      %p578 = scmp.lt.s32.totalorder %s28, 1
      %s579 = scalar_select %p578, %s28, 1
      %s580 = smul.addr %s579, 32
      %s581 = smul.addr %s580, 4
      %s582 = scalar_lea.vmem %s6, %s581
      %p583 = scmp.lt.s32.totalorder %s28, 1
      %s584 = scalar_select %p583, %s28, 1
      %s585 = scalar_lea.vmem %s7, %s584
      %p586 = scmp.lt.s32.totalorder %s28, 1
      %s587 = scalar_select %p586, %s28, 1
      %s588 = scalar_lea.vmem %s8, %s587
      %p589 = scmp.lt.s32.totalorder %s28, 1
      %s590 = scalar_select %p589, %s28, 1
      %s591 = scalar_lea.vmem %s9, %s590
      %p592 = scmp.lt.s32.totalorder %s28, 1
      %s593 = scalar_select %p592, %s28, 1
      %s594 = scalar_lea.vmem %s10, %s593
      %p595 = scmp.lt.s32.totalorder %s28, 1
      %s596 = scalar_select %p595, %s28, 1
      %s597 = scalar_lea.vmem %s11, %s596
      %p598 = scmp.lt.s32.totalorder %s27, 1
      %s599 = scalar_select %p598, %s27, 1
      %s600 = smul.addr %s599, 8
      %s601 = scalar_lea.vmem %s12, %s600
      %p603 = scmp.eq.s32.totalorder %s28, 0
      // Predicated region
      $region69: #{stisan_forward.5} parent=67 // pred_check
        %p604 = pneg %p603
      $region70: #{stisan_forward.5} parent=67 // pred_check_branch
        %606 = sbr.rel (%p604) target = $region72
      $region71: #{stisan_forward.5} parent=67 // pred_region
        %v607 = vld [vmem:[%s555] sm:$0xff]
        %vm608 = vcmask 523264
        %609 = vst.msk [vmem:[#allocation2] sm:$0xff] %vm608, %v607
      $region72: #{stisan_forward.5} parent=67 // pred_fallthru
        _
      %v610 = vld [vmem:[#allocation2] sm:$0xff]
      %v611 = vpack.c.bf16 %v610, %v610
      %v612 = vld [vmem:[%s564] sm:$0xff]
      %v613 = vld [vmem:[%s564 + $0x8] sm:$0xff]
      %v614 = vld [vmem:[%s564 + $0x10] sm:$0xff]
      %v615 = vld [vmem:[%s564 + $0x18] sm:$0xff]
      %v616 = vld [vmem:[%s564 + $0x20] sm:$0xff]
      %v617 = vld [vmem:[%s564 + $0x28] sm:$0xff]
      %v618 = vld [vmem:[%s564 + $0x30] sm:$0xff]
      %v619 = vld [vmem:[%s564 + $0x38] sm:$0xff]
      %v620 = vld [vmem:[%s568] sm:$0x3]
      %v622 = vlaneseq
      %v623 = vshrl.u32 %v622, 7
      %v624 = vsub.s32 0, %v623
      %v625 = vrot.slane %v620, %v624
      %v626 = vlaneseq
      %v627 = vshrl.u32 %v626, 7
      %v628 = vsub.s32 1, %v627
      %v629 = vrot.slane %v620, %v628
      %v640 = vunpack.c.l.b16 %v612
      %v641 = vunpack.c.h.b16 %v612
      %v642 = vunpack.c.l.b16 %v613
      %v643 = vunpack.c.h.b16 %v613
      %v644 = vunpack.c.l.b16 %v614
      %v645 = vunpack.c.h.b16 %v614
      %v646 = vunpack.c.l.b16 %v615
      %v647 = vunpack.c.h.b16 %v615
      %v648 = vunpack.c.l.b16 %v616
      %v649 = vunpack.c.h.b16 %v616
      %v650 = vunpack.c.l.b16 %v617
      %v651 = vunpack.c.h.b16 %v617
      %v652 = vunpack.c.l.b16 %v618
      %v653 = vunpack.c.h.b16 %v618
      %v654 = vunpack.c.l.b16 %v619
      %v655 = vunpack.c.h.b16 %v619
      %v656 = vpack.c.b16 %v642, %v640
      %v657 = vpack.c.b16 %v643, %v641
      %v658 = vpack.c.b16 %v646, %v644
      %v659 = vpack.c.b16 %v647, %v645
      %v660 = vpack.c.b16 %v650, %v648
      %v661 = vpack.c.b16 %v651, %v649
      %v662 = vpack.c.b16 %v654, %v652
      %v663 = vpack.c.b16 %v655, %v653
      %vm672 = vcmask 523264
      %v674 = vsel %vm672, %v611, 0
      %676 = vmatprep.subr.bf16.mxu0 0
      %677 = vmatpush1.bf16.msra.mxu0 0
      %678 = vmatprep.subr.bf16.mxu0 0
      %679 = vmatpush1.bf16.msra.mxu0 0
      %680 = vmatprep.subr.bf16.mxu0 0
      %681 = vmatpush1.bf16.msra.mxu0 0
      %682 = vmatprep.subr.bf16.mxu0 0
      %683 = vmatpush1.bf16.msra.mxu0 0
      %684 = vmatprep.subr.bf16.mxu0 %v663
      %685 = vmatpush1.bf16.msra.mxu0 %v662
      %686 = vmatprep.subr.bf16.mxu0 %v661
      %687 = vmatpush1.bf16.msra.mxu0 %v660
      %688 = vmatprep.subr.bf16.mxu0 %v659
      %689 = vmatpush1.bf16.msra.mxu0 %v658
      %690 = vmatprep.subr.bf16.mxu0 %v657
      %691 = vmatpush1.bf16.msra.mxu0 %v656
      %692 = vmatprep.subr.bf16.mxu0 0
      %693 = vmatpush2.bf16.msra.mxu0 0
      %694 = vmatprep.subr.bf16.mxu0 0
      %695 = vmatpush2.bf16.msra.mxu0 0
      %696 = vmatprep.subr.bf16.mxu0 0
      %697 = vmatpush2.bf16.msra.mxu0 0
      %698 = vmatprep.subr.bf16.mxu0 0
      %699 = vmatpush2.bf16.msra.mxu0 0
      %700 = vmatprep.subr.bf16.mxu0 0
      %701 = vmatpush2.bf16.msra.mxu0 0
      %702 = vmatprep.subr.bf16.mxu0 0
      %703 = vmatpush2.bf16.msra.mxu0 0
      %704 = vmatprep.subr.bf16.mxu0 0
      %705 = vmatpush2.bf16.msra.mxu0 0
      %706 = vmatprep.subr.bf16.mxu0 0
      %707 = vmatpush2.bf16.msra.mxu0 0
      %708 = vmatprep.mubr.bf16.mxu0 0
      %709 = vmatmul.mubr.bf16.gmra.mxu0 %v674
      %v710 = vpop.f32.mrf.mxu0
      %v711 = vadd.f32 %v625, %v710
      %v712 = vpop.f32.mrf.mxu0
      %v713 = vadd.f32 %v629, %v712
      %v714 = vpop.f32.mrf.mxu0
      %v715 = vpop.f32.mrf.mxu0
      %716 = vdwg.mxu0
      %v717 = vpack.c.bf16 %v711, %v711
      %719 = vrot.lane.b32.xlu0 %v717, 64
      %v720 = vpop.permute.xlu0 %719
      %v722 = vsel %vm672, %v717, 0
      %v725 = vsel %vm672, %v720, 0
      %727 = vmatprep.subr.bf16.mxu0 0
      %728 = vmatpush1.bf16.xpose.msra.mxu0 0
      %729 = vmatprep.subr.bf16.mxu0 0
      %730 = vmatpush1.bf16.xpose.msra.mxu0 0
      %731 = vmatprep.subr.bf16.mxu0 0
      %732 = vmatpush1.bf16.xpose.msra.mxu0 0
      %733 = vmatprep.subr.bf16.mxu0 0
      %734 = vmatpush1.bf16.xpose.msra.mxu0 0
      %735 = vmatprep.subr.bf16.mxu0 0
      %736 = vmatpush1.bf16.xpose.msra.mxu0 0
      %737 = vmatprep.subr.bf16.mxu0 0
      %738 = vmatpush1.bf16.xpose.msra.mxu0 0
      %739 = vmatprep.subr.bf16.mxu0 0
      %740 = vmatpush1.bf16.xpose.msra.mxu0 0
      %741 = vmatprep.subr.bf16.mxu0 0
      %742 = vmatpush1.bf16.xpose.msra.mxu0 %v725
      %743 = vmatprep.subr.bf16.mxu0 0
      %744 = vmatpush2.bf16.xpose.msra.mxu0 0
      %745 = vmatprep.subr.bf16.mxu0 0
      %746 = vmatpush2.bf16.xpose.msra.mxu0 0
      %747 = vmatprep.subr.bf16.mxu0 0
      %748 = vmatpush2.bf16.xpose.msra.mxu0 0
      %749 = vmatprep.subr.bf16.mxu0 0
      %750 = vmatpush2.bf16.xpose.msra.mxu0 0
      %751 = vmatprep.subr.bf16.mxu0 0
      %752 = vmatpush2.bf16.xpose.msra.mxu0 0
      %753 = vmatprep.subr.bf16.mxu0 0
      %754 = vmatpush2.bf16.xpose.msra.mxu0 0
      %755 = vmatprep.subr.bf16.mxu0 0
      %756 = vmatpush2.bf16.xpose.msra.mxu0 0
      %757 = vmatprep.subr.bf16.mxu0 0
      %758 = vmatpush2.bf16.xpose.msra.mxu0 0
      %759 = vmatprep.mubr.bf16.mxu0 0
      %760 = vmatmul.mubr.bf16.gmra.mxu0 %v722
      %v761 = vpop.f32.mrf.mxu0
      %v762 = vadd.f32 0.0, %v761
      %v763 = vpop.f32.mrf.mxu0
      %v764 = vpop.f32.mrf.mxu0
      %v765 = vpop.f32.mrf.mxu0
      %766 = vdwg.mxu0
      %v767 = vmul.f32 %v762, 0.125
      %v768 = vld [vmem:[%s559] sm:$0xff]
      %v769 = vadd.f32 %v767, %v768
      %vm770 = vcmask 64512
      %v771 = vsel %vm770, %v769, -inf
      %772 = vmax.xlane.f32.xlu0 %v771
      %v773 = vpop.xlane.xlu0 %772
      %v774 = vsub.f32 %v769, %v773
      %v775 = vpack.c.bf16 %v774, %v774
      %v777 = vmul.bf16 %v775, 1069105081
      %v778 = vpow.bf16.pop %v777
      %v779 = vunpack.c.l.bf16 %v778
      %v780 = vsel %vm770, %v779, 0.0
      %781 = vadd.xlane.f32.xlu0 %v780
      %v782 = vpop.xlane.xlu0 %781
      %v783 = vrcp.pop %v782
      %v784 = vpack.c.bf16 %v713, %v713
      %v786 = vsel %vm770, %v778, 0
      %vm788 = vcmask 1043456
      %v790 = vsel %vm788, %v784, 0
      %792 = vmatprep.subr.bf16.mxu0 0
      %793 = vmatpush1.bf16.msra.mxu0 0
      %794 = vmatprep.subr.bf16.mxu0 0
      %795 = vmatpush1.bf16.msra.mxu0 0
      %796 = vmatprep.subr.bf16.mxu0 0
      %797 = vmatpush1.bf16.msra.mxu0 0
      %798 = vmatprep.subr.bf16.mxu0 0
      %799 = vmatpush1.bf16.msra.mxu0 0
      %800 = vmatprep.subr.bf16.mxu0 0
      %801 = vmatpush1.bf16.msra.mxu0 0
      %802 = vmatprep.subr.bf16.mxu0 0
      %803 = vmatpush1.bf16.msra.mxu0 0
      %804 = vmatprep.subr.bf16.mxu0 0
      %805 = vmatpush1.bf16.msra.mxu0 0
      %806 = vmatprep.subr.bf16.mxu0 0
      %807 = vmatpush1.bf16.msra.mxu0 %v790
      %808 = vmatprep.subr.bf16.mxu0 0
      %809 = vmatpush2.bf16.msra.mxu0 0
      %810 = vmatprep.subr.bf16.mxu0 0
      %811 = vmatpush2.bf16.msra.mxu0 0
      %812 = vmatprep.subr.bf16.mxu0 0
      %813 = vmatpush2.bf16.msra.mxu0 0
      %814 = vmatprep.subr.bf16.mxu0 0
      %815 = vmatpush2.bf16.msra.mxu0 0
      %816 = vmatprep.subr.bf16.mxu0 0
      %817 = vmatpush2.bf16.msra.mxu0 0
      %818 = vmatprep.subr.bf16.mxu0 0
      %819 = vmatpush2.bf16.msra.mxu0 0
      %820 = vmatprep.subr.bf16.mxu0 0
      %821 = vmatpush2.bf16.msra.mxu0 0
      %822 = vmatprep.subr.bf16.mxu0 0
      %823 = vmatpush2.bf16.msra.mxu0 0
      %824 = vmatprep.mubr.bf16.mxu0 0
      %825 = vmatmul.mubr.bf16.gmra.mxu0 %v786
      %v826 = vpop.f32.mrf.mxu0
      %v827 = vadd.f32 0.0, %v826
      %v828 = vpop.f32.mrf.mxu0
      %v829 = vpop.f32.mrf.mxu0
      %v830 = vpop.f32.mrf.mxu0
      %831 = vdwg.mxu0
      %v832 = vmul.f32 %v827, %v783
      %v833 = vadd.f32 %v610, %v832
      %v834 = vld [vmem:[%s588] sm:$0x1]
      %v835 = vld [vmem:[%s591] sm:$0x1]
      %v836 = vsel %vm672, %v833, 0.0
      %837 = vadd.xlane.f32.xlu0 %v836
      %v838 = vpop.xlane.xlu0 %837
      %v839 = vrcp.pop 64.0
      %v840 = vmul.f32 %v838, %v839
      %v841 = vsub.f32 %v833, %v840
      %v842 = vmul.f32 %v841, %v841
      %v843 = vsel %vm672, %v842, 0.0
      %844 = vadd.xlane.f32.xlu0 %v843
      %v845 = vpop.xlane.xlu0 %844
      %v846 = vmul.f32 %v845, %v839
      %v847 = vadd.f32 %v846, 1e-05
      %v848 = vrsqrt.pop %v847
      %v849 = vmul.f32 %v841, %v848
      %v851 = vlaneseq
      %v852 = vshrl.u32 %v851, 7
      %v853 = vsub.s32 0, %v852
      %v854 = vrot.slane %v834, %v853
      %v856 = vmul.f32 %v849, %v854
      %v858 = vlaneseq
      %v859 = vshrl.u32 %v858, 7
      %v860 = vsub.s32 0, %v859
      %v861 = vrot.slane %v835, %v860
      %v863 = vadd.f32 %v856, %v861
      %v864 = vpack.c.bf16 %v863, %v863
      %v865 = vld [vmem:[%s573] sm:$0xff]
      %v866 = vld [vmem:[%s573 + $0x8] sm:$0xff]
      %v867 = vld [vmem:[%s573 + $0x10] sm:$0xff]
      %v868 = vld [vmem:[%s573 + $0x18] sm:$0xff]
      %v869 = vld [vmem:[%s573 + $0x20] sm:$0xff]
      %v870 = vld [vmem:[%s573 + $0x28] sm:$0xff]
      %v871 = vld [vmem:[%s573 + $0x30] sm:$0xff]
      %v872 = vld [vmem:[%s573 + $0x38] sm:$0xff]
      %v873 = vld [vmem:[%s577] sm:$0x3]
      %v875 = vlaneseq
      %v876 = vshrl.u32 %v875, 7
      %v877 = vsub.s32 0, %v876
      %v878 = vrot.slane %v873, %v877
      %v879 = vlaneseq
      %v880 = vshrl.u32 %v879, 7
      %v881 = vsub.s32 1, %v880
      %v882 = vrot.slane %v873, %v881
      %v893 = vunpack.c.l.b16 %v865
      %v894 = vunpack.c.h.b16 %v865
      %v895 = vunpack.c.l.b16 %v866
      %v896 = vunpack.c.h.b16 %v866
      %v897 = vunpack.c.l.b16 %v867
      %v898 = vunpack.c.h.b16 %v867
      %v899 = vunpack.c.l.b16 %v868
      %v900 = vunpack.c.h.b16 %v868
      %v901 = vunpack.c.l.b16 %v869
      %v902 = vunpack.c.h.b16 %v869
      %v903 = vunpack.c.l.b16 %v870
      %v904 = vunpack.c.h.b16 %v870
      %v905 = vunpack.c.l.b16 %v871
      %v906 = vunpack.c.h.b16 %v871
      %v907 = vunpack.c.l.b16 %v872
      %v908 = vunpack.c.h.b16 %v872
      %v909 = vpack.c.b16 %v895, %v893
      %v910 = vpack.c.b16 %v896, %v894
      %v911 = vpack.c.b16 %v899, %v897
      %v912 = vpack.c.b16 %v900, %v898
      %v913 = vpack.c.b16 %v903, %v901
      %v914 = vpack.c.b16 %v904, %v902
      %v915 = vpack.c.b16 %v907, %v905
      %v916 = vpack.c.b16 %v908, %v906
      %v926 = vsel %vm672, %v864, 0
      %928 = vmatprep.subr.bf16.mxu0 0
      %929 = vmatpush1.bf16.msra.mxu0 0
      %930 = vmatprep.subr.bf16.mxu0 0
      %931 = vmatpush1.bf16.msra.mxu0 0
      %932 = vmatprep.subr.bf16.mxu0 0
      %933 = vmatpush1.bf16.msra.mxu0 0
      %934 = vmatprep.subr.bf16.mxu0 0
      %935 = vmatpush1.bf16.msra.mxu0 0
      %936 = vmatprep.subr.bf16.mxu0 %v916
      %937 = vmatpush1.bf16.msra.mxu0 %v915
      %938 = vmatprep.subr.bf16.mxu0 %v914
      %939 = vmatpush1.bf16.msra.mxu0 %v913
      %940 = vmatprep.subr.bf16.mxu0 %v912
      %941 = vmatpush1.bf16.msra.mxu0 %v911
      %942 = vmatprep.subr.bf16.mxu0 %v910
      %943 = vmatpush1.bf16.msra.mxu0 %v909
      %944 = vmatprep.subr.bf16.mxu0 0
      %945 = vmatpush2.bf16.msra.mxu0 0
      %946 = vmatprep.subr.bf16.mxu0 0
      %947 = vmatpush2.bf16.msra.mxu0 0
      %948 = vmatprep.subr.bf16.mxu0 0
      %949 = vmatpush2.bf16.msra.mxu0 0
      %950 = vmatprep.subr.bf16.mxu0 0
      %951 = vmatpush2.bf16.msra.mxu0 0
      %952 = vmatprep.subr.bf16.mxu0 0
      %953 = vmatpush2.bf16.msra.mxu0 0
      %954 = vmatprep.subr.bf16.mxu0 0
      %955 = vmatpush2.bf16.msra.mxu0 0
      %956 = vmatprep.subr.bf16.mxu0 0
      %957 = vmatpush2.bf16.msra.mxu0 0
      %958 = vmatprep.subr.bf16.mxu0 0
      %959 = vmatpush2.bf16.msra.mxu0 0
      %960 = vmatprep.mubr.bf16.mxu0 0
      %961 = vmatmul.mubr.bf16.gmra.mxu0 %v926
      %v962 = vpop.f32.mrf.mxu0
      %v963 = vadd.f32 %v878, %v962
      %v964 = vpop.f32.mrf.mxu0
      %v965 = vadd.f32 %v882, %v964
      %v966 = vpop.f32.mrf.mxu0
      %v967 = vpop.f32.mrf.mxu0
      %968 = vdwg.mxu0
      %v969 = vmax.f32 %v963, 0.0
      %v970 = vmax.f32 %v965, 0.0
      %v971 = vpack.c.bf16 %v969, %v969
      %v972 = vpack.c.bf16 %v970, %v970
      %v973 = vld [vmem:[%s582] sm:$0xf]
      %v974 = vld [vmem:[%s582 + $0x4] sm:$0xf]
      %v975 = vld [vmem:[%s582 + $0x8] sm:$0xf]
      %v976 = vld [vmem:[%s582 + $0xc] sm:$0xf]
      %v977 = vld [vmem:[%s582 + $0x10] sm:$0xf]
      %v978 = vld [vmem:[%s582 + $0x14] sm:$0xf]
      %v979 = vld [vmem:[%s582 + $0x18] sm:$0xf]
      %v980 = vld [vmem:[%s582 + $0x1c] sm:$0xf]
      %v981 = vld [vmem:[%s582 + $0x20] sm:$0xf]
      %v982 = vld [vmem:[%s582 + $0x24] sm:$0xf]
      %v983 = vld [vmem:[%s582 + $0x28] sm:$0xf]
      %v984 = vld [vmem:[%s582 + $0x2c] sm:$0xf]
      %v985 = vld [vmem:[%s582 + $0x30] sm:$0xf]
      %v986 = vld [vmem:[%s582 + $0x34] sm:$0xf]
      %v987 = vld [vmem:[%s582 + $0x38] sm:$0xf]
      %v988 = vld [vmem:[%s582 + $0x3c] sm:$0xf]
      %v989 = vld [vmem:[%s582 + $0x40] sm:$0xf]
      %v990 = vld [vmem:[%s582 + $0x44] sm:$0xf]
      %v991 = vld [vmem:[%s582 + $0x48] sm:$0xf]
      %v992 = vld [vmem:[%s582 + $0x4c] sm:$0xf]
      %v993 = vld [vmem:[%s582 + $0x50] sm:$0xf]
      %v994 = vld [vmem:[%s582 + $0x54] sm:$0xf]
      %v995 = vld [vmem:[%s582 + $0x58] sm:$0xf]
      %v996 = vld [vmem:[%s582 + $0x5c] sm:$0xf]
      %v997 = vld [vmem:[%s582 + $0x60] sm:$0xf]
      %v998 = vld [vmem:[%s582 + $0x64] sm:$0xf]
      %v999 = vld [vmem:[%s582 + $0x68] sm:$0xf]
      %v1000 = vld [vmem:[%s582 + $0x6c] sm:$0xf]
      %v1001 = vld [vmem:[%s582 + $0x70] sm:$0xf]
      %v1002 = vld [vmem:[%s582 + $0x74] sm:$0xf]
      %v1003 = vld [vmem:[%s582 + $0x78] sm:$0xf]
      %v1004 = vld [vmem:[%s582 + $0x7c] sm:$0xf]
      %v1005 = vld [vmem:[%s585] sm:$0x1]
      %v1007 = vlaneseq
      %v1008 = vshrl.u32 %v1007, 7
      %v1009 = vsub.s32 0, %v1008
      %v1010 = vrot.slane %v1005, %v1009
      %v1044 = vunpack.c.l.b16 %v973
      %v1045 = vunpack.c.l.b16 %v974
      %v1046 = vunpack.c.l.b16 %v975
      %v1047 = vunpack.c.l.b16 %v976
      %v1048 = vunpack.c.l.b16 %v977
      %v1049 = vunpack.c.l.b16 %v978
      %v1050 = vunpack.c.l.b16 %v979
      %v1051 = vunpack.c.l.b16 %v980
      %v1052 = vunpack.c.l.b16 %v981
      %v1053 = vunpack.c.l.b16 %v982
      %v1054 = vunpack.c.l.b16 %v983
      %v1055 = vunpack.c.l.b16 %v984
      %v1056 = vunpack.c.l.b16 %v985
      %v1057 = vunpack.c.l.b16 %v986
      %v1058 = vunpack.c.l.b16 %v987
      %v1059 = vunpack.c.l.b16 %v988
      %v1060 = vunpack.c.l.b16 %v989
      %v1061 = vunpack.c.l.b16 %v990
      %v1062 = vunpack.c.l.b16 %v991
      %v1063 = vunpack.c.l.b16 %v992
      %v1064 = vunpack.c.l.b16 %v993
      %v1065 = vunpack.c.l.b16 %v994
      %v1066 = vunpack.c.l.b16 %v995
      %v1067 = vunpack.c.l.b16 %v996
      %v1068 = vunpack.c.l.b16 %v997
      %v1069 = vunpack.c.l.b16 %v998
      %v1070 = vunpack.c.l.b16 %v999
      %v1071 = vunpack.c.l.b16 %v1000
      %v1072 = vunpack.c.l.b16 %v1001
      %v1073 = vunpack.c.l.b16 %v1002
      %v1074 = vunpack.c.l.b16 %v1003
      %v1075 = vunpack.c.l.b16 %v1004
      %v1076 = vpack.c.b16 %v1045, %v1044
      %v1077 = vpack.c.b16 %v1047, %v1046
      %v1078 = vpack.c.b16 %v1049, %v1048
      %v1079 = vpack.c.b16 %v1051, %v1050
      %v1080 = vpack.c.b16 %v1053, %v1052
      %v1081 = vpack.c.b16 %v1055, %v1054
      %v1082 = vpack.c.b16 %v1057, %v1056
      %v1083 = vpack.c.b16 %v1059, %v1058
      %v1084 = vpack.c.b16 %v1061, %v1060
      %v1085 = vpack.c.b16 %v1063, %v1062
      %v1086 = vpack.c.b16 %v1065, %v1064
      %v1087 = vpack.c.b16 %v1067, %v1066
      %v1088 = vpack.c.b16 %v1069, %v1068
      %v1089 = vpack.c.b16 %v1071, %v1070
      %v1090 = vpack.c.b16 %v1073, %v1072
      %v1091 = vpack.c.b16 %v1075, %v1074
      %1108 = vmatprep.subr.bf16.mxu0 0
      %1109 = vmatpush1.bf16.msra.mxu0 %v1083
      %1110 = vmatprep.subr.bf16.mxu0 0
      %1111 = vmatpush1.bf16.msra.mxu0 %v1082
      %1112 = vmatprep.subr.bf16.mxu0 0
      %1113 = vmatpush1.bf16.msra.mxu0 %v1081
      %1114 = vmatprep.subr.bf16.mxu0 0
      %1115 = vmatpush1.bf16.msra.mxu0 %v1080
      %1116 = vmatprep.subr.bf16.mxu0 0
      %1117 = vmatpush1.bf16.msra.mxu0 %v1079
      %1118 = vmatprep.subr.bf16.mxu0 0
      %1119 = vmatpush1.bf16.msra.mxu0 %v1078
      %1120 = vmatprep.subr.bf16.mxu0 0
      %1121 = vmatpush1.bf16.msra.mxu0 %v1077
      %1122 = vmatprep.subr.bf16.mxu0 0
      %1123 = vmatpush1.bf16.msra.mxu0 %v1076
      %1124 = vmatprep.subr.bf16.mxu0 0
      %1125 = vmatpush2.bf16.msra.mxu0 %v1091
      %1126 = vmatprep.subr.bf16.mxu0 0
      %1127 = vmatpush2.bf16.msra.mxu0 %v1090
      %1128 = vmatprep.subr.bf16.mxu0 0
      %1129 = vmatpush2.bf16.msra.mxu0 %v1089
      %1130 = vmatprep.subr.bf16.mxu0 0
      %1131 = vmatpush2.bf16.msra.mxu0 %v1088
      %1132 = vmatprep.subr.bf16.mxu0 0
      %1133 = vmatpush2.bf16.msra.mxu0 %v1087
      %1134 = vmatprep.subr.bf16.mxu0 0
      %1135 = vmatpush2.bf16.msra.mxu0 %v1086
      %1136 = vmatprep.subr.bf16.mxu0 0
      %1137 = vmatpush2.bf16.msra.mxu0 %v1085
      %1138 = vmatprep.subr.bf16.mxu0 0
      %1139 = vmatpush2.bf16.msra.mxu0 %v1084
      %1140 = vmatprep.mubr.bf16.mxu0 %v972
      %1141 = vmatmul.mubr.bf16.gmra.mxu0 %v971
      %v1142 = vpop.f32.mrf.mxu0
      %v1143 = vadd.f32 %v1010, %v1142
      %v1144 = vpop.f32.mrf.mxu0
      %v1145 = vpop.f32.mrf.mxu0
      %v1146 = vpop.f32.mrf.mxu0
      %1147 = vdwg.mxu0
      %v1148 = vadd.f32 %v863, %v1143
      %v1149 = vld [vmem:[%s594] sm:$0x1]
      %v1150 = vld [vmem:[%s597] sm:$0x1]
      %v1151 = vsel %vm672, %v1148, 0.0
      %1152 = vadd.xlane.f32.xlu0 %v1151
      %v1153 = vpop.xlane.xlu0 %1152
      %v1154 = vmul.f32 %v1153, %v839
      %v1155 = vsub.f32 %v1148, %v1154
      %v1156 = vmul.f32 %v1155, %v1155
      %v1157 = vsel %vm672, %v1156, 0.0
      %1158 = vadd.xlane.f32.xlu0 %v1157
      %v1159 = vpop.xlane.xlu0 %1158
      %v1160 = vmul.f32 %v1159, %v839
      %v1161 = vadd.f32 %v1160, 1e-05
      %v1162 = vrsqrt.pop %v1161
      %v1163 = vmul.f32 %v1155, %v1162
      %v1165 = vlaneseq
      %v1166 = vshrl.u32 %v1165, 7
      %v1167 = vsub.s32 0, %v1166
      %v1168 = vrot.slane %v1149, %v1167
      %v1170 = vmul.f32 %v1163, %v1168
      %v1172 = vlaneseq
      %v1173 = vshrl.u32 %v1172, 7
      %v1174 = vsub.s32 0, %v1173
      %v1175 = vrot.slane %v1150, %v1174
      %v1177 = vadd.f32 %v1170, %v1175
      %1178 = vst.msk [vmem:[#allocation2] sm:$0xff] %vm672, %v1177
      %p1179 = scmp.eq.s32.totalorder %s28, 1
      // Predicated region
      $region73: #{stisan_forward.5} parent=67 // pred_check
        %p1180 = pneg %p1179
      $region74: #{stisan_forward.5} parent=67 // pred_check_branch
        %1182 = sbr.rel (%p1180) target = $region76
      $region75: #{stisan_forward.5} parent=67 // pred_region
        %1183 = vst.msk [vmem:[%s601] sm:$0xff] %vm672, %v1177
      $region76: #{stisan_forward.5} parent=67 // pred_fallthru
        _
      %p1184 = scmp.lt.s32.totalorder %s27, 1
      %s1185 = scalar_select %p1184, %s27, 1
      %s1186 = smul.addr %s1185, 8
      %s1187 = scalar_lea.vmem %s12, %s1186
      // Predicated region
      $region77: #{stisan_forward.5} parent=67 // pred_check
        %p1188 = pneg %p365
      $region78: #{stisan_forward.5} parent=67 // pred_check_branch
        %1190 = sbr.rel (%p1188) target = $region80
      $region79: #{stisan_forward.5} parent=67 // pred_region
        _
      $region80: #{stisan_forward.5} parent=67 // pred_fallthru
        _
    $region68: #{stisan_forward.5} parent=5 // pred_fallthru
      _
    %p1191 = scmp.le.s32.totalorder 2, %s18
    // Predicated region
    $region81: #{stisan_forward.5} parent=5 // pred_check
      %p1192 = pneg %p1191
    $region82: #{stisan_forward.5} parent=5 // pred_check_branch
      %1194 = sbr.rel (%p1192) target = $region84
    $region83: #{stisan_forward.5} parent=5 // pred_region
      %s1195 = ssub.s32 %s18, 2
      // Predicated region
      $region85: #{stisan_forward.5} parent=83 // pred_check
        %p1196 = pneg %p371
      $region86: #{stisan_forward.5} parent=83 // pred_check_branch
        %1198 = sbr.rel (%p1196) target = $region88
      $region87: #{stisan_forward.5} parent=83 // pred_region
        %p1199 = scmp.lt.s32.totalorder %s29, 1
        %s1200 = scalar_select %p1199, %s29, 1
        %s1201 = smul.addr %s1200, 8
        %s1202 = scalar_lea.vmem %s12, %s1201
      $region88: #{stisan_forward.5} parent=83 // pred_fallthru
        _
    $region84: #{stisan_forward.5} parent=5 // pred_fallthru
      _
  $region6: #{stisan_forward.5} parent=0 // loop_footer
    %s22 = sadd.s32 1, %s18
  $region7: #{stisan_forward.5} parent=0 // loop_footer_branch
    %17 = sbr.rel target = $region3
  $region8: #{stisan_forward.5} parent=0 // loop_exit
    _

// kernel: stisan_forward.6
$region0: #{stisan_forward.6}
  #allocation0 [shape = 'u32[]', space=smem, size = 0x4, offset = 0x4, fixed_abs, tag = 'smem constant byte address 0x4 - core index']
  #allocation1 [shape = 'u32[144,128]{1,0:T(1,128)}', space=vmem, size = 0x12000, scoped, tag = 'internal scratch']
  %s0 = inlined_call_operand.vmem [shape: bf16[16,64], index: 0, kind: input, shape index: {}]
  %s1 = inlined_call_operand.vmem [shape: bf16[64,128], index: 1, kind: input, shape index: {}]
  %s2 = inlined_call_operand.vmem [shape: f32[1,128], index: 2, kind: input, shape index: {}]
  %s3 = inlined_call_operand.hbm [shape: bf16[16,50], index: 3, kind: output, shape index: {}]
  %s4 = sld [smem:[#allocation0]]
  $region22: #{stisan_forward.6} parent=0
    _
  %s6 = ssub.s32 1, %s4
  %s7 = scalar_select 0, %s6, %s4
  $region1: #{stisan_forward.6} parent=0
    #allocation2 [shape = 'u8[4096]{0}', space=vmem, size = 0x1000, scoped, tag = 'output window, operand 0, single buffered']
    #allocation3 [shape = 's32[1]{0}', space=sflag, size = 0x4, scoped, tag = 'scoped memory for stisan_forward.6']
    %8 = vsyncpa [#allocation3], 0
    // Predicated region
    $region2: #{stisan_forward.6} parent=1 // pred_check
      _
    $region3: #{stisan_forward.6} parent=1 // pred_check_branch
      %10 = sbr.rel (0) target = $region5
    $region4: #{stisan_forward.6} parent=1 // pred_region
      _
    $region5: #{stisan_forward.6} parent=1 // pred_fallthru
      _
    // Predicated region
    $region6: #{stisan_forward.6} parent=1 // pred_check
      _
    $region7: #{stisan_forward.6} parent=1 // pred_check_branch
      %12 = sbr.rel (0) target = $region9
    $region8: #{stisan_forward.6} parent=1 // pred_region
      _
    $region9: #{stisan_forward.6} parent=1 // pred_fallthru
      _
    // Predicated region
    $region10: #{stisan_forward.6} parent=1 // pred_check
      _
    $region11: #{stisan_forward.6} parent=1 // pred_check_branch
      %14 = sbr.rel (0) target = $region13
    $region12: #{stisan_forward.6} parent=1 // pred_region
      _
    $region13: #{stisan_forward.6} parent=1 // pred_fallthru
      _
    %v16 = vld [vmem:[%s0] sm:$0xf]
    %v17 = vld [vmem:[%s0 + $0x4] sm:$0xf]
    %v18 = vld [vmem:[%s1] sm:$0xf]
    %v19 = vld [vmem:[%s1 + $0x4] sm:$0xf]
    %v20 = vld [vmem:[%s1 + $0x8] sm:$0xf]
    %v21 = vld [vmem:[%s1 + $0xc] sm:$0xf]
    %v22 = vld [vmem:[%s1 + $0x10] sm:$0xf]
    %v23 = vld [vmem:[%s1 + $0x14] sm:$0xf]
    %v24 = vld [vmem:[%s1 + $0x18] sm:$0xf]
    %v25 = vld [vmem:[%s1 + $0x1c] sm:$0xf]
    %v26 = vld [vmem:[%s2] sm:$0x1]
    %v28 = vlaneseq
    %v29 = vshrl.u32 %v28, 7
    %v30 = vsub.s32 0, %v29
    %v31 = vrot.slane %v26, %v30
    %v35 = vunpack.c.l.b16 %v16
    %v36 = vunpack.c.l.b16 %v17
    %v37 = vpack.c.b16 %v36, %v35
    %v46 = vunpack.c.l.b16 %v18
    %v47 = vunpack.c.l.b16 %v19
    %v48 = vunpack.c.l.b16 %v20
    %v49 = vunpack.c.l.b16 %v21
    %v50 = vunpack.c.l.b16 %v22
    %v51 = vunpack.c.l.b16 %v23
    %v52 = vunpack.c.l.b16 %v24
    %v53 = vunpack.c.l.b16 %v25
    %v54 = vpack.c.b16 %v47, %v46
    %v55 = vpack.c.b16 %v49, %v48
    %v56 = vpack.c.b16 %v51, %v50
    %v57 = vpack.c.b16 %v53, %v52
    %vm62 = vcmask 523264
    %v64 = vsel %vm62, %v37, 0
    %66 = vmatprep.subr.bf16.mxu0 0
    %67 = vmatpush1.bf16.msra.mxu0 0
    %68 = vmatprep.subr.bf16.mxu0 0
    %69 = vmatpush1.bf16.msra.mxu0 0
    %70 = vmatprep.subr.bf16.mxu0 0
    %71 = vmatpush1.bf16.msra.mxu0 0
    %72 = vmatprep.subr.bf16.mxu0 0
    %73 = vmatpush1.bf16.msra.mxu0 0
    %74 = vmatprep.subr.bf16.mxu0 0
    %75 = vmatpush1.bf16.msra.mxu0 %v57
    %76 = vmatprep.subr.bf16.mxu0 0
    %77 = vmatpush1.bf16.msra.mxu0 %v56
    %78 = vmatprep.subr.bf16.mxu0 0
    %79 = vmatpush1.bf16.msra.mxu0 %v55
    %80 = vmatprep.subr.bf16.mxu0 0
    %81 = vmatpush1.bf16.msra.mxu0 %v54
    %82 = vmatprep.subr.bf16.mxu0 0
    %83 = vmatpush2.bf16.msra.mxu0 0
    %84 = vmatprep.subr.bf16.mxu0 0
    %85 = vmatpush2.bf16.msra.mxu0 0
    %86 = vmatprep.subr.bf16.mxu0 0
    %87 = vmatpush2.bf16.msra.mxu0 0
    %88 = vmatprep.subr.bf16.mxu0 0
    %89 = vmatpush2.bf16.msra.mxu0 0
    %90 = vmatprep.subr.bf16.mxu0 0
    %91 = vmatpush2.bf16.msra.mxu0 0
    %92 = vmatprep.subr.bf16.mxu0 0
    %93 = vmatpush2.bf16.msra.mxu0 0
    %94 = vmatprep.subr.bf16.mxu0 0
    %95 = vmatpush2.bf16.msra.mxu0 0
    %96 = vmatprep.subr.bf16.mxu0 0
    %97 = vmatpush2.bf16.msra.mxu0 0
    %98 = vmatprep.mubr.bf16.mxu0 0
    %99 = vmatmul.mubr.bf16.gmra.mxu0 %v64
    %v100 = vpop.f32.mrf.mxu0
    %v101 = vadd.f32 %v31, %v100
    %v102 = vpop.f32.mrf.mxu0
    %v103 = vpop.f32.mrf.mxu0
    %v104 = vadd.f32 %v31, %v103
    %v105 = vpop.f32.mrf.mxu0
    %106 = vdwg.mxu0
    %v107 = vpack.c.bf16 %v104, %v101
    %v109 = vunpack.c.l.b16 %v107
    %v110 = vunpack.c.h.b16 %v107
    %v111 = vpack.c.b16 %v109, %v109
    %v112 = vpack.c.b16 %v110, %v110
    %115 = vst [vmem:[#allocation2] sm:$0xf] %v111
    %116 = vst [vmem:[#allocation2 + $0x4] sm:$0xf] %v112
    // Predicated region
    $region14: #{stisan_forward.6} parent=1 // pred_check
      _
    $region15: #{stisan_forward.6} parent=1 // pred_check_branch
      %118 = sbr.rel (0) target = $region17
    $region16: #{stisan_forward.6} parent=1 // pred_region
      %s120 = ssub.s32 128, 128
      %121 = vsyncadd [#allocation3], %s120
      %s122 = sshll.u32 [#allocation2], 4
      %s123 = int_to_ptr.vmem [resolvable:$true] %s122
      %128 = dma.vmem_to_hbm [thread:$0]  %s123, 128, %s3, [#allocation3], 64, 64, 4
    $region17: #{stisan_forward.6} parent=1 // pred_fallthru
      _
    // Predicated region
    $region18: #{stisan_forward.6} parent=1 // pred_check
      _
    $region19: #{stisan_forward.6} parent=1 // pred_check_branch
      %130 = sbr.rel (0) target = $region21
    $region20: #{stisan_forward.6} parent=1 // pred_region
      %131 = dma.done [#allocation3], 128
    $region21: #{stisan_forward.6} parent=1 // pred_fallthru
      _
    %132 = vsyncpa [#allocation3], 1

// kernel: stisan_forward.4
$region0: #{stisan_forward.4}
  #allocation0 [shape = 'u32[]', space=smem, size = 0x4, offset = 0x4, fixed_abs, tag = 'smem constant byte address 0x4 - core index']
  #allocation1 [shape = 'u32[144,128]{1,0:T(1,128)}', space=vmem, size = 0x12000, scoped, tag = 'internal scratch']
  #allocation2 [shape = 'f32[128,32]{1,0:T(8,128)}', space=vmem, size = 0x10000, scoped, tag = 'scratch operand']
  %s0 = inlined_call_operand.vmem [shape: f32[128,32], index: 0, kind: input, shape index: {}]
  %s1 = inlined_call_operand.vmem [shape: f32[1,128,128], index: 1, kind: input, shape index: {}]
  %s2 = inlined_call_operand.vmem [shape: bf16[2,32,96], index: 2, kind: input, shape index: {}]
  %s3 = inlined_call_operand.vmem [shape: f32[2,1,96], index: 3, kind: input, shape index: {}]
  %s4 = inlined_call_operand.vmem [shape: bf16[2,32,128], index: 4, kind: input, shape index: {}]
  %s5 = inlined_call_operand.vmem [shape: f32[2,1,128], index: 5, kind: input, shape index: {}]
  %s6 = inlined_call_operand.vmem [shape: bf16[2,128,32], index: 6, kind: input, shape index: {}]
  %s7 = inlined_call_operand.vmem [shape: f32[2,1,32], index: 7, kind: input, shape index: {}]
  %s8 = inlined_call_operand.vmem [shape: f32[2,1,32], index: 8, kind: input, shape index: {}]
  %s9 = inlined_call_operand.vmem [shape: f32[2,1,32], index: 9, kind: input, shape index: {}]
  %s10 = inlined_call_operand.vmem [shape: f32[2,1,32], index: 10, kind: input, shape index: {}]
  %s11 = inlined_call_operand.vmem [shape: f32[2,1,32], index: 11, kind: input, shape index: {}]
  %s12 = inlined_call_operand.vmem [shape: f32[128,32], index: 12, kind: output, shape index: {}]
  %s13 = sld [smem:[#allocation0]]
  $region89: #{stisan_forward.4} parent=0
    _
  %s15 = ssub.s32 1, %s13
  %s16 = scalar_select 0, %s15, %s13
  loop: start=0, step=1, limit=4
  $region2: #{stisan_forward.4} parent=0 // loop_pre_header
    _
  $region3: #{stisan_forward.4} parent=0 // loop_header
    %s18 = sphi 0, %s22
    %p19 = scmp.ge.s32.totalorder %s18, 4
    %s25 = sphi 0, %s37
    %s26 = sphi 0, %s33
    %s27 = sphi 0, %s25
    %s28 = sphi 0, %s26
    %s29 = sphi 0, %s27
    %s30 = sphi 0, %s28
    %s40 = sphi 0, %s42
    %s43 = sphi 0, %s40
    %s44 = sphi 0, %s43
    %s60 = sphi 0, %s44
    %s64 = sphi 0, %s64
    %s66 = sphi 0, %s64
    %s67 = sphi 0, %s66
    %s81 = sphi 0, %s67
    %s87 = sphi 0, %s89
    %s90 = sphi 0, %s87
    %s91 = sphi 0, %s90
    %s107 = sphi 0, %s91
    %s113 = sphi 0, %s115
    %s116 = sphi 0, %s113
    %s117 = sphi 0, %s116
    %s133 = sphi 0, %s117
    %s139 = sphi 0, %s141
    %s142 = sphi 0, %s139
    %s143 = sphi 0, %s142
    %s159 = sphi 0, %s143
    %s165 = sphi 0, %s167
    %s168 = sphi 0, %s165
    %s169 = sphi 0, %s168
    %s185 = sphi 0, %s169
    %s191 = sphi 0, %s193
    %s194 = sphi 0, %s191
    %s195 = sphi 0, %s194
    %s211 = sphi 0, %s195
    %s217 = sphi 0, %s219
    %s220 = sphi 0, %s217
    %s221 = sphi 0, %s220
    %s237 = sphi 0, %s221
    %s243 = sphi 0, %s245
    %s246 = sphi 0, %s243
    %s247 = sphi 0, %s246
    %s263 = sphi 0, %s247
    %s269 = sphi 0, %s271
    %s272 = sphi 0, %s269
    %s273 = sphi 0, %s272
    %s289 = sphi 0, %s273
    %s295 = sphi 0, %s297
    %s298 = sphi 0, %s295
    %s299 = sphi 0, %s298
    %s315 = sphi 0, %s299
    %s321 = sphi 0, %s323
    %s324 = sphi 0, %s321
    %s325 = sphi 0, %s324
    %s341 = sphi 0, %s325
    %s347 = sphi 0, %s349
    %s350 = sphi 0, %s347
    %s351 = sphi 0, %s350
    %s367 = sphi 0, %s351
  $region4: #{stisan_forward.4} parent=0 // loop_header_branch
    %21 = sbr.rel (%p19) target = $region8
  $region5: #{stisan_forward.4} parent=0 // loop_body
    %s23 = ssub.s32 %s18, 1
    %s24 = ssub.s32 %s18, 2
    %s31 = sadd.s32 1, %s26
    %p32 = scmp.ge.s32.totalorder %s31, 2
    %s33 = scalar_select %p32, 0, %s31
    %s34 = sadd.s32 1, %s25
    %s35 = scalar_select %p32, %s34, %s25
    %p36 = scmp.ge.s32.totalorder %s35, 1
    %s37 = scalar_select %p36, 0, %s35
    %s38 = ssub.s32 %s25, %s37
    %p39 = scmp.eq.s32.totalorder %s38, 0
    %s41 = sadd.s32 %s40, 1
    %s42 = scalar_select %p39, %s40, %s41
    %p45 = pneg %p39
    %p46 = scmp.eq.s32.totalorder %s18, 1
    %p47 = por %p45, %p46
    %p48 = scmp.ne.s32.totalorder %s40, %s43
    %p49 = scmp.eq.s32.totalorder %s18, 0
    %p50 = por %p48, %p49
    %p51 = scmp.ne.s32.totalorder %s40, %s43
    %p52 = scmp.eq.s32.totalorder %s23, 1
    %p53 = por %p51, %p52
    %p54 = scmp.ne.s32.totalorder %s43, %s44
    %p55 = scmp.eq.s32.totalorder %s23, 0
    %p56 = por %p54, %p55
    %p57 = scmp.ne.s32.totalorder %s43, %s44
    %p58 = scmp.eq.s32.totalorder %s24, 1
    %p59 = por %p57, %p58
    %p61 = scmp.ne.s32.totalorder %s44, %s60
    %p62 = scmp.eq.s32.totalorder %s24, 0
    %p63 = por %p61, %p62
    %s65 = sadd.s32 %s64, 1
    %p68 = scmp.eq.s32.totalorder %s18, 1
    %p69 = scmp.ne.s32.totalorder %s64, %s66
    %p70 = scmp.eq.s32.totalorder %s18, 0
    %p71 = por %p69, %p70
    %p72 = scmp.ne.s32.totalorder %s64, %s66
    %p73 = scmp.eq.s32.totalorder %s23, 1
    %p74 = por %p72, %p73
    %p75 = scmp.ne.s32.totalorder %s66, %s67
    %p76 = scmp.eq.s32.totalorder %s23, 0
    %p77 = por %p75, %p76
    %p78 = scmp.ne.s32.totalorder %s66, %s67
    %p79 = scmp.eq.s32.totalorder %s24, 1
    %p80 = por %p78, %p79
    %p82 = scmp.ne.s32.totalorder %s67, %s81
    %p83 = scmp.eq.s32.totalorder %s24, 0
    %p84 = por %p82, %p83
    %s85 = ssub.s32 %s26, %s33
    %p86 = scmp.eq.s32.totalorder %s85, 0
    %s88 = sadd.s32 %s87, 1
    %s89 = scalar_select %p86, %s87, %s88
    %p92 = pneg %p86
    %p93 = scmp.eq.s32.totalorder %s18, 1
    %p94 = por %p92, %p93
    %p95 = scmp.ne.s32.totalorder %s87, %s90
    %p96 = scmp.eq.s32.totalorder %s18, 0
    %p97 = por %p95, %p96
    %p98 = scmp.ne.s32.totalorder %s87, %s90
    %p99 = scmp.eq.s32.totalorder %s23, 1
    %p100 = por %p98, %p99
    %p101 = scmp.ne.s32.totalorder %s90, %s91
    %p102 = scmp.eq.s32.totalorder %s23, 0
    %p103 = por %p101, %p102
    %p104 = scmp.ne.s32.totalorder %s90, %s91
    %p105 = scmp.eq.s32.totalorder %s24, 1
    %p106 = por %p104, %p105
    %p108 = scmp.ne.s32.totalorder %s91, %s107
    %p109 = scmp.eq.s32.totalorder %s24, 0
    %p110 = por %p108, %p109
    %s111 = ssub.s32 %s26, %s33
    %p112 = scmp.eq.s32.totalorder %s111, 0
    %s114 = sadd.s32 %s113, 1
    %s115 = scalar_select %p112, %s113, %s114
    %p118 = pneg %p112
    %p119 = scmp.eq.s32.totalorder %s18, 1
    %p120 = por %p118, %p119
    %p121 = scmp.ne.s32.totalorder %s113, %s116
    %p122 = scmp.eq.s32.totalorder %s18, 0
    %p123 = por %p121, %p122
    %p124 = scmp.ne.s32.totalorder %s113, %s116
    %p125 = scmp.eq.s32.totalorder %s23, 1
    %p126 = por %p124, %p125
    %p127 = scmp.ne.s32.totalorder %s116, %s117
    %p128 = scmp.eq.s32.totalorder %s23, 0
    %p129 = por %p127, %p128
    %p130 = scmp.ne.s32.totalorder %s116, %s117
    %p131 = scmp.eq.s32.totalorder %s24, 1
    %p132 = por %p130, %p131
    %p134 = scmp.ne.s32.totalorder %s117, %s133
    %p135 = scmp.eq.s32.totalorder %s24, 0
    %p136 = por %p134, %p135
    %s137 = ssub.s32 %s26, %s33
    %p138 = scmp.eq.s32.totalorder %s137, 0
    %s140 = sadd.s32 %s139, 1
    %s141 = scalar_select %p138, %s139, %s140
    %p144 = pneg %p138
    %p145 = scmp.eq.s32.totalorder %s18, 1
    %p146 = por %p144, %p145
    %p147 = scmp.ne.s32.totalorder %s139, %s142
    %p148 = scmp.eq.s32.totalorder %s18, 0
    %p149 = por %p147, %p148
    %p150 = scmp.ne.s32.totalorder %s139, %s142
    %p151 = scmp.eq.s32.totalorder %s23, 1
    %p152 = por %p150, %p151
    %p153 = scmp.ne.s32.totalorder %s142, %s143
    %p154 = scmp.eq.s32.totalorder %s23, 0
    %p155 = por %p153, %p154
    %p156 = scmp.ne.s32.totalorder %s142, %s143
    %p157 = scmp.eq.s32.totalorder %s24, 1
    %p158 = por %p156, %p157
    %p160 = scmp.ne.s32.totalorder %s143, %s159
    %p161 = scmp.eq.s32.totalorder %s24, 0
    %p162 = por %p160, %p161
    %s163 = ssub.s32 %s26, %s33
    %p164 = scmp.eq.s32.totalorder %s163, 0
    %s166 = sadd.s32 %s165, 1
    %s167 = scalar_select %p164, %s165, %s166
    %p170 = pneg %p164
    %p171 = scmp.eq.s32.totalorder %s18, 1
    %p172 = por %p170, %p171
    %p173 = scmp.ne.s32.totalorder %s165, %s168
    %p174 = scmp.eq.s32.totalorder %s18, 0
    %p175 = por %p173, %p174
    %p176 = scmp.ne.s32.totalorder %s165, %s168
    %p177 = scmp.eq.s32.totalorder %s23, 1
    %p178 = por %p176, %p177
    %p179 = scmp.ne.s32.totalorder %s168, %s169
    %p180 = scmp.eq.s32.totalorder %s23, 0
    %p181 = por %p179, %p180
    %p182 = scmp.ne.s32.totalorder %s168, %s169
    %p183 = scmp.eq.s32.totalorder %s24, 1
    %p184 = por %p182, %p183
    %p186 = scmp.ne.s32.totalorder %s169, %s185
    %p187 = scmp.eq.s32.totalorder %s24, 0
    %p188 = por %p186, %p187
    %s189 = ssub.s32 %s26, %s33
    %p190 = scmp.eq.s32.totalorder %s189, 0
    %s192 = sadd.s32 %s191, 1
    %s193 = scalar_select %p190, %s191, %s192
    %p196 = pneg %p190
    %p197 = scmp.eq.s32.totalorder %s18, 1
    %p198 = por %p196, %p197
    %p199 = scmp.ne.s32.totalorder %s191, %s194
    %p200 = scmp.eq.s32.totalorder %s18, 0
    %p201 = por %p199, %p200
    %p202 = scmp.ne.s32.totalorder %s191, %s194
    %p203 = scmp.eq.s32.totalorder %s23, 1
    %p204 = por %p202, %p203
    %p205 = scmp.ne.s32.totalorder %s194, %s195
    %p206 = scmp.eq.s32.totalorder %s23, 0
    %p207 = por %p205, %p206
    %p208 = scmp.ne.s32.totalorder %s194, %s195
    %p209 = scmp.eq.s32.totalorder %s24, 1
    %p210 = por %p208, %p209
    %p212 = scmp.ne.s32.totalorder %s195, %s211
    %p213 = scmp.eq.s32.totalorder %s24, 0
    %p214 = por %p212, %p213
    %s215 = ssub.s32 %s26, %s33
    %p216 = scmp.eq.s32.totalorder %s215, 0
    %s218 = sadd.s32 %s217, 1
    %s219 = scalar_select %p216, %s217, %s218
    %p222 = pneg %p216
    %p223 = scmp.eq.s32.totalorder %s18, 1
    %p224 = por %p222, %p223
    %p225 = scmp.ne.s32.totalorder %s217, %s220
    %p226 = scmp.eq.s32.totalorder %s18, 0
    %p227 = por %p225, %p226
    %p228 = scmp.ne.s32.totalorder %s217, %s220
    %p229 = scmp.eq.s32.totalorder %s23, 1
    %p230 = por %p228, %p229
    %p231 = scmp.ne.s32.totalorder %s220, %s221
    %p232 = scmp.eq.s32.totalorder %s23, 0
    %p233 = por %p231, %p232
    %p234 = scmp.ne.s32.totalorder %s220, %s221
    %p235 = scmp.eq.s32.totalorder %s24, 1
    %p236 = por %p234, %p235
    %p238 = scmp.ne.s32.totalorder %s221, %s237
    %p239 = scmp.eq.s32.totalorder %s24, 0
    %p240 = por %p238, %p239
    %s241 = ssub.s32 %s26, %s33
    %p242 = scmp.eq.s32.totalorder %s241, 0
    %s244 = sadd.s32 %s243, 1
    %s245 = scalar_select %p242, %s243, %s244
    %p248 = pneg %p242
    %p249 = scmp.eq.s32.totalorder %s18, 1
    %p250 = por %p248, %p249
    %p251 = scmp.ne.s32.totalorder %s243, %s246
    %p252 = scmp.eq.s32.totalorder %s18, 0
    %p253 = por %p251, %p252
    %p254 = scmp.ne.s32.totalorder %s243, %s246
    %p255 = scmp.eq.s32.totalorder %s23, 1
    %p256 = por %p254, %p255
    %p257 = scmp.ne.s32.totalorder %s246, %s247
    %p258 = scmp.eq.s32.totalorder %s23, 0
    %p259 = por %p257, %p258
    %p260 = scmp.ne.s32.totalorder %s246, %s247
    %p261 = scmp.eq.s32.totalorder %s24, 1
    %p262 = por %p260, %p261
    %p264 = scmp.ne.s32.totalorder %s247, %s263
    %p265 = scmp.eq.s32.totalorder %s24, 0
    %p266 = por %p264, %p265
    %s267 = ssub.s32 %s26, %s33
    %p268 = scmp.eq.s32.totalorder %s267, 0
    %s270 = sadd.s32 %s269, 1
    %s271 = scalar_select %p268, %s269, %s270
    %p274 = pneg %p268
    %p275 = scmp.eq.s32.totalorder %s18, 1
    %p276 = por %p274, %p275
    %p277 = scmp.ne.s32.totalorder %s269, %s272
    %p278 = scmp.eq.s32.totalorder %s18, 0
    %p279 = por %p277, %p278
    %p280 = scmp.ne.s32.totalorder %s269, %s272
    %p281 = scmp.eq.s32.totalorder %s23, 1
    %p282 = por %p280, %p281
    %p283 = scmp.ne.s32.totalorder %s272, %s273
    %p284 = scmp.eq.s32.totalorder %s23, 0
    %p285 = por %p283, %p284
    %p286 = scmp.ne.s32.totalorder %s272, %s273
    %p287 = scmp.eq.s32.totalorder %s24, 1
    %p288 = por %p286, %p287
    %p290 = scmp.ne.s32.totalorder %s273, %s289
    %p291 = scmp.eq.s32.totalorder %s24, 0
    %p292 = por %p290, %p291
    %s293 = ssub.s32 %s26, %s33
    %p294 = scmp.eq.s32.totalorder %s293, 0
    %s296 = sadd.s32 %s295, 1
    %s297 = scalar_select %p294, %s295, %s296
    %p300 = pneg %p294
    %p301 = scmp.eq.s32.totalorder %s18, 1
    %p302 = por %p300, %p301
    %p303 = scmp.ne.s32.totalorder %s295, %s298
    %p304 = scmp.eq.s32.totalorder %s18, 0
    %p305 = por %p303, %p304
    %p306 = scmp.ne.s32.totalorder %s295, %s298
    %p307 = scmp.eq.s32.totalorder %s23, 1
    %p308 = por %p306, %p307
    %p309 = scmp.ne.s32.totalorder %s298, %s299
    %p310 = scmp.eq.s32.totalorder %s23, 0
    %p311 = por %p309, %p310
    %p312 = scmp.ne.s32.totalorder %s298, %s299
    %p313 = scmp.eq.s32.totalorder %s24, 1
    %p314 = por %p312, %p313
    %p316 = scmp.ne.s32.totalorder %s299, %s315
    %p317 = scmp.eq.s32.totalorder %s24, 0
    %p318 = por %p316, %p317
    %s319 = ssub.s32 %s26, %s33
    %p320 = scmp.eq.s32.totalorder %s319, 0
    %s322 = sadd.s32 %s321, 1
    %s323 = scalar_select %p320, %s321, %s322
    %p326 = pneg %p320
    %p327 = scmp.eq.s32.totalorder %s18, 1
    %p328 = por %p326, %p327
    %p329 = scmp.ne.s32.totalorder %s321, %s324
    %p330 = scmp.eq.s32.totalorder %s18, 0
    %p331 = por %p329, %p330
    %p332 = scmp.ne.s32.totalorder %s321, %s324
    %p333 = scmp.eq.s32.totalorder %s23, 1
    %p334 = por %p332, %p333
    %p335 = scmp.ne.s32.totalorder %s324, %s325
    %p336 = scmp.eq.s32.totalorder %s23, 0
    %p337 = por %p335, %p336
    %p338 = scmp.ne.s32.totalorder %s324, %s325
    %p339 = scmp.eq.s32.totalorder %s24, 1
    %p340 = por %p338, %p339
    %p342 = scmp.ne.s32.totalorder %s325, %s341
    %p343 = scmp.eq.s32.totalorder %s24, 0
    %p344 = por %p342, %p343
    %s345 = ssub.s32 %s25, %s37
    %p346 = scmp.eq.s32.totalorder %s345, 0
    %s348 = sadd.s32 %s347, 1
    %s349 = scalar_select %p346, %s347, %s348
    %p352 = pneg %p346
    %p353 = scmp.eq.s32.totalorder %s18, 1
    %p354 = por %p352, %p353
    %p355 = scmp.ne.s32.totalorder %s347, %s350
    %p356 = scmp.eq.s32.totalorder %s18, 0
    %p357 = por %p355, %p356
    %p358 = scmp.ne.s32.totalorder %s347, %s350
    %p359 = scmp.eq.s32.totalorder %s23, 1
    %p360 = por %p358, %p359
    %p361 = scmp.ne.s32.totalorder %s350, %s351
    %p362 = scmp.eq.s32.totalorder %s23, 0
    %p363 = por %p361, %p362
    %p364 = scmp.ne.s32.totalorder %s350, %s351
    %p365 = scmp.eq.s32.totalorder %s24, 1
    %p366 = por %p364, %p365
    %p368 = scmp.ne.s32.totalorder %s351, %s367
    %p369 = scmp.eq.s32.totalorder %s24, 0
    %p370 = por %p368, %p369
    %p371 = scmp.le.s32.totalorder 1, %s18
    %p372 = scmp.lt.s32.totalorder %s18, 3
    %p373 = pnand %p371, %p372
    %p374 = pneg %p373
    // Predicated region
    $region9: #{stisan_forward.4} parent=5 // pred_check
      _
    $region10: #{stisan_forward.4} parent=5 // pred_check_branch
      %376 = sbr.rel (%p373) target = $region12
    $region11: #{stisan_forward.4} parent=5 // pred_region
      %s377 = ssub.s32 %s18, 1
      // Predicated region
      $region13: #{stisan_forward.4} parent=11 // pred_check
        %p378 = pneg %p56
      $region14: #{stisan_forward.4} parent=11 // pred_check_branch
        %380 = sbr.rel (%p378) target = $region16
      $region15: #{stisan_forward.4} parent=11 // pred_region
        %s381 = smul.u32 16, %s27
        %p382 = scmp.lt.s32.totalorder %s381, 15
        %s383 = scalar_select %p382, %s381, 15
        %s384 = smul.addr %s383, 8
        %s385 = scalar_lea.vmem %s0, %s384
        %s386 = smul.u32 16, %s27
      $region16: #{stisan_forward.4} parent=11 // pred_fallthru
        _
      // Predicated region
      $region17: #{stisan_forward.4} parent=11 // pred_check
        %p387 = pneg %p77
      $region18: #{stisan_forward.4} parent=11 // pred_check_branch
        %389 = sbr.rel (%p387) target = $region20
      $region19: #{stisan_forward.4} parent=11 // pred_region
        _
      $region20: #{stisan_forward.4} parent=11 // pred_fallthru
        _
    $region12: #{stisan_forward.4} parent=5 // pred_fallthru
      _
    %p390 = scmp.lt.s32.totalorder %s18, 2
    // Predicated region
    $region21: #{stisan_forward.4} parent=5 // pred_check
      %p391 = pneg %p390
    $region22: #{stisan_forward.4} parent=5 // pred_check_branch
      %393 = sbr.rel (%p391) target = $region24
    $region23: #{stisan_forward.4} parent=5 // pred_region
      // Predicated region
      $region25: #{stisan_forward.4} parent=23 // pred_check
        %p394 = pneg %p97
      $region26: #{stisan_forward.4} parent=23 // pred_check_branch
        %396 = sbr.rel (%p394) target = $region28
      $region27: #{stisan_forward.4} parent=23 // pred_region
        %p397 = scmp.lt.s32.totalorder %s26, 1
        %s398 = scalar_select %p397, %s26, 1
        %s399 = smul.addr %s398, 4
        %s400 = smul.addr %s399, 4
        %s401 = scalar_lea.vmem %s2, %s400
      $region28: #{stisan_forward.4} parent=23 // pred_fallthru
        _
      // Predicated region
      $region29: #{stisan_forward.4} parent=23 // pred_check
        %p402 = pneg %p123
      $region30: #{stisan_forward.4} parent=23 // pred_check_branch
        %404 = sbr.rel (%p402) target = $region32
      $region31: #{stisan_forward.4} parent=23 // pred_region
        %p405 = scmp.lt.s32.totalorder %s26, 1
        %s406 = scalar_select %p405, %s26, 1
        %s407 = scalar_lea.vmem %s3, %s406
      $region32: #{stisan_forward.4} parent=23 // pred_fallthru
        _
      // Predicated region
      $region33: #{stisan_forward.4} parent=23 // pred_check
        %p408 = pneg %p149
      $region34: #{stisan_forward.4} parent=23 // pred_check_branch
        %410 = sbr.rel (%p408) target = $region36
      $region35: #{stisan_forward.4} parent=23 // pred_region
        %p411 = scmp.lt.s32.totalorder %s26, 1
        %s412 = scalar_select %p411, %s26, 1
        %s413 = smul.addr %s412, 4
        %s414 = smul.addr %s413, 4
        %s415 = scalar_lea.vmem %s4, %s414
      $region36: #{stisan_forward.4} parent=23 // pred_fallthru
        _
      // Predicated region
      $region37: #{stisan_forward.4} parent=23 // pred_check
        %p416 = pneg %p175
      $region38: #{stisan_forward.4} parent=23 // pred_check_branch
        %418 = sbr.rel (%p416) target = $region40
      $region39: #{stisan_forward.4} parent=23 // pred_region
        %p419 = scmp.lt.s32.totalorder %s26, 1
        %s420 = scalar_select %p419, %s26, 1
        %s421 = scalar_lea.vmem %s5, %s420
      $region40: #{stisan_forward.4} parent=23 // pred_fallthru
        _
      // Predicated region
      $region41: #{stisan_forward.4} parent=23 // pred_check
        %p422 = pneg %p201
      $region42: #{stisan_forward.4} parent=23 // pred_check_branch
        %424 = sbr.rel (%p422) target = $region44
      $region43: #{stisan_forward.4} parent=23 // pred_region
        %p425 = scmp.lt.s32.totalorder %s26, 1
        %s426 = scalar_select %p425, %s26, 1
        %s427 = smul.addr %s426, 16
        %s428 = smul.addr %s427, 4
        %s429 = scalar_lea.vmem %s6, %s428
      $region44: #{stisan_forward.4} parent=23 // pred_fallthru
        _
      // Predicated region
      $region45: #{stisan_forward.4} parent=23 // pred_check
        %p430 = pneg %p227
      $region46: #{stisan_forward.4} parent=23 // pred_check_branch
        %432 = sbr.rel (%p430) target = $region48
      $region47: #{stisan_forward.4} parent=23 // pred_region
        %p433 = scmp.lt.s32.totalorder %s26, 1
        %s434 = scalar_select %p433, %s26, 1
        %s435 = scalar_lea.vmem %s7, %s434
      $region48: #{stisan_forward.4} parent=23 // pred_fallthru
        _
      // Predicated region
      $region49: #{stisan_forward.4} parent=23 // pred_check
        %p436 = pneg %p253
      $region50: #{stisan_forward.4} parent=23 // pred_check_branch
        %438 = sbr.rel (%p436) target = $region52
      $region51: #{stisan_forward.4} parent=23 // pred_region
        %p439 = scmp.lt.s32.totalorder %s26, 1
        %s440 = scalar_select %p439, %s26, 1
        %s441 = scalar_lea.vmem %s8, %s440
      $region52: #{stisan_forward.4} parent=23 // pred_fallthru
        _
      // Predicated region
      $region53: #{stisan_forward.4} parent=23 // pred_check
        %p442 = pneg %p279
      $region54: #{stisan_forward.4} parent=23 // pred_check_branch
        %444 = sbr.rel (%p442) target = $region56
      $region55: #{stisan_forward.4} parent=23 // pred_region
        %p445 = scmp.lt.s32.totalorder %s26, 1
        %s446 = scalar_select %p445, %s26, 1
        %s447 = scalar_lea.vmem %s9, %s446
      $region56: #{stisan_forward.4} parent=23 // pred_fallthru
        _
      // Predicated region
      $region57: #{stisan_forward.4} parent=23 // pred_check
        %p448 = pneg %p305
      $region58: #{stisan_forward.4} parent=23 // pred_check_branch
        %450 = sbr.rel (%p448) target = $region60
      $region59: #{stisan_forward.4} parent=23 // pred_region
        %p451 = scmp.lt.s32.totalorder %s26, 1
        %s452 = scalar_select %p451, %s26, 1
        %s453 = scalar_lea.vmem %s10, %s452
      $region60: #{stisan_forward.4} parent=23 // pred_fallthru
        _
      // Predicated region
      $region61: #{stisan_forward.4} parent=23 // pred_check
        %p454 = pneg %p331
      $region62: #{stisan_forward.4} parent=23 // pred_check_branch
        %456 = sbr.rel (%p454) target = $region64
      $region63: #{stisan_forward.4} parent=23 // pred_region
        %p457 = scmp.lt.s32.totalorder %s26, 1
        %s458 = scalar_select %p457, %s26, 1
        %s459 = scalar_lea.vmem %s11, %s458
      $region64: #{stisan_forward.4} parent=23 // pred_fallthru
        _
    $region24: #{stisan_forward.4} parent=5 // pred_fallthru
      _
    %p460 = scmp.le.s32.totalorder 1, %s18
    %p461 = scmp.lt.s32.totalorder %s18, 3
    %p462 = pnand %p460, %p461
    %p463 = pneg %p462
    // Predicated region
    $region65: #{stisan_forward.4} parent=5 // pred_check
      _
    $region66: #{stisan_forward.4} parent=5 // pred_check_branch
      %465 = sbr.rel (%p462) target = $region68
    $region67: #{stisan_forward.4} parent=5 // pred_region
      %s466 = ssub.s32 %s18, 1
      %s467 = smul.u32 16, %s27
      %p468 = scmp.lt.s32.totalorder %s467, 15
      %s469 = scalar_select %p468, %s467, 15
      %s470 = smul.addr %s469, 8
      %s471 = scalar_lea.vmem %s0, %s470
      %p472 = pneg %p56
      %p473 = pneg %p53
      %p474 = pneg %p77
      %p475 = pneg %p74
      %p476 = scmp.lt.s32.totalorder %s28, 1
      %s477 = scalar_select %p476, %s28, 1
      %s478 = smul.addr %s477, 4
      %s479 = smul.addr %s478, 4
      %s480 = scalar_lea.vmem %s2, %s479
      %p481 = pneg %p103
      %p482 = pneg %p100
      %p483 = scmp.lt.s32.totalorder %s28, 1
      %s484 = scalar_select %p483, %s28, 1
      %s485 = scalar_lea.vmem %s3, %s484
      %p486 = pneg %p129
      %p487 = pneg %p126
      %p488 = scmp.lt.s32.totalorder %s28, 1
      %s489 = scalar_select %p488, %s28, 1
      %s490 = smul.addr %s489, 4
      %s491 = smul.addr %s490, 4
      %s492 = scalar_lea.vmem %s4, %s491
      %p493 = pneg %p155
      %p494 = pneg %p152
      %p495 = scmp.lt.s32.totalorder %s28, 1
      %s496 = scalar_select %p495, %s28, 1
      %s497 = scalar_lea.vmem %s5, %s496
      %p498 = pneg %p181
      %p499 = pneg %p178
      %p500 = scmp.lt.s32.totalorder %s28, 1
      %s501 = scalar_select %p500, %s28, 1
      %s502 = smul.addr %s501, 16
      %s503 = smul.addr %s502, 4
      %s504 = scalar_lea.vmem %s6, %s503
      %p505 = pneg %p207
      %p506 = pneg %p204
      %p507 = scmp.lt.s32.totalorder %s28, 1
      %s508 = scalar_select %p507, %s28, 1
      %s509 = scalar_lea.vmem %s7, %s508
      %p510 = pneg %p233
      %p511 = pneg %p230
      %p512 = scmp.lt.s32.totalorder %s28, 1
      %s513 = scalar_select %p512, %s28, 1
      %s514 = scalar_lea.vmem %s8, %s513
      %p515 = pneg %p259
      %p516 = pneg %p256
      %p517 = scmp.lt.s32.totalorder %s28, 1
      %s518 = scalar_select %p517, %s28, 1
      %s519 = scalar_lea.vmem %s9, %s518
      %p520 = pneg %p285
      %p521 = pneg %p282
      %p522 = scmp.lt.s32.totalorder %s28, 1
      %s523 = scalar_select %p522, %s28, 1
      %s524 = scalar_lea.vmem %s10, %s523
      %p525 = pneg %p311
      %p526 = pneg %p308
      %p527 = scmp.lt.s32.totalorder %s28, 1
      %s528 = scalar_select %p527, %s28, 1
      %s529 = scalar_lea.vmem %s11, %s528
      %p530 = pneg %p337
      %p531 = pneg %p334
      %p532 = pneg %p363
      %p533 = pneg %p360
      %s534 = smul.u32 16, %s27
      %p535 = scmp.lt.s32.totalorder %s534, 15
      %s536 = scalar_select %p535, %s534, 15
      %s537 = smul.addr %s536, 8
      %s538 = scalar_lea.vmem %s12, %s537
      %s539 = smul.u32 16, %s27
      %p540 = scmp.lt.s32.totalorder %s539, 15
      %s541 = scalar_select %p540, %s539, 15
      %s542 = smul.addr %s541, 8
      %s543 = scalar_lea.vmem %s0, %s542
      %s544 = smul.u32 16, %s27
      %p545 = scmp.lt.s32.totalorder %s28, 1
      %s546 = scalar_select %p545, %s28, 1
      %s547 = smul.addr %s546, 4
      %s548 = smul.addr %s547, 4
      %s549 = scalar_lea.vmem %s2, %s548
      %p550 = scmp.lt.s32.totalorder %s28, 1
      %s551 = scalar_select %p550, %s28, 1
      %s552 = scalar_lea.vmem %s3, %s551
      %p553 = scmp.lt.s32.totalorder %s28, 1
      %s554 = scalar_select %p553, %s28, 1
      %s555 = smul.addr %s554, 4
      %s556 = smul.addr %s555, 4
      %s557 = scalar_lea.vmem %s4, %s556
      %p558 = scmp.lt.s32.totalorder %s28, 1
      %s559 = scalar_select %p558, %s28, 1
      %s560 = scalar_lea.vmem %s5, %s559
      %p561 = scmp.lt.s32.totalorder %s28, 1
      %s562 = scalar_select %p561, %s28, 1
      %s563 = smul.addr %s562, 16
      %s564 = smul.addr %s563, 4
      %s565 = scalar_lea.vmem %s6, %s564
      %p566 = scmp.lt.s32.totalorder %s28, 1
      %s567 = scalar_select %p566, %s28, 1
      %s568 = scalar_lea.vmem %s7, %s567
      %p569 = scmp.lt.s32.totalorder %s28, 1
      %s570 = scalar_select %p569, %s28, 1
      %s571 = scalar_lea.vmem %s8, %s570
      %p572 = scmp.lt.s32.totalorder %s28, 1
      %s573 = scalar_select %p572, %s28, 1
      %s574 = scalar_lea.vmem %s9, %s573
      %p575 = scmp.lt.s32.totalorder %s28, 1
      %s576 = scalar_select %p575, %s28, 1
      %s577 = scalar_lea.vmem %s10, %s576
      %p578 = scmp.lt.s32.totalorder %s28, 1
      %s579 = scalar_select %p578, %s28, 1
      %s580 = scalar_lea.vmem %s11, %s579
      %s581 = smul.u32 16, %s27
      %p582 = scmp.lt.s32.totalorder %s581, 15
      %s583 = scalar_select %p582, %s581, 15
      %s584 = smul.addr %s583, 8
      %s585 = scalar_lea.vmem %s12, %s584
      %s586 = smul.u32 16, %s27
      %p588 = scmp.eq.s32.totalorder %s28, 0
      // Predicated region
      $region69: #{stisan_forward.4} parent=67 // pred_check
        %p589 = pneg %p588
      $region70: #{stisan_forward.4} parent=67 // pred_check_branch
        %591 = sbr.rel (%p589) target = $region72
      $region71: #{stisan_forward.4} parent=67 // pred_region
        %v592 = vld [vmem:[%s543] sm:$0xff]
        %v593 = vld [vmem:[%s543 + $0x8] sm:$0xff]
        %v594 = vld [vmem:[%s543 + $0x10] sm:$0xff]
        %v595 = vld [vmem:[%s543 + $0x18] sm:$0xff]
        %v596 = vld [vmem:[%s543 + $0x20] sm:$0xff]
        %v597 = vld [vmem:[%s543 + $0x28] sm:$0xff]
        %v598 = vld [vmem:[%s543 + $0x30] sm:$0xff]
        %v599 = vld [vmem:[%s543 + $0x38] sm:$0xff]
        %v600 = vld [vmem:[%s543 + $0x40] sm:$0xff]
        %v601 = vld [vmem:[%s543 + $0x48] sm:$0xff]
        %v602 = vld [vmem:[%s543 + $0x50] sm:$0xff]
        %v603 = vld [vmem:[%s543 + $0x58] sm:$0xff]
        %v604 = vld [vmem:[%s543 + $0x60] sm:$0xff]
        %v605 = vld [vmem:[%s543 + $0x68] sm:$0xff]
        %v606 = vld [vmem:[%s543 + $0x70] sm:$0xff]
        %v607 = vld [vmem:[%s543 + $0x78] sm:$0xff]
        %vm608 = vcmask 261120
        %609 = vst.msk [vmem:[#allocation2] sm:$0xff] %vm608, %v592
        %610 = vst.msk [vmem:[#allocation2 + $0x8] sm:$0xff] %vm608, %v593
        %611 = vst.msk [vmem:[#allocation2 + $0x10] sm:$0xff] %vm608, %v594
        %612 = vst.msk [vmem:[#allocation2 + $0x18] sm:$0xff] %vm608, %v595
        %613 = vst.msk [vmem:[#allocation2 + $0x20] sm:$0xff] %vm608, %v596
        %614 = vst.msk [vmem:[#allocation2 + $0x28] sm:$0xff] %vm608, %v597
        %615 = vst.msk [vmem:[#allocation2 + $0x30] sm:$0xff] %vm608, %v598
        %616 = vst.msk [vmem:[#allocation2 + $0x38] sm:$0xff] %vm608, %v599
        %617 = vst.msk [vmem:[#allocation2 + $0x40] sm:$0xff] %vm608, %v600
        %618 = vst.msk [vmem:[#allocation2 + $0x48] sm:$0xff] %vm608, %v601
        %619 = vst.msk [vmem:[#allocation2 + $0x50] sm:$0xff] %vm608, %v602
        %620 = vst.msk [vmem:[#allocation2 + $0x58] sm:$0xff] %vm608, %v603
        %621 = vst.msk [vmem:[#allocation2 + $0x60] sm:$0xff] %vm608, %v604
        %622 = vst.msk [vmem:[#allocation2 + $0x68] sm:$0xff] %vm608, %v605
        %623 = vst.msk [vmem:[#allocation2 + $0x70] sm:$0xff] %vm608, %v606
        %624 = vst.msk [vmem:[#allocation2 + $0x78] sm:$0xff] %vm608, %v607
      $region72: #{stisan_forward.4} parent=67 // pred_fallthru
        _
      %v625 = vld [vmem:[#allocation2] sm:$0xff]
      %v626 = vld [vmem:[#allocation2 + $0x8] sm:$0xff]
      %v627 = vld [vmem:[#allocation2 + $0x10] sm:$0xff]
      %v628 = vld [vmem:[#allocation2 + $0x18] sm:$0xff]
      %v629 = vld [vmem:[#allocation2 + $0x20] sm:$0xff]
      %v630 = vld [vmem:[#allocation2 + $0x28] sm:$0xff]
      %v631 = vld [vmem:[#allocation2 + $0x30] sm:$0xff]
      %v632 = vld [vmem:[#allocation2 + $0x38] sm:$0xff]
      %v633 = vld [vmem:[#allocation2 + $0x40] sm:$0xff]
      %v634 = vld [vmem:[#allocation2 + $0x48] sm:$0xff]
      %v635 = vld [vmem:[#allocation2 + $0x50] sm:$0xff]
      %v636 = vld [vmem:[#allocation2 + $0x58] sm:$0xff]
      %v637 = vld [vmem:[#allocation2 + $0x60] sm:$0xff]
      %v638 = vld [vmem:[#allocation2 + $0x68] sm:$0xff]
      %v639 = vld [vmem:[#allocation2 + $0x70] sm:$0xff]
      %v640 = vld [vmem:[#allocation2 + $0x78] sm:$0xff]
      %v641 = vpack.c.bf16 %v626, %v625
      %v642 = vpack.c.bf16 %v628, %v627
      %v643 = vpack.c.bf16 %v630, %v629
      %v644 = vpack.c.bf16 %v632, %v631
      %v645 = vpack.c.bf16 %v634, %v633
      %v646 = vpack.c.bf16 %v636, %v635
      %v647 = vpack.c.bf16 %v638, %v637
      %v648 = vpack.c.bf16 %v640, %v639
      %v649 = vld [vmem:[%s549] sm:$0xf]
      %v650 = vld [vmem:[%s549 + $0x4] sm:$0xf]
      %v651 = vld [vmem:[%s549 + $0x8] sm:$0xf]
      %v652 = vld [vmem:[%s549 + $0xc] sm:$0xf]
      %v653 = vld [vmem:[%s552] sm:$0x1]
      %v655 = vlaneseq
      %v656 = vshrl.u32 %v655, 7
      %v657 = vsub.s32 0, %v656
      %v658 = vrot.slane %v653, %v657
      %v664 = vunpack.c.l.b16 %v649
      %v665 = vunpack.c.l.b16 %v650
      %v666 = vunpack.c.l.b16 %v651
      %v667 = vunpack.c.l.b16 %v652
      %v668 = vpack.c.b16 %v665, %v664
      %v669 = vpack.c.b16 %v667, %v666
      %vm672 = vcmask 261120
      %v674 = vsel %vm672, %v641, 0
      %v677 = vsel %vm672, %v642, 0
      %v680 = vsel %vm672, %v643, 0
      %v683 = vsel %vm672, %v644, 0
      %v686 = vsel %vm672, %v645, 0
      %v689 = vsel %vm672, %v646, 0
      %v692 = vsel %vm672, %v647, 0
      %v695 = vsel %vm672, %v648, 0
      %697 = vmatprep.subr.bf16.mxu0 0
      %698 = vmatpush1.bf16.msra.mxu0 0
      %699 = vmatprep.subr.bf16.mxu0 0
      %700 = vmatpush1.bf16.msra.mxu0 0
      %701 = vmatprep.subr.bf16.mxu0 0
      %702 = vmatpush1.bf16.msra.mxu0 0
      %703 = vmatprep.subr.bf16.mxu0 0
      %704 = vmatpush1.bf16.msra.mxu0 0
      %705 = vmatprep.subr.bf16.mxu0 0
      %706 = vmatpush1.bf16.msra.mxu0 0
      %707 = vmatprep.subr.bf16.mxu0 0
      %708 = vmatpush1.bf16.msra.mxu0 0
      %709 = vmatprep.subr.bf16.mxu0 0
      %710 = vmatpush1.bf16.msra.mxu0 %v669
      %711 = vmatprep.subr.bf16.mxu0 0
      %712 = vmatpush1.bf16.msra.mxu0 %v668
      %713 = vmatprep.subr.bf16.mxu0 0
      %714 = vmatpush2.bf16.msra.mxu0 0
      %715 = vmatprep.subr.bf16.mxu0 0
      %716 = vmatpush2.bf16.msra.mxu0 0
      %717 = vmatprep.subr.bf16.mxu0 0
      %718 = vmatpush2.bf16.msra.mxu0 0
      %719 = vmatprep.subr.bf16.mxu0 0
      %720 = vmatpush2.bf16.msra.mxu0 0
      %721 = vmatprep.subr.bf16.mxu0 0
      %722 = vmatpush2.bf16.msra.mxu0 0
      %723 = vmatprep.subr.bf16.mxu0 0
      %724 = vmatpush2.bf16.msra.mxu0 0
      %725 = vmatprep.subr.bf16.mxu0 0
      %726 = vmatpush2.bf16.msra.mxu0 0
      %727 = vmatprep.subr.bf16.mxu0 0
      %728 = vmatpush2.bf16.msra.mxu0 0
      %729 = vmatprep.mubr.bf16.mxu0 0
      %730 = vmatmul.mubr.bf16.gmra.mxu0 %v674
      %v731 = vpop.f32.mrf.mxu0
      %v732 = vadd.f32 %v658, %v731
      %v733 = vpop.f32.mrf.mxu0
      %v734 = vpop.f32.mrf.mxu0
      %v735 = vadd.f32 %v658, %v734
      %v736 = vpop.f32.mrf.mxu0
      %737 = vmatprep.mubr.bf16.mxu0 0
      %738 = vmatmul.mubr.bf16.gmra.mxu0 %v677
      %v739 = vpop.f32.mrf.mxu0
      %v740 = vadd.f32 %v658, %v739
      %v741 = vpop.f32.mrf.mxu0
      %v742 = vpop.f32.mrf.mxu0
      %v743 = vadd.f32 %v658, %v742
      %v744 = vpop.f32.mrf.mxu0
      %745 = vmatprep.mubr.bf16.mxu0 0
      %746 = vmatmul.mubr.bf16.gmra.mxu0 %v680
      %v747 = vpop.f32.mrf.mxu0
      %v748 = vadd.f32 %v658, %v747
      %v749 = vpop.f32.mrf.mxu0
      %v750 = vpop.f32.mrf.mxu0
      %v751 = vadd.f32 %v658, %v750
      %v752 = vpop.f32.mrf.mxu0
      %753 = vmatprep.mubr.bf16.mxu0 0
      %754 = vmatmul.mubr.bf16.gmra.mxu0 %v683
      %v755 = vpop.f32.mrf.mxu0
      %v756 = vadd.f32 %v658, %v755
      %v757 = vpop.f32.mrf.mxu0
      %v758 = vpop.f32.mrf.mxu0
      %v759 = vadd.f32 %v658, %v758
      %v760 = vpop.f32.mrf.mxu0
      %761 = vmatprep.mubr.bf16.mxu0 0
      %762 = vmatmul.mubr.bf16.gmra.mxu0 %v686
      %v763 = vpop.f32.mrf.mxu0
      %v764 = vadd.f32 %v658, %v763
      %v765 = vpop.f32.mrf.mxu0
      %v766 = vpop.f32.mrf.mxu0
      %v767 = vadd.f32 %v658, %v766
      %v768 = vpop.f32.mrf.mxu0
      %769 = vmatprep.mubr.bf16.mxu0 0
      %770 = vmatmul.mubr.bf16.gmra.mxu0 %v689
      %v771 = vpop.f32.mrf.mxu0
      %v772 = vadd.f32 %v658, %v771
      %v773 = vpop.f32.mrf.mxu0
      %v774 = vpop.f32.mrf.mxu0
      %v775 = vadd.f32 %v658, %v774
      %v776 = vpop.f32.mrf.mxu0
      %777 = vmatprep.mubr.bf16.mxu0 0
      %778 = vmatmul.mubr.bf16.gmra.mxu0 %v692
      %v779 = vpop.f32.mrf.mxu0
      %v780 = vadd.f32 %v658, %v779
      %v781 = vpop.f32.mrf.mxu0
      %v782 = vpop.f32.mrf.mxu0
      %v783 = vadd.f32 %v658, %v782
      %v784 = vpop.f32.mrf.mxu0
      %785 = vmatprep.mubr.bf16.mxu0 0
      %786 = vmatmul.mubr.bf16.gmra.mxu0 %v695
      %v787 = vpop.f32.mrf.mxu0
      %v788 = vadd.f32 %v658, %v787
      %v789 = vpop.f32.mrf.mxu0
      %v790 = vpop.f32.mrf.mxu0
      %v791 = vadd.f32 %v658, %v790
      %v792 = vpop.f32.mrf.mxu0
      %793 = vdwg.mxu0
      %v794 = vpack.c.bf16 %v735, %v732
      %v795 = vpack.c.bf16 %v743, %v740
      %v796 = vpack.c.bf16 %v751, %v748
      %v797 = vpack.c.bf16 %v759, %v756
      %v798 = vpack.c.bf16 %v767, %v764
      %v799 = vpack.c.bf16 %v775, %v772
      %v800 = vpack.c.bf16 %v783, %v780
      %v801 = vpack.c.bf16 %v791, %v788
      %810 = vrot.lane.b32.xlu0 %v794, 96
      %v811 = vpop.permute.xlu0 %810
      %812 = vrot.lane.b32.xlu0 %v795, 96
      %v813 = vpop.permute.xlu0 %812
      %814 = vrot.lane.b32.xlu0 %v796, 96
      %v815 = vpop.permute.xlu0 %814
      %816 = vrot.lane.b32.xlu0 %v797, 96
      %v817 = vpop.permute.xlu0 %816
      %818 = vrot.lane.b32.xlu0 %v798, 96
      %v819 = vpop.permute.xlu0 %818
      %820 = vrot.lane.b32.xlu0 %v799, 96
      %v821 = vpop.permute.xlu0 %820
      %822 = vrot.lane.b32.xlu0 %v800, 96
      %v823 = vpop.permute.xlu0 %822
      %824 = vrot.lane.b32.xlu0 %v801, 96
      %v825 = vpop.permute.xlu0 %824
      %v827 = vsel %vm672, %v794, 0
      %v830 = vsel %vm672, %v795, 0
      %v833 = vsel %vm672, %v796, 0
      %v836 = vsel %vm672, %v797, 0
      %v839 = vsel %vm672, %v798, 0
      %v842 = vsel %vm672, %v799, 0
      %v845 = vsel %vm672, %v800, 0
      %v848 = vsel %vm672, %v801, 0
      %v851 = vsel %vm672, %v811, 0
      %v854 = vsel %vm672, %v813, 0
      %v857 = vsel %vm672, %v815, 0
      %v860 = vsel %vm672, %v817, 0
      %v863 = vsel %vm672, %v819, 0
      %v866 = vsel %vm672, %v821, 0
      %v869 = vsel %vm672, %v823, 0
      %v872 = vsel %vm672, %v825, 0
      %874 = vmatprep.subr.bf16.mxu0 0
      %875 = vmatpush1.bf16.xpose.msra.mxu0 %v872
      %876 = vmatprep.subr.bf16.mxu0 0
      %877 = vmatpush1.bf16.xpose.msra.mxu0 %v869
      %878 = vmatprep.subr.bf16.mxu0 0
      %879 = vmatpush1.bf16.xpose.msra.mxu0 %v866
      %880 = vmatprep.subr.bf16.mxu0 0
      %881 = vmatpush1.bf16.xpose.msra.mxu0 %v863
      %882 = vmatprep.subr.bf16.mxu0 0
      %883 = vmatpush1.bf16.xpose.msra.mxu0 %v860
      %884 = vmatprep.subr.bf16.mxu0 0
      %885 = vmatpush1.bf16.xpose.msra.mxu0 %v857
      %886 = vmatprep.subr.bf16.mxu0 0
      %887 = vmatpush1.bf16.xpose.msra.mxu0 %v854
      %888 = vmatprep.subr.bf16.mxu0 0
      %889 = vmatpush1.bf16.xpose.msra.mxu0 %v851
      %890 = vmatprep.subr.bf16.mxu0 0
      %891 = vmatpush2.bf16.xpose.msra.mxu0 0
      %892 = vmatprep.subr.bf16.mxu0 0
      %893 = vmatpush2.bf16.xpose.msra.mxu0 0
      %894 = vmatprep.subr.bf16.mxu0 0
      %895 = vmatpush2.bf16.xpose.msra.mxu0 0
      %896 = vmatprep.subr.bf16.mxu0 0
      %897 = vmatpush2.bf16.xpose.msra.mxu0 0
      %898 = vmatprep.subr.bf16.mxu0 0
      %899 = vmatpush2.bf16.xpose.msra.mxu0 0
      %900 = vmatprep.subr.bf16.mxu0 0
      %901 = vmatpush2.bf16.xpose.msra.mxu0 0
      %902 = vmatprep.subr.bf16.mxu0 0
      %903 = vmatpush2.bf16.xpose.msra.mxu0 0
      %904 = vmatprep.subr.bf16.mxu0 0
      %905 = vmatpush2.bf16.xpose.msra.mxu0 0
      %906 = vmatprep.mubr.bf16.mxu0 0
      %907 = vmatmul.mubr.bf16.gmra.mxu0 %v827
      %v908 = vpop.f32.mrf.mxu0
      %v909 = vadd.f32 0.0, %v908
      %v910 = vpop.f32.mrf.mxu0
      %v911 = vpop.f32.mrf.mxu0
      %v912 = vadd.f32 0.0, %v911
      %v913 = vpop.f32.mrf.mxu0
      %914 = vmatprep.mubr.bf16.mxu0 0
      %915 = vmatmul.mubr.bf16.gmra.mxu0 %v830
      %v916 = vpop.f32.mrf.mxu0
      %v917 = vadd.f32 0.0, %v916
      %v918 = vpop.f32.mrf.mxu0
      %v919 = vpop.f32.mrf.mxu0
      %v920 = vadd.f32 0.0, %v919
      %v921 = vpop.f32.mrf.mxu0
      %922 = vmatprep.mubr.bf16.mxu0 0
      %923 = vmatmul.mubr.bf16.gmra.mxu0 %v833
      %v924 = vpop.f32.mrf.mxu0
      %v925 = vadd.f32 0.0, %v924
      %v926 = vpop.f32.mrf.mxu0
      %v927 = vpop.f32.mrf.mxu0
      %v928 = vadd.f32 0.0, %v927
      %v929 = vpop.f32.mrf.mxu0
      %930 = vmatprep.mubr.bf16.mxu0 0
      %931 = vmatmul.mubr.bf16.gmra.mxu0 %v836
      %v932 = vpop.f32.mrf.mxu0
      %v933 = vadd.f32 0.0, %v932
      %v934 = vpop.f32.mrf.mxu0
      %v935 = vpop.f32.mrf.mxu0
      %v936 = vadd.f32 0.0, %v935
      %v937 = vpop.f32.mrf.mxu0
      %938 = vmatprep.mubr.bf16.mxu0 0
      %939 = vmatmul.mubr.bf16.gmra.mxu0 %v839
      %v940 = vpop.f32.mrf.mxu0
      %v941 = vadd.f32 0.0, %v940
      %v942 = vpop.f32.mrf.mxu0
      %v943 = vpop.f32.mrf.mxu0
      %v944 = vadd.f32 0.0, %v943
      %v945 = vpop.f32.mrf.mxu0
      %946 = vmatprep.mubr.bf16.mxu0 0
      %947 = vmatmul.mubr.bf16.gmra.mxu0 %v842
      %v948 = vpop.f32.mrf.mxu0
      %v949 = vadd.f32 0.0, %v948
      %v950 = vpop.f32.mrf.mxu0
      %v951 = vpop.f32.mrf.mxu0
      %v952 = vadd.f32 0.0, %v951
      %v953 = vpop.f32.mrf.mxu0
      %954 = vmatprep.mubr.bf16.mxu0 0
      %955 = vmatmul.mubr.bf16.gmra.mxu0 %v845
      %v956 = vpop.f32.mrf.mxu0
      %v957 = vadd.f32 0.0, %v956
      %v958 = vpop.f32.mrf.mxu0
      %v959 = vpop.f32.mrf.mxu0
      %v960 = vadd.f32 0.0, %v959
      %v961 = vpop.f32.mrf.mxu0
      %962 = vmatprep.mubr.bf16.mxu0 0
      %963 = vmatmul.mubr.bf16.gmra.mxu0 %v848
      %v964 = vpop.f32.mrf.mxu0
      %v965 = vadd.f32 0.0, %v964
      %v966 = vpop.f32.mrf.mxu0
      %v967 = vpop.f32.mrf.mxu0
      %v968 = vadd.f32 0.0, %v967
      %v969 = vpop.f32.mrf.mxu0
      %970 = vdwg.mxu0
      %v971 = vmul.f32 %v909, 0.17677669
      %v972 = vmul.f32 %v912, 0.17677669
      %v973 = vmul.f32 %v917, 0.17677669
      %v974 = vmul.f32 %v920, 0.17677669
      %v975 = vmul.f32 %v925, 0.17677669
      %v976 = vmul.f32 %v928, 0.17677669
      %v977 = vmul.f32 %v933, 0.17677669
      %v978 = vmul.f32 %v936, 0.17677669
      %v979 = vmul.f32 %v941, 0.17677669
      %v980 = vmul.f32 %v944, 0.17677669
      %v981 = vmul.f32 %v949, 0.17677669
      %v982 = vmul.f32 %v952, 0.17677669
      %v983 = vmul.f32 %v957, 0.17677669
      %v984 = vmul.f32 %v960, 0.17677669
      %v985 = vmul.f32 %v965, 0.17677669
      %v986 = vmul.f32 %v968, 0.17677669
      %v987 = vld [vmem:[%s1] sm:$0xff]
      %v988 = vld [vmem:[%s1 + $0x8] sm:$0xff]
      %v989 = vld [vmem:[%s1 + $0x10] sm:$0xff]
      %v990 = vld [vmem:[%s1 + $0x18] sm:$0xff]
      %v991 = vld [vmem:[%s1 + $0x20] sm:$0xff]
      %v992 = vld [vmem:[%s1 + $0x28] sm:$0xff]
      %v993 = vld [vmem:[%s1 + $0x30] sm:$0xff]
      %v994 = vld [vmem:[%s1 + $0x38] sm:$0xff]
      %v995 = vld [vmem:[%s1 + $0x40] sm:$0xff]
      %v996 = vld [vmem:[%s1 + $0x48] sm:$0xff]
      %v997 = vld [vmem:[%s1 + $0x50] sm:$0xff]
      %v998 = vld [vmem:[%s1 + $0x58] sm:$0xff]
      %v999 = vld [vmem:[%s1 + $0x60] sm:$0xff]
      %v1000 = vld [vmem:[%s1 + $0x68] sm:$0xff]
      %v1001 = vld [vmem:[%s1 + $0x70] sm:$0xff]
      %v1002 = vld [vmem:[%s1 + $0x78] sm:$0xff]
      %v1003 = vadd.f32 %v971, %v987
      %v1004 = vadd.f32 %v972, %v988
      %v1005 = vadd.f32 %v973, %v989
      %v1006 = vadd.f32 %v974, %v990
      %v1007 = vadd.f32 %v975, %v991
      %v1008 = vadd.f32 %v976, %v992
      %v1009 = vadd.f32 %v977, %v993
      %v1010 = vadd.f32 %v978, %v994
      %v1011 = vadd.f32 %v979, %v995
      %v1012 = vadd.f32 %v980, %v996
      %v1013 = vadd.f32 %v981, %v997
      %v1014 = vadd.f32 %v982, %v998
      %v1015 = vadd.f32 %v983, %v999
      %v1016 = vadd.f32 %v984, %v1000
      %v1017 = vadd.f32 %v985, %v1001
      %v1018 = vadd.f32 %v986, %v1002
      %1019 = vmax.xlane.f32.xlu0 %v1003
      %v1020 = vpop.xlane.xlu0 %1019
      %1021 = vmax.xlane.f32.xlu0 %v1004
      %v1022 = vpop.xlane.xlu0 %1021
      %1023 = vmax.xlane.f32.xlu0 %v1005
      %v1024 = vpop.xlane.xlu0 %1023
      %1025 = vmax.xlane.f32.xlu0 %v1006
      %v1026 = vpop.xlane.xlu0 %1025
      %1027 = vmax.xlane.f32.xlu0 %v1007
      %v1028 = vpop.xlane.xlu0 %1027
      %1029 = vmax.xlane.f32.xlu0 %v1008
      %v1030 = vpop.xlane.xlu0 %1029
      %1031 = vmax.xlane.f32.xlu0 %v1009
      %v1032 = vpop.xlane.xlu0 %1031
      %1033 = vmax.xlane.f32.xlu0 %v1010
      %v1034 = vpop.xlane.xlu0 %1033
      %1035 = vmax.xlane.f32.xlu0 %v1011
      %v1036 = vpop.xlane.xlu0 %1035
      %1037 = vmax.xlane.f32.xlu0 %v1012
      %v1038 = vpop.xlane.xlu0 %1037
      %1039 = vmax.xlane.f32.xlu0 %v1013
      %v1040 = vpop.xlane.xlu0 %1039
      %1041 = vmax.xlane.f32.xlu0 %v1014
      %v1042 = vpop.xlane.xlu0 %1041
      %1043 = vmax.xlane.f32.xlu0 %v1015
      %v1044 = vpop.xlane.xlu0 %1043
      %1045 = vmax.xlane.f32.xlu0 %v1016
      %v1046 = vpop.xlane.xlu0 %1045
      %1047 = vmax.xlane.f32.xlu0 %v1017
      %v1048 = vpop.xlane.xlu0 %1047
      %1049 = vmax.xlane.f32.xlu0 %v1018
      %v1050 = vpop.xlane.xlu0 %1049
      %v1051 = vsub.f32 %v1003, %v1020
      %v1052 = vsub.f32 %v1004, %v1022
      %v1053 = vsub.f32 %v1005, %v1024
      %v1054 = vsub.f32 %v1006, %v1026
      %v1055 = vsub.f32 %v1007, %v1028
      %v1056 = vsub.f32 %v1008, %v1030
      %v1057 = vsub.f32 %v1009, %v1032
      %v1058 = vsub.f32 %v1010, %v1034
      %v1059 = vsub.f32 %v1011, %v1036
      %v1060 = vsub.f32 %v1012, %v1038
      %v1061 = vsub.f32 %v1013, %v1040
      %v1062 = vsub.f32 %v1014, %v1042
      %v1063 = vsub.f32 %v1015, %v1044
      %v1064 = vsub.f32 %v1016, %v1046
      %v1065 = vsub.f32 %v1017, %v1048
      %v1066 = vsub.f32 %v1018, %v1050
      %v1067 = vpack.c.bf16 %v1052, %v1051
      %v1068 = vpack.c.bf16 %v1054, %v1053
      %v1069 = vpack.c.bf16 %v1056, %v1055
      %v1070 = vpack.c.bf16 %v1058, %v1057
      %v1071 = vpack.c.bf16 %v1060, %v1059
      %v1072 = vpack.c.bf16 %v1062, %v1061
      %v1073 = vpack.c.bf16 %v1064, %v1063
      %v1074 = vpack.c.bf16 %v1066, %v1065
      %v1076 = vmul.bf16 %v1067, 1069105081
      %v1077 = vpow.bf16.pop %v1076
      %v1079 = vmul.bf16 %v1068, 1069105081
      %v1080 = vpow.bf16.pop %v1079
      %v1082 = vmul.bf16 %v1069, 1069105081
      %v1083 = vpow.bf16.pop %v1082
      %v1085 = vmul.bf16 %v1070, 1069105081
      %v1086 = vpow.bf16.pop %v1085
      %v1088 = vmul.bf16 %v1071, 1069105081
      %v1089 = vpow.bf16.pop %v1088
      %v1091 = vmul.bf16 %v1072, 1069105081
      %v1092 = vpow.bf16.pop %v1091
      %v1094 = vmul.bf16 %v1073, 1069105081
      %v1095 = vpow.bf16.pop %v1094
      %v1097 = vmul.bf16 %v1074, 1069105081
      %v1098 = vpow.bf16.pop %v1097
      %v1099 = vunpack.c.l.bf16 %v1077
      %v1100 = vunpack.c.h.bf16 %v1077
      %v1101 = vunpack.c.l.bf16 %v1080
      %v1102 = vunpack.c.h.bf16 %v1080
      %v1103 = vunpack.c.l.bf16 %v1083
      %v1104 = vunpack.c.h.bf16 %v1083
      %v1105 = vunpack.c.l.bf16 %v1086
      %v1106 = vunpack.c.h.bf16 %v1086
      %v1107 = vunpack.c.l.bf16 %v1089
      %v1108 = vunpack.c.h.bf16 %v1089
      %v1109 = vunpack.c.l.bf16 %v1092
      %v1110 = vunpack.c.h.bf16 %v1092
      %v1111 = vunpack.c.l.bf16 %v1095
      %v1112 = vunpack.c.h.bf16 %v1095
      %v1113 = vunpack.c.l.bf16 %v1098
      %v1114 = vunpack.c.h.bf16 %v1098
      %1115 = vadd.xlane.f32.xlu0 %v1099
      %v1116 = vpop.xlane.xlu0 %1115
      %1117 = vadd.xlane.f32.xlu0 %v1100
      %v1118 = vpop.xlane.xlu0 %1117
      %1119 = vadd.xlane.f32.xlu0 %v1101
      %v1120 = vpop.xlane.xlu0 %1119
      %1121 = vadd.xlane.f32.xlu0 %v1102
      %v1122 = vpop.xlane.xlu0 %1121
      %1123 = vadd.xlane.f32.xlu0 %v1103
      %v1124 = vpop.xlane.xlu0 %1123
      %1125 = vadd.xlane.f32.xlu0 %v1104
      %v1126 = vpop.xlane.xlu0 %1125
      %1127 = vadd.xlane.f32.xlu0 %v1105
      %v1128 = vpop.xlane.xlu0 %1127
      %1129 = vadd.xlane.f32.xlu0 %v1106
      %v1130 = vpop.xlane.xlu0 %1129
      %1131 = vadd.xlane.f32.xlu0 %v1107
      %v1132 = vpop.xlane.xlu0 %1131
      %1133 = vadd.xlane.f32.xlu0 %v1108
      %v1134 = vpop.xlane.xlu0 %1133
      %1135 = vadd.xlane.f32.xlu0 %v1109
      %v1136 = vpop.xlane.xlu0 %1135
      %1137 = vadd.xlane.f32.xlu0 %v1110
      %v1138 = vpop.xlane.xlu0 %1137
      %1139 = vadd.xlane.f32.xlu0 %v1111
      %v1140 = vpop.xlane.xlu0 %1139
      %1141 = vadd.xlane.f32.xlu0 %v1112
      %v1142 = vpop.xlane.xlu0 %1141
      %1143 = vadd.xlane.f32.xlu0 %v1113
      %v1144 = vpop.xlane.xlu0 %1143
      %1145 = vadd.xlane.f32.xlu0 %v1114
      %v1146 = vpop.xlane.xlu0 %1145
      %v1147 = vrcp.pop %v1116
      %v1148 = vrcp.pop %v1118
      %v1149 = vrcp.pop %v1120
      %v1150 = vrcp.pop %v1122
      %v1151 = vrcp.pop %v1124
      %v1152 = vrcp.pop %v1126
      %v1153 = vrcp.pop %v1128
      %v1154 = vrcp.pop %v1130
      %v1155 = vrcp.pop %v1132
      %v1156 = vrcp.pop %v1134
      %v1157 = vrcp.pop %v1136
      %v1158 = vrcp.pop %v1138
      %v1159 = vrcp.pop %v1140
      %v1160 = vrcp.pop %v1142
      %v1161 = vrcp.pop %v1144
      %v1162 = vrcp.pop %v1146
      %1163 = vrot.lane.b32.xlu0 %v794, 64
      %v1164 = vpop.permute.xlu0 %1163
      %1165 = vrot.lane.b32.xlu0 %v795, 64
      %v1166 = vpop.permute.xlu0 %1165
      %1167 = vrot.lane.b32.xlu0 %v796, 64
      %v1168 = vpop.permute.xlu0 %1167
      %1169 = vrot.lane.b32.xlu0 %v797, 64
      %v1170 = vpop.permute.xlu0 %1169
      %1171 = vrot.lane.b32.xlu0 %v798, 64
      %v1172 = vpop.permute.xlu0 %1171
      %1173 = vrot.lane.b32.xlu0 %v799, 64
      %v1174 = vpop.permute.xlu0 %1173
      %1175 = vrot.lane.b32.xlu0 %v800, 64
      %v1176 = vpop.permute.xlu0 %1175
      %1177 = vrot.lane.b32.xlu0 %v801, 64
      %v1178 = vpop.permute.xlu0 %1177
      %1187 = vmatprep.subr.bf16.mxu0 0
      %1188 = vmatpush1.bf16.msra.mxu0 %v1178
      %1189 = vmatprep.subr.bf16.mxu0 0
      %1190 = vmatpush1.bf16.msra.mxu0 %v1176
      %1191 = vmatprep.subr.bf16.mxu0 0
      %1192 = vmatpush1.bf16.msra.mxu0 %v1174
      %1193 = vmatprep.subr.bf16.mxu0 0
      %1194 = vmatpush1.bf16.msra.mxu0 %v1172
      %1195 = vmatprep.subr.bf16.mxu0 0
      %1196 = vmatpush1.bf16.msra.mxu0 %v1170
      %1197 = vmatprep.subr.bf16.mxu0 0
      %1198 = vmatpush1.bf16.msra.mxu0 %v1168
      %1199 = vmatprep.subr.bf16.mxu0 0
      %1200 = vmatpush1.bf16.msra.mxu0 %v1166
      %1201 = vmatprep.subr.bf16.mxu0 0
      %1202 = vmatpush1.bf16.msra.mxu0 %v1164
      %1203 = vmatprep.subr.bf16.mxu0 0
      %1204 = vmatpush2.bf16.msra.mxu0 0
      %1205 = vmatprep.subr.bf16.mxu0 0
      %1206 = vmatpush2.bf16.msra.mxu0 0
      %1207 = vmatprep.subr.bf16.mxu0 0
      %1208 = vmatpush2.bf16.msra.mxu0 0
      %1209 = vmatprep.subr.bf16.mxu0 0
      %1210 = vmatpush2.bf16.msra.mxu0 0
      %1211 = vmatprep.subr.bf16.mxu0 0
      %1212 = vmatpush2.bf16.msra.mxu0 0
      %1213 = vmatprep.subr.bf16.mxu0 0
      %1214 = vmatpush2.bf16.msra.mxu0 0
      %1215 = vmatprep.subr.bf16.mxu0 0
      %1216 = vmatpush2.bf16.msra.mxu0 0
      %1217 = vmatprep.subr.bf16.mxu0 0
      %1218 = vmatpush2.bf16.msra.mxu0 0
      %1219 = vmatprep.mubr.bf16.mxu0 0
      %1220 = vmatmul.mubr.bf16.gmra.mxu0 %v1077
      %v1221 = vpop.f32.mrf.mxu0
      %v1222 = vadd.f32 0.0, %v1221
      %v1223 = vpop.f32.mrf.mxu0
      %v1224 = vpop.f32.mrf.mxu0
      %v1225 = vadd.f32 0.0, %v1224
      %v1226 = vpop.f32.mrf.mxu0
      %1227 = vmatprep.mubr.bf16.mxu0 0
      %1228 = vmatmul.mubr.bf16.gmra.mxu0 %v1080
      %v1229 = vpop.f32.mrf.mxu0
      %v1230 = vadd.f32 0.0, %v1229
      %v1231 = vpop.f32.mrf.mxu0
      %v1232 = vpop.f32.mrf.mxu0
      %v1233 = vadd.f32 0.0, %v1232
      %v1234 = vpop.f32.mrf.mxu0
      %1235 = vmatprep.mubr.bf16.mxu0 0
      %1236 = vmatmul.mubr.bf16.gmra.mxu0 %v1083
      %v1237 = vpop.f32.mrf.mxu0
      %v1238 = vadd.f32 0.0, %v1237
      %v1239 = vpop.f32.mrf.mxu0
      %v1240 = vpop.f32.mrf.mxu0
      %v1241 = vadd.f32 0.0, %v1240
      %v1242 = vpop.f32.mrf.mxu0
      %1243 = vmatprep.mubr.bf16.mxu0 0
      %1244 = vmatmul.mubr.bf16.gmra.mxu0 %v1086
      %v1245 = vpop.f32.mrf.mxu0
      %v1246 = vadd.f32 0.0, %v1245
      %v1247 = vpop.f32.mrf.mxu0
      %v1248 = vpop.f32.mrf.mxu0
      %v1249 = vadd.f32 0.0, %v1248
      %v1250 = vpop.f32.mrf.mxu0
      %1251 = vmatprep.mubr.bf16.mxu0 0
      %1252 = vmatmul.mubr.bf16.gmra.mxu0 %v1089
      %v1253 = vpop.f32.mrf.mxu0
      %v1254 = vadd.f32 0.0, %v1253
      %v1255 = vpop.f32.mrf.mxu0
      %v1256 = vpop.f32.mrf.mxu0
      %v1257 = vadd.f32 0.0, %v1256
      %v1258 = vpop.f32.mrf.mxu0
      %1259 = vmatprep.mubr.bf16.mxu0 0
      %1260 = vmatmul.mubr.bf16.gmra.mxu0 %v1092
      %v1261 = vpop.f32.mrf.mxu0
      %v1262 = vadd.f32 0.0, %v1261
      %v1263 = vpop.f32.mrf.mxu0
      %v1264 = vpop.f32.mrf.mxu0
      %v1265 = vadd.f32 0.0, %v1264
      %v1266 = vpop.f32.mrf.mxu0
      %1267 = vmatprep.mubr.bf16.mxu0 0
      %1268 = vmatmul.mubr.bf16.gmra.mxu0 %v1095
      %v1269 = vpop.f32.mrf.mxu0
      %v1270 = vadd.f32 0.0, %v1269
      %v1271 = vpop.f32.mrf.mxu0
      %v1272 = vpop.f32.mrf.mxu0
      %v1273 = vadd.f32 0.0, %v1272
      %v1274 = vpop.f32.mrf.mxu0
      %1275 = vmatprep.mubr.bf16.mxu0 0
      %1276 = vmatmul.mubr.bf16.gmra.mxu0 %v1098
      %v1277 = vpop.f32.mrf.mxu0
      %v1278 = vadd.f32 0.0, %v1277
      %v1279 = vpop.f32.mrf.mxu0
      %v1280 = vpop.f32.mrf.mxu0
      %v1281 = vadd.f32 0.0, %v1280
      %v1282 = vpop.f32.mrf.mxu0
      %1283 = vdwg.mxu0
      %v1284 = vmul.f32 %v1222, %v1147
      %v1285 = vmul.f32 %v1225, %v1148
      %v1286 = vmul.f32 %v1230, %v1149
      %v1287 = vmul.f32 %v1233, %v1150
      %v1288 = vmul.f32 %v1238, %v1151
      %v1289 = vmul.f32 %v1241, %v1152
      %v1290 = vmul.f32 %v1246, %v1153
      %v1291 = vmul.f32 %v1249, %v1154
      %v1292 = vmul.f32 %v1254, %v1155
      %v1293 = vmul.f32 %v1257, %v1156
      %v1294 = vmul.f32 %v1262, %v1157
      %v1295 = vmul.f32 %v1265, %v1158
      %v1296 = vmul.f32 %v1270, %v1159
      %v1297 = vmul.f32 %v1273, %v1160
      %v1298 = vmul.f32 %v1278, %v1161
      %v1299 = vmul.f32 %v1281, %v1162
      %v1300 = vadd.f32 %v625, %v1284
      %v1301 = vadd.f32 %v626, %v1285
      %v1302 = vadd.f32 %v627, %v1286
      %v1303 = vadd.f32 %v628, %v1287
      %v1304 = vadd.f32 %v629, %v1288
      %v1305 = vadd.f32 %v630, %v1289
      %v1306 = vadd.f32 %v631, %v1290
      %v1307 = vadd.f32 %v632, %v1291
      %v1308 = vadd.f32 %v633, %v1292
      %v1309 = vadd.f32 %v634, %v1293
      %v1310 = vadd.f32 %v635, %v1294
      %v1311 = vadd.f32 %v636, %v1295
      %v1312 = vadd.f32 %v637, %v1296
      %v1313 = vadd.f32 %v638, %v1297
      %v1314 = vadd.f32 %v639, %v1298
      %v1315 = vadd.f32 %v640, %v1299
      %v1316 = vld [vmem:[%s571] sm:$0x1]
      %v1317 = vld [vmem:[%s574] sm:$0x1]
      %v1318 = vsel %vm672, %v1300, 0.0
      %1319 = vadd.xlane.f32.xlu0 %v1318
      %v1320 = vpop.xlane.xlu0 %1319
      %v1321 = vsel %vm672, %v1301, 0.0
      %1322 = vadd.xlane.f32.xlu0 %v1321
      %v1323 = vpop.xlane.xlu0 %1322
      %v1324 = vsel %vm672, %v1302, 0.0
      %1325 = vadd.xlane.f32.xlu0 %v1324
      %v1326 = vpop.xlane.xlu0 %1325
      %v1327 = vsel %vm672, %v1303, 0.0
      %1328 = vadd.xlane.f32.xlu0 %v1327
      %v1329 = vpop.xlane.xlu0 %1328
      %v1330 = vsel %vm672, %v1304, 0.0
      %1331 = vadd.xlane.f32.xlu0 %v1330
      %v1332 = vpop.xlane.xlu0 %1331
      %v1333 = vsel %vm672, %v1305, 0.0
      %1334 = vadd.xlane.f32.xlu0 %v1333
      %v1335 = vpop.xlane.xlu0 %1334
      %v1336 = vsel %vm672, %v1306, 0.0
      %1337 = vadd.xlane.f32.xlu0 %v1336
      %v1338 = vpop.xlane.xlu0 %1337
      %v1339 = vsel %vm672, %v1307, 0.0
      %1340 = vadd.xlane.f32.xlu0 %v1339
      %v1341 = vpop.xlane.xlu0 %1340
      %v1342 = vsel %vm672, %v1308, 0.0
      %1343 = vadd.xlane.f32.xlu0 %v1342
      %v1344 = vpop.xlane.xlu0 %1343
      %v1345 = vsel %vm672, %v1309, 0.0
      %1346 = vadd.xlane.f32.xlu0 %v1345
      %v1347 = vpop.xlane.xlu0 %1346
      %v1348 = vsel %vm672, %v1310, 0.0
      %1349 = vadd.xlane.f32.xlu0 %v1348
      %v1350 = vpop.xlane.xlu0 %1349
      %v1351 = vsel %vm672, %v1311, 0.0
      %1352 = vadd.xlane.f32.xlu0 %v1351
      %v1353 = vpop.xlane.xlu0 %1352
      %v1354 = vsel %vm672, %v1312, 0.0
      %1355 = vadd.xlane.f32.xlu0 %v1354
      %v1356 = vpop.xlane.xlu0 %1355
      %v1357 = vsel %vm672, %v1313, 0.0
      %1358 = vadd.xlane.f32.xlu0 %v1357
      %v1359 = vpop.xlane.xlu0 %1358
      %v1360 = vsel %vm672, %v1314, 0.0
      %1361 = vadd.xlane.f32.xlu0 %v1360
      %v1362 = vpop.xlane.xlu0 %1361
      %v1363 = vsel %vm672, %v1315, 0.0
      %1364 = vadd.xlane.f32.xlu0 %v1363
      %v1365 = vpop.xlane.xlu0 %1364
      %v1366 = vrcp.pop 32.0
      %v1367 = vmul.f32 %v1320, %v1366
      %v1368 = vmul.f32 %v1323, %v1366
      %v1369 = vmul.f32 %v1326, %v1366
      %v1370 = vmul.f32 %v1329, %v1366
      %v1371 = vmul.f32 %v1332, %v1366
      %v1372 = vmul.f32 %v1335, %v1366
      %v1373 = vmul.f32 %v1338, %v1366
      %v1374 = vmul.f32 %v1341, %v1366
      %v1375 = vmul.f32 %v1344, %v1366
      %v1376 = vmul.f32 %v1347, %v1366
      %v1377 = vmul.f32 %v1350, %v1366
      %v1378 = vmul.f32 %v1353, %v1366
      %v1379 = vmul.f32 %v1356, %v1366
      %v1380 = vmul.f32 %v1359, %v1366
      %v1381 = vmul.f32 %v1362, %v1366
      %v1382 = vmul.f32 %v1365, %v1366
      %v1383 = vsub.f32 %v1300, %v1367
      %v1384 = vsub.f32 %v1301, %v1368
      %v1385 = vsub.f32 %v1302, %v1369
      %v1386 = vsub.f32 %v1303, %v1370
      %v1387 = vsub.f32 %v1304, %v1371
      %v1388 = vsub.f32 %v1305, %v1372
      %v1389 = vsub.f32 %v1306, %v1373
      %v1390 = vsub.f32 %v1307, %v1374
      %v1391 = vsub.f32 %v1308, %v1375
      %v1392 = vsub.f32 %v1309, %v1376
      %v1393 = vsub.f32 %v1310, %v1377
      %v1394 = vsub.f32 %v1311, %v1378
      %v1395 = vsub.f32 %v1312, %v1379
      %v1396 = vsub.f32 %v1313, %v1380
      %v1397 = vsub.f32 %v1314, %v1381
      %v1398 = vsub.f32 %v1315, %v1382
      %v1399 = vmul.f32 %v1383, %v1383
      %v1400 = vmul.f32 %v1384, %v1384
      %v1401 = vmul.f32 %v1385, %v1385
      %v1402 = vmul.f32 %v1386, %v1386
      %v1403 = vmul.f32 %v1387, %v1387
      %v1404 = vmul.f32 %v1388, %v1388
      %v1405 = vmul.f32 %v1389, %v1389
      %v1406 = vmul.f32 %v1390, %v1390
      %v1407 = vmul.f32 %v1391, %v1391
      %v1408 = vmul.f32 %v1392, %v1392
      %v1409 = vmul.f32 %v1393, %v1393
      %v1410 = vmul.f32 %v1394, %v1394
      %v1411 = vmul.f32 %v1395, %v1395
      %v1412 = vmul.f32 %v1396, %v1396
      %v1413 = vmul.f32 %v1397, %v1397
      %v1414 = vmul.f32 %v1398, %v1398
      %v1415 = vsel %vm672, %v1399, 0.0
      %1416 = vadd.xlane.f32.xlu0 %v1415
      %v1417 = vpop.xlane.xlu0 %1416
      %v1418 = vsel %vm672, %v1400, 0.0
      %1419 = vadd.xlane.f32.xlu0 %v1418
      %v1420 = vpop.xlane.xlu0 %1419
      %v1421 = vsel %vm672, %v1401, 0.0
      %1422 = vadd.xlane.f32.xlu0 %v1421
      %v1423 = vpop.xlane.xlu0 %1422
      %v1424 = vsel %vm672, %v1402, 0.0
      %1425 = vadd.xlane.f32.xlu0 %v1424
      %v1426 = vpop.xlane.xlu0 %1425
      %v1427 = vsel %vm672, %v1403, 0.0
      %1428 = vadd.xlane.f32.xlu0 %v1427
      %v1429 = vpop.xlane.xlu0 %1428
      %v1430 = vsel %vm672, %v1404, 0.0
      %1431 = vadd.xlane.f32.xlu0 %v1430
      %v1432 = vpop.xlane.xlu0 %1431
      %v1433 = vsel %vm672, %v1405, 0.0
      %1434 = vadd.xlane.f32.xlu0 %v1433
      %v1435 = vpop.xlane.xlu0 %1434
      %v1436 = vsel %vm672, %v1406, 0.0
      %1437 = vadd.xlane.f32.xlu0 %v1436
      %v1438 = vpop.xlane.xlu0 %1437
      %v1439 = vsel %vm672, %v1407, 0.0
      %1440 = vadd.xlane.f32.xlu0 %v1439
      %v1441 = vpop.xlane.xlu0 %1440
      %v1442 = vsel %vm672, %v1408, 0.0
      %1443 = vadd.xlane.f32.xlu0 %v1442
      %v1444 = vpop.xlane.xlu0 %1443
      %v1445 = vsel %vm672, %v1409, 0.0
      %1446 = vadd.xlane.f32.xlu0 %v1445
      %v1447 = vpop.xlane.xlu0 %1446
      %v1448 = vsel %vm672, %v1410, 0.0
      %1449 = vadd.xlane.f32.xlu0 %v1448
      %v1450 = vpop.xlane.xlu0 %1449
      %v1451 = vsel %vm672, %v1411, 0.0
      %1452 = vadd.xlane.f32.xlu0 %v1451
      %v1453 = vpop.xlane.xlu0 %1452
      %v1454 = vsel %vm672, %v1412, 0.0
      %1455 = vadd.xlane.f32.xlu0 %v1454
      %v1456 = vpop.xlane.xlu0 %1455
      %v1457 = vsel %vm672, %v1413, 0.0
      %1458 = vadd.xlane.f32.xlu0 %v1457
      %v1459 = vpop.xlane.xlu0 %1458
      %v1460 = vsel %vm672, %v1414, 0.0
      %1461 = vadd.xlane.f32.xlu0 %v1460
      %v1462 = vpop.xlane.xlu0 %1461
      %v1463 = vmul.f32 %v1417, %v1366
      %v1464 = vmul.f32 %v1420, %v1366
      %v1465 = vmul.f32 %v1423, %v1366
      %v1466 = vmul.f32 %v1426, %v1366
      %v1467 = vmul.f32 %v1429, %v1366
      %v1468 = vmul.f32 %v1432, %v1366
      %v1469 = vmul.f32 %v1435, %v1366
      %v1470 = vmul.f32 %v1438, %v1366
      %v1471 = vmul.f32 %v1441, %v1366
      %v1472 = vmul.f32 %v1444, %v1366
      %v1473 = vmul.f32 %v1447, %v1366
      %v1474 = vmul.f32 %v1450, %v1366
      %v1475 = vmul.f32 %v1453, %v1366
      %v1476 = vmul.f32 %v1456, %v1366
      %v1477 = vmul.f32 %v1459, %v1366
      %v1478 = vmul.f32 %v1462, %v1366
      %v1479 = vadd.f32 %v1463, 1e-05
      %v1480 = vadd.f32 %v1464, 1e-05
      %v1481 = vadd.f32 %v1465, 1e-05
      %v1482 = vadd.f32 %v1466, 1e-05
      %v1483 = vadd.f32 %v1467, 1e-05
      %v1484 = vadd.f32 %v1468, 1e-05
      %v1485 = vadd.f32 %v1469, 1e-05
      %v1486 = vadd.f32 %v1470, 1e-05
      %v1487 = vadd.f32 %v1471, 1e-05
      %v1488 = vadd.f32 %v1472, 1e-05
      %v1489 = vadd.f32 %v1473, 1e-05
      %v1490 = vadd.f32 %v1474, 1e-05
      %v1491 = vadd.f32 %v1475, 1e-05
      %v1492 = vadd.f32 %v1476, 1e-05
      %v1493 = vadd.f32 %v1477, 1e-05
      %v1494 = vadd.f32 %v1478, 1e-05
      %v1495 = vrsqrt.pop %v1479
      %v1496 = vrsqrt.pop %v1480
      %v1497 = vrsqrt.pop %v1481
      %v1498 = vrsqrt.pop %v1482
      %v1499 = vrsqrt.pop %v1483
      %v1500 = vrsqrt.pop %v1484
      %v1501 = vrsqrt.pop %v1485
      %v1502 = vrsqrt.pop %v1486
      %v1503 = vrsqrt.pop %v1487
      %v1504 = vrsqrt.pop %v1488
      %v1505 = vrsqrt.pop %v1489
      %v1506 = vrsqrt.pop %v1490
      %v1507 = vrsqrt.pop %v1491
      %v1508 = vrsqrt.pop %v1492
      %v1509 = vrsqrt.pop %v1493
      %v1510 = vrsqrt.pop %v1494
      %v1511 = vmul.f32 %v1383, %v1495
      %v1512 = vmul.f32 %v1384, %v1496
      %v1513 = vmul.f32 %v1385, %v1497
      %v1514 = vmul.f32 %v1386, %v1498
      %v1515 = vmul.f32 %v1387, %v1499
      %v1516 = vmul.f32 %v1388, %v1500
      %v1517 = vmul.f32 %v1389, %v1501
      %v1518 = vmul.f32 %v1390, %v1502
      %v1519 = vmul.f32 %v1391, %v1503
      %v1520 = vmul.f32 %v1392, %v1504
      %v1521 = vmul.f32 %v1393, %v1505
      %v1522 = vmul.f32 %v1394, %v1506
      %v1523 = vmul.f32 %v1395, %v1507
      %v1524 = vmul.f32 %v1396, %v1508
      %v1525 = vmul.f32 %v1397, %v1509
      %v1526 = vmul.f32 %v1398, %v1510
      %v1528 = vlaneseq
      %v1529 = vshrl.u32 %v1528, 7
      %v1530 = vsub.s32 0, %v1529
      %v1531 = vrot.slane %v1316, %v1530
      %v1533 = vmul.f32 %v1511, %v1531
      %v1534 = vmul.f32 %v1512, %v1531
      %v1535 = vmul.f32 %v1513, %v1531
      %v1536 = vmul.f32 %v1514, %v1531
      %v1537 = vmul.f32 %v1515, %v1531
      %v1538 = vmul.f32 %v1516, %v1531
      %v1539 = vmul.f32 %v1517, %v1531
      %v1540 = vmul.f32 %v1518, %v1531
      %v1541 = vmul.f32 %v1519, %v1531
      %v1542 = vmul.f32 %v1520, %v1531
      %v1543 = vmul.f32 %v1521, %v1531
      %v1544 = vmul.f32 %v1522, %v1531
      %v1545 = vmul.f32 %v1523, %v1531
      %v1546 = vmul.f32 %v1524, %v1531
      %v1547 = vmul.f32 %v1525, %v1531
      %v1548 = vmul.f32 %v1526, %v1531
      %v1550 = vlaneseq
      %v1551 = vshrl.u32 %v1550, 7
      %v1552 = vsub.s32 0, %v1551
      %v1553 = vrot.slane %v1317, %v1552
      %v1555 = vadd.f32 %v1533, %v1553
      %v1556 = vadd.f32 %v1534, %v1553
      %v1557 = vadd.f32 %v1535, %v1553
      %v1558 = vadd.f32 %v1536, %v1553
      %v1559 = vadd.f32 %v1537, %v1553
      %v1560 = vadd.f32 %v1538, %v1553
      %v1561 = vadd.f32 %v1539, %v1553
      %v1562 = vadd.f32 %v1540, %v1553
      %v1563 = vadd.f32 %v1541, %v1553
      %v1564 = vadd.f32 %v1542, %v1553
      %v1565 = vadd.f32 %v1543, %v1553
      %v1566 = vadd.f32 %v1544, %v1553
      %v1567 = vadd.f32 %v1545, %v1553
      %v1568 = vadd.f32 %v1546, %v1553
      %v1569 = vadd.f32 %v1547, %v1553
      %v1570 = vadd.f32 %v1548, %v1553
      %v1571 = vpack.c.bf16 %v1556, %v1555
      %v1572 = vpack.c.bf16 %v1558, %v1557
      %v1573 = vpack.c.bf16 %v1560, %v1559
      %v1574 = vpack.c.bf16 %v1562, %v1561
      %v1575 = vpack.c.bf16 %v1564, %v1563
      %v1576 = vpack.c.bf16 %v1566, %v1565
      %v1577 = vpack.c.bf16 %v1568, %v1567
      %v1578 = vpack.c.bf16 %v1570, %v1569
      %v1579 = vld [vmem:[%s557] sm:$0xf]
      %v1580 = vld [vmem:[%s557 + $0x4] sm:$0xf]
      %v1581 = vld [vmem:[%s557 + $0x8] sm:$0xf]
      %v1582 = vld [vmem:[%s557 + $0xc] sm:$0xf]
      %v1583 = vld [vmem:[%s560] sm:$0x1]
      %v1585 = vlaneseq
      %v1586 = vshrl.u32 %v1585, 7
      %v1587 = vsub.s32 0, %v1586
      %v1588 = vrot.slane %v1583, %v1587
      %v1594 = vunpack.c.l.b16 %v1579
      %v1595 = vunpack.c.l.b16 %v1580
      %v1596 = vunpack.c.l.b16 %v1581
      %v1597 = vunpack.c.l.b16 %v1582
      %v1598 = vpack.c.b16 %v1595, %v1594
      %v1599 = vpack.c.b16 %v1597, %v1596
      %v1603 = vsel %vm672, %v1571, 0
      %v1606 = vsel %vm672, %v1572, 0
      %v1609 = vsel %vm672, %v1573, 0
      %v1612 = vsel %vm672, %v1574, 0
      %v1615 = vsel %vm672, %v1575, 0
      %v1618 = vsel %vm672, %v1576, 0
      %v1621 = vsel %vm672, %v1577, 0
      %v1624 = vsel %vm672, %v1578, 0
      %1626 = vmatprep.subr.bf16.mxu0 0
      %1627 = vmatpush1.bf16.msra.mxu0 0
      %1628 = vmatprep.subr.bf16.mxu0 0
      %1629 = vmatpush1.bf16.msra.mxu0 0
      %1630 = vmatprep.subr.bf16.mxu0 0
      %1631 = vmatpush1.bf16.msra.mxu0 0
      %1632 = vmatprep.subr.bf16.mxu0 0
      %1633 = vmatpush1.bf16.msra.mxu0 0
      %1634 = vmatprep.subr.bf16.mxu0 0
      %1635 = vmatpush1.bf16.msra.mxu0 0
      %1636 = vmatprep.subr.bf16.mxu0 0
      %1637 = vmatpush1.bf16.msra.mxu0 0
      %1638 = vmatprep.subr.bf16.mxu0 0
      %1639 = vmatpush1.bf16.msra.mxu0 %v1599
      %1640 = vmatprep.subr.bf16.mxu0 0
      %1641 = vmatpush1.bf16.msra.mxu0 %v1598
      %1642 = vmatprep.subr.bf16.mxu0 0
      %1643 = vmatpush2.bf16.msra.mxu0 0
      %1644 = vmatprep.subr.bf16.mxu0 0
      %1645 = vmatpush2.bf16.msra.mxu0 0
      %1646 = vmatprep.subr.bf16.mxu0 0
      %1647 = vmatpush2.bf16.msra.mxu0 0
      %1648 = vmatprep.subr.bf16.mxu0 0
      %1649 = vmatpush2.bf16.msra.mxu0 0
      %1650 = vmatprep.subr.bf16.mxu0 0
      %1651 = vmatpush2.bf16.msra.mxu0 0
      %1652 = vmatprep.subr.bf16.mxu0 0
      %1653 = vmatpush2.bf16.msra.mxu0 0
      %1654 = vmatprep.subr.bf16.mxu0 0
      %1655 = vmatpush2.bf16.msra.mxu0 0
      %1656 = vmatprep.subr.bf16.mxu0 0
      %1657 = vmatpush2.bf16.msra.mxu0 0
      %1658 = vmatprep.mubr.bf16.mxu0 0
      %1659 = vmatmul.mubr.bf16.gmra.mxu0 %v1603
      %v1660 = vpop.f32.mrf.mxu0
      %v1661 = vadd.f32 %v1588, %v1660
      %v1662 = vpop.f32.mrf.mxu0
      %v1663 = vpop.f32.mrf.mxu0
      %v1664 = vadd.f32 %v1588, %v1663
      %v1665 = vpop.f32.mrf.mxu0
      %1666 = vmatprep.mubr.bf16.mxu0 0
      %1667 = vmatmul.mubr.bf16.gmra.mxu0 %v1606
      %v1668 = vpop.f32.mrf.mxu0
      %v1669 = vadd.f32 %v1588, %v1668
      %v1670 = vpop.f32.mrf.mxu0
      %v1671 = vpop.f32.mrf.mxu0
      %v1672 = vadd.f32 %v1588, %v1671
      %v1673 = vpop.f32.mrf.mxu0
      %1674 = vmatprep.mubr.bf16.mxu0 0
      %1675 = vmatmul.mubr.bf16.gmra.mxu0 %v1609
      %v1676 = vpop.f32.mrf.mxu0
      %v1677 = vadd.f32 %v1588, %v1676
      %v1678 = vpop.f32.mrf.mxu0
      %v1679 = vpop.f32.mrf.mxu0
      %v1680 = vadd.f32 %v1588, %v1679
      %v1681 = vpop.f32.mrf.mxu0
      %1682 = vmatprep.mubr.bf16.mxu0 0
      %1683 = vmatmul.mubr.bf16.gmra.mxu0 %v1612
      %v1684 = vpop.f32.mrf.mxu0
      %v1685 = vadd.f32 %v1588, %v1684
      %v1686 = vpop.f32.mrf.mxu0
      %v1687 = vpop.f32.mrf.mxu0
      %v1688 = vadd.f32 %v1588, %v1687
      %v1689 = vpop.f32.mrf.mxu0
      %1690 = vmatprep.mubr.bf16.mxu0 0
      %1691 = vmatmul.mubr.bf16.gmra.mxu0 %v1615
      %v1692 = vpop.f32.mrf.mxu0
      %v1693 = vadd.f32 %v1588, %v1692
      %v1694 = vpop.f32.mrf.mxu0
      %v1695 = vpop.f32.mrf.mxu0
      %v1696 = vadd.f32 %v1588, %v1695
      %v1697 = vpop.f32.mrf.mxu0
      %1698 = vmatprep.mubr.bf16.mxu0 0
      %1699 = vmatmul.mubr.bf16.gmra.mxu0 %v1618
      %v1700 = vpop.f32.mrf.mxu0
      %v1701 = vadd.f32 %v1588, %v1700
      %v1702 = vpop.f32.mrf.mxu0
      %v1703 = vpop.f32.mrf.mxu0
      %v1704 = vadd.f32 %v1588, %v1703
      %v1705 = vpop.f32.mrf.mxu0
      %1706 = vmatprep.mubr.bf16.mxu0 0
      %1707 = vmatmul.mubr.bf16.gmra.mxu0 %v1621
      %v1708 = vpop.f32.mrf.mxu0
      %v1709 = vadd.f32 %v1588, %v1708
      %v1710 = vpop.f32.mrf.mxu0
      %v1711 = vpop.f32.mrf.mxu0
      %v1712 = vadd.f32 %v1588, %v1711
      %v1713 = vpop.f32.mrf.mxu0
      %1714 = vmatprep.mubr.bf16.mxu0 0
      %1715 = vmatmul.mubr.bf16.gmra.mxu0 %v1624
      %v1716 = vpop.f32.mrf.mxu0
      %v1717 = vadd.f32 %v1588, %v1716
      %v1718 = vpop.f32.mrf.mxu0
      %v1719 = vpop.f32.mrf.mxu0
      %v1720 = vadd.f32 %v1588, %v1719
      %v1721 = vpop.f32.mrf.mxu0
      %1722 = vdwg.mxu0
      %v1723 = vmax.f32 %v1661, 0.0
      %v1724 = vmax.f32 %v1664, 0.0
      %v1725 = vmax.f32 %v1669, 0.0
      %v1726 = vmax.f32 %v1672, 0.0
      %v1727 = vmax.f32 %v1677, 0.0
      %v1728 = vmax.f32 %v1680, 0.0
      %v1729 = vmax.f32 %v1685, 0.0
      %v1730 = vmax.f32 %v1688, 0.0
      %v1731 = vmax.f32 %v1693, 0.0
      %v1732 = vmax.f32 %v1696, 0.0
      %v1733 = vmax.f32 %v1701, 0.0
      %v1734 = vmax.f32 %v1704, 0.0
      %v1735 = vmax.f32 %v1709, 0.0
      %v1736 = vmax.f32 %v1712, 0.0
      %v1737 = vmax.f32 %v1717, 0.0
      %v1738 = vmax.f32 %v1720, 0.0
      %v1739 = vpack.c.bf16 %v1724, %v1723
      %v1740 = vpack.c.bf16 %v1726, %v1725
      %v1741 = vpack.c.bf16 %v1728, %v1727
      %v1742 = vpack.c.bf16 %v1730, %v1729
      %v1743 = vpack.c.bf16 %v1732, %v1731
      %v1744 = vpack.c.bf16 %v1734, %v1733
      %v1745 = vpack.c.bf16 %v1736, %v1735
      %v1746 = vpack.c.bf16 %v1738, %v1737
      %v1747 = vld [vmem:[%s565] sm:$0xf]
      %v1748 = vld [vmem:[%s565 + $0x4] sm:$0xf]
      %v1749 = vld [vmem:[%s565 + $0x8] sm:$0xf]
      %v1750 = vld [vmem:[%s565 + $0xc] sm:$0xf]
      %v1751 = vld [vmem:[%s565 + $0x10] sm:$0xf]
      %v1752 = vld [vmem:[%s565 + $0x14] sm:$0xf]
      %v1753 = vld [vmem:[%s565 + $0x18] sm:$0xf]
      %v1754 = vld [vmem:[%s565 + $0x1c] sm:$0xf]
      %v1755 = vld [vmem:[%s565 + $0x20] sm:$0xf]
      %v1756 = vld [vmem:[%s565 + $0x24] sm:$0xf]
      %v1757 = vld [vmem:[%s565 + $0x28] sm:$0xf]
      %v1758 = vld [vmem:[%s565 + $0x2c] sm:$0xf]
      %v1759 = vld [vmem:[%s565 + $0x30] sm:$0xf]
      %v1760 = vld [vmem:[%s565 + $0x34] sm:$0xf]
      %v1761 = vld [vmem:[%s565 + $0x38] sm:$0xf]
      %v1762 = vld [vmem:[%s565 + $0x3c] sm:$0xf]
      %v1763 = vld [vmem:[%s568] sm:$0x1]
      %v1765 = vlaneseq
      %v1766 = vshrl.u32 %v1765, 7
      %v1767 = vsub.s32 0, %v1766
      %v1768 = vrot.slane %v1763, %v1767
      %v1786 = vunpack.c.l.b16 %v1747
      %v1787 = vunpack.c.l.b16 %v1748
      %v1788 = vunpack.c.l.b16 %v1749
      %v1789 = vunpack.c.l.b16 %v1750
      %v1790 = vunpack.c.l.b16 %v1751
      %v1791 = vunpack.c.l.b16 %v1752
      %v1792 = vunpack.c.l.b16 %v1753
      %v1793 = vunpack.c.l.b16 %v1754
      %v1794 = vunpack.c.l.b16 %v1755
      %v1795 = vunpack.c.l.b16 %v1756
      %v1796 = vunpack.c.l.b16 %v1757
      %v1797 = vunpack.c.l.b16 %v1758
      %v1798 = vunpack.c.l.b16 %v1759
      %v1799 = vunpack.c.l.b16 %v1760
      %v1800 = vunpack.c.l.b16 %v1761
      %v1801 = vunpack.c.l.b16 %v1762
      %v1802 = vpack.c.b16 %v1787, %v1786
      %v1803 = vpack.c.b16 %v1789, %v1788
      %v1804 = vpack.c.b16 %v1791, %v1790
      %v1805 = vpack.c.b16 %v1793, %v1792
      %v1806 = vpack.c.b16 %v1795, %v1794
      %v1807 = vpack.c.b16 %v1797, %v1796
      %v1808 = vpack.c.b16 %v1799, %v1798
      %v1809 = vpack.c.b16 %v1801, %v1800
      %1818 = vmatprep.subr.bf16.mxu0 0
      %1819 = vmatpush1.bf16.msra.mxu0 %v1809
      %1820 = vmatprep.subr.bf16.mxu0 0
      %1821 = vmatpush1.bf16.msra.mxu0 %v1808
      %1822 = vmatprep.subr.bf16.mxu0 0
      %1823 = vmatpush1.bf16.msra.mxu0 %v1807
      %1824 = vmatprep.subr.bf16.mxu0 0
      %1825 = vmatpush1.bf16.msra.mxu0 %v1806
      %1826 = vmatprep.subr.bf16.mxu0 0
      %1827 = vmatpush1.bf16.msra.mxu0 %v1805
      %1828 = vmatprep.subr.bf16.mxu0 0
      %1829 = vmatpush1.bf16.msra.mxu0 %v1804
      %1830 = vmatprep.subr.bf16.mxu0 0
      %1831 = vmatpush1.bf16.msra.mxu0 %v1803
      %1832 = vmatprep.subr.bf16.mxu0 0
      %1833 = vmatpush1.bf16.msra.mxu0 %v1802
      %1834 = vmatprep.subr.bf16.mxu0 0
      %1835 = vmatpush2.bf16.msra.mxu0 0
      %1836 = vmatprep.subr.bf16.mxu0 0
      %1837 = vmatpush2.bf16.msra.mxu0 0
      %1838 = vmatprep.subr.bf16.mxu0 0
      %1839 = vmatpush2.bf16.msra.mxu0 0
      %1840 = vmatprep.subr.bf16.mxu0 0
      %1841 = vmatpush2.bf16.msra.mxu0 0
      %1842 = vmatprep.subr.bf16.mxu0 0
      %1843 = vmatpush2.bf16.msra.mxu0 0
      %1844 = vmatprep.subr.bf16.mxu0 0
      %1845 = vmatpush2.bf16.msra.mxu0 0
      %1846 = vmatprep.subr.bf16.mxu0 0
      %1847 = vmatpush2.bf16.msra.mxu0 0
      %1848 = vmatprep.subr.bf16.mxu0 0
      %1849 = vmatpush2.bf16.msra.mxu0 0
      %1850 = vmatprep.mubr.bf16.mxu0 0
      %1851 = vmatmul.mubr.bf16.gmra.mxu0 %v1739
      %v1852 = vpop.f32.mrf.mxu0
      %v1853 = vadd.f32 %v1768, %v1852
      %v1854 = vpop.f32.mrf.mxu0
      %v1855 = vpop.f32.mrf.mxu0
      %v1856 = vadd.f32 %v1768, %v1855
      %v1857 = vpop.f32.mrf.mxu0
      %1858 = vmatprep.mubr.bf16.mxu0 0
      %1859 = vmatmul.mubr.bf16.gmra.mxu0 %v1740
      %v1860 = vpop.f32.mrf.mxu0
      %v1861 = vadd.f32 %v1768, %v1860
      %v1862 = vpop.f32.mrf.mxu0
      %v1863 = vpop.f32.mrf.mxu0
      %v1864 = vadd.f32 %v1768, %v1863
      %v1865 = vpop.f32.mrf.mxu0
      %1866 = vmatprep.mubr.bf16.mxu0 0
      %1867 = vmatmul.mubr.bf16.gmra.mxu0 %v1741
      %v1868 = vpop.f32.mrf.mxu0
      %v1869 = vadd.f32 %v1768, %v1868
      %v1870 = vpop.f32.mrf.mxu0
      %v1871 = vpop.f32.mrf.mxu0
      %v1872 = vadd.f32 %v1768, %v1871
      %v1873 = vpop.f32.mrf.mxu0
      %1874 = vmatprep.mubr.bf16.mxu0 0
      %1875 = vmatmul.mubr.bf16.gmra.mxu0 %v1742
      %v1876 = vpop.f32.mrf.mxu0
      %v1877 = vadd.f32 %v1768, %v1876
      %v1878 = vpop.f32.mrf.mxu0
      %v1879 = vpop.f32.mrf.mxu0
      %v1880 = vadd.f32 %v1768, %v1879
      %v1881 = vpop.f32.mrf.mxu0
      %1882 = vmatprep.mubr.bf16.mxu0 0
      %1883 = vmatmul.mubr.bf16.gmra.mxu0 %v1743
      %v1884 = vpop.f32.mrf.mxu0
      %v1885 = vadd.f32 %v1768, %v1884
      %v1886 = vpop.f32.mrf.mxu0
      %v1887 = vpop.f32.mrf.mxu0
      %v1888 = vadd.f32 %v1768, %v1887
      %v1889 = vpop.f32.mrf.mxu0
      %1890 = vmatprep.mubr.bf16.mxu0 0
      %1891 = vmatmul.mubr.bf16.gmra.mxu0 %v1744
      %v1892 = vpop.f32.mrf.mxu0
      %v1893 = vadd.f32 %v1768, %v1892
      %v1894 = vpop.f32.mrf.mxu0
      %v1895 = vpop.f32.mrf.mxu0
      %v1896 = vadd.f32 %v1768, %v1895
      %v1897 = vpop.f32.mrf.mxu0
      %1898 = vmatprep.mubr.bf16.mxu0 0
      %1899 = vmatmul.mubr.bf16.gmra.mxu0 %v1745
      %v1900 = vpop.f32.mrf.mxu0
      %v1901 = vadd.f32 %v1768, %v1900
      %v1902 = vpop.f32.mrf.mxu0
      %v1903 = vpop.f32.mrf.mxu0
      %v1904 = vadd.f32 %v1768, %v1903
      %v1905 = vpop.f32.mrf.mxu0
      %1906 = vmatprep.mubr.bf16.mxu0 0
      %1907 = vmatmul.mubr.bf16.gmra.mxu0 %v1746
      %v1908 = vpop.f32.mrf.mxu0
      %v1909 = vadd.f32 %v1768, %v1908
      %v1910 = vpop.f32.mrf.mxu0
      %v1911 = vpop.f32.mrf.mxu0
      %v1912 = vadd.f32 %v1768, %v1911
      %v1913 = vpop.f32.mrf.mxu0
      %1914 = vdwg.mxu0
      %v1915 = vadd.f32 %v1555, %v1853
      %v1916 = vadd.f32 %v1556, %v1856
      %v1917 = vadd.f32 %v1557, %v1861
      %v1918 = vadd.f32 %v1558, %v1864
      %v1919 = vadd.f32 %v1559, %v1869
      %v1920 = vadd.f32 %v1560, %v1872
      %v1921 = vadd.f32 %v1561, %v1877
      %v1922 = vadd.f32 %v1562, %v1880
      %v1923 = vadd.f32 %v1563, %v1885
      %v1924 = vadd.f32 %v1564, %v1888
      %v1925 = vadd.f32 %v1565, %v1893
      %v1926 = vadd.f32 %v1566, %v1896
      %v1927 = vadd.f32 %v1567, %v1901
      %v1928 = vadd.f32 %v1568, %v1904
      %v1929 = vadd.f32 %v1569, %v1909
      %v1930 = vadd.f32 %v1570, %v1912
      %v1931 = vld [vmem:[%s577] sm:$0x1]
      %v1932 = vld [vmem:[%s580] sm:$0x1]
      %v1933 = vsel %vm672, %v1915, 0.0
      %1934 = vadd.xlane.f32.xlu0 %v1933
      %v1935 = vpop.xlane.xlu0 %1934
      %v1936 = vsel %vm672, %v1916, 0.0
      %1937 = vadd.xlane.f32.xlu0 %v1936
      %v1938 = vpop.xlane.xlu0 %1937
      %v1939 = vsel %vm672, %v1917, 0.0
      %1940 = vadd.xlane.f32.xlu0 %v1939
      %v1941 = vpop.xlane.xlu0 %1940
      %v1942 = vsel %vm672, %v1918, 0.0
      %1943 = vadd.xlane.f32.xlu0 %v1942
      %v1944 = vpop.xlane.xlu0 %1943
      %v1945 = vsel %vm672, %v1919, 0.0
      %1946 = vadd.xlane.f32.xlu0 %v1945
      %v1947 = vpop.xlane.xlu0 %1946
      %v1948 = vsel %vm672, %v1920, 0.0
      %1949 = vadd.xlane.f32.xlu0 %v1948
      %v1950 = vpop.xlane.xlu0 %1949
      %v1951 = vsel %vm672, %v1921, 0.0
      %1952 = vadd.xlane.f32.xlu0 %v1951
      %v1953 = vpop.xlane.xlu0 %1952
      %v1954 = vsel %vm672, %v1922, 0.0
      %1955 = vadd.xlane.f32.xlu0 %v1954
      %v1956 = vpop.xlane.xlu0 %1955
      %v1957 = vsel %vm672, %v1923, 0.0
      %1958 = vadd.xlane.f32.xlu0 %v1957
      %v1959 = vpop.xlane.xlu0 %1958
      %v1960 = vsel %vm672, %v1924, 0.0
      %1961 = vadd.xlane.f32.xlu0 %v1960
      %v1962 = vpop.xlane.xlu0 %1961
      %v1963 = vsel %vm672, %v1925, 0.0
      %1964 = vadd.xlane.f32.xlu0 %v1963
      %v1965 = vpop.xlane.xlu0 %1964
      %v1966 = vsel %vm672, %v1926, 0.0
      %1967 = vadd.xlane.f32.xlu0 %v1966
      %v1968 = vpop.xlane.xlu0 %1967
      %v1969 = vsel %vm672, %v1927, 0.0
      %1970 = vadd.xlane.f32.xlu0 %v1969
      %v1971 = vpop.xlane.xlu0 %1970
      %v1972 = vsel %vm672, %v1928, 0.0
      %1973 = vadd.xlane.f32.xlu0 %v1972
      %v1974 = vpop.xlane.xlu0 %1973
      %v1975 = vsel %vm672, %v1929, 0.0
      %1976 = vadd.xlane.f32.xlu0 %v1975
      %v1977 = vpop.xlane.xlu0 %1976
      %v1978 = vsel %vm672, %v1930, 0.0
      %1979 = vadd.xlane.f32.xlu0 %v1978
      %v1980 = vpop.xlane.xlu0 %1979
      %v1981 = vmul.f32 %v1935, %v1366
      %v1982 = vmul.f32 %v1938, %v1366
      %v1983 = vmul.f32 %v1941, %v1366
      %v1984 = vmul.f32 %v1944, %v1366
      %v1985 = vmul.f32 %v1947, %v1366
      %v1986 = vmul.f32 %v1950, %v1366
      %v1987 = vmul.f32 %v1953, %v1366
      %v1988 = vmul.f32 %v1956, %v1366
      %v1989 = vmul.f32 %v1959, %v1366
      %v1990 = vmul.f32 %v1962, %v1366
      %v1991 = vmul.f32 %v1965, %v1366
      %v1992 = vmul.f32 %v1968, %v1366
      %v1993 = vmul.f32 %v1971, %v1366
      %v1994 = vmul.f32 %v1974, %v1366
      %v1995 = vmul.f32 %v1977, %v1366
      %v1996 = vmul.f32 %v1980, %v1366
      %v1997 = vsub.f32 %v1915, %v1981
      %v1998 = vsub.f32 %v1916, %v1982
      %v1999 = vsub.f32 %v1917, %v1983
      %v2000 = vsub.f32 %v1918, %v1984
      %v2001 = vsub.f32 %v1919, %v1985
      %v2002 = vsub.f32 %v1920, %v1986
      %v2003 = vsub.f32 %v1921, %v1987
      %v2004 = vsub.f32 %v1922, %v1988
      %v2005 = vsub.f32 %v1923, %v1989
      %v2006 = vsub.f32 %v1924, %v1990
      %v2007 = vsub.f32 %v1925, %v1991
      %v2008 = vsub.f32 %v1926, %v1992
      %v2009 = vsub.f32 %v1927, %v1993
      %v2010 = vsub.f32 %v1928, %v1994
      %v2011 = vsub.f32 %v1929, %v1995
      %v2012 = vsub.f32 %v1930, %v1996
      %v2013 = vmul.f32 %v1997, %v1997
      %v2014 = vmul.f32 %v1998, %v1998
      %v2015 = vmul.f32 %v1999, %v1999
      %v2016 = vmul.f32 %v2000, %v2000
      %v2017 = vmul.f32 %v2001, %v2001
      %v2018 = vmul.f32 %v2002, %v2002
      %v2019 = vmul.f32 %v2003, %v2003
      %v2020 = vmul.f32 %v2004, %v2004
      %v2021 = vmul.f32 %v2005, %v2005
      %v2022 = vmul.f32 %v2006, %v2006
      %v2023 = vmul.f32 %v2007, %v2007
      %v2024 = vmul.f32 %v2008, %v2008
      %v2025 = vmul.f32 %v2009, %v2009
      %v2026 = vmul.f32 %v2010, %v2010
      %v2027 = vmul.f32 %v2011, %v2011
      %v2028 = vmul.f32 %v2012, %v2012
      %v2029 = vsel %vm672, %v2013, 0.0
      %2030 = vadd.xlane.f32.xlu0 %v2029
      %v2031 = vpop.xlane.xlu0 %2030
      %v2032 = vsel %vm672, %v2014, 0.0
      %2033 = vadd.xlane.f32.xlu0 %v2032
      %v2034 = vpop.xlane.xlu0 %2033
      %v2035 = vsel %vm672, %v2015, 0.0
      %2036 = vadd.xlane.f32.xlu0 %v2035
      %v2037 = vpop.xlane.xlu0 %2036
      %v2038 = vsel %vm672, %v2016, 0.0
      %2039 = vadd.xlane.f32.xlu0 %v2038
      %v2040 = vpop.xlane.xlu0 %2039
      %v2041 = vsel %vm672, %v2017, 0.0
      %2042 = vadd.xlane.f32.xlu0 %v2041
      %v2043 = vpop.xlane.xlu0 %2042
      %v2044 = vsel %vm672, %v2018, 0.0
      %2045 = vadd.xlane.f32.xlu0 %v2044
      %v2046 = vpop.xlane.xlu0 %2045
      %v2047 = vsel %vm672, %v2019, 0.0
      %2048 = vadd.xlane.f32.xlu0 %v2047
      %v2049 = vpop.xlane.xlu0 %2048
      %v2050 = vsel %vm672, %v2020, 0.0
      %2051 = vadd.xlane.f32.xlu0 %v2050
      %v2052 = vpop.xlane.xlu0 %2051
      %v2053 = vsel %vm672, %v2021, 0.0
      %2054 = vadd.xlane.f32.xlu0 %v2053
      %v2055 = vpop.xlane.xlu0 %2054
      %v2056 = vsel %vm672, %v2022, 0.0
      %2057 = vadd.xlane.f32.xlu0 %v2056
      %v2058 = vpop.xlane.xlu0 %2057
      %v2059 = vsel %vm672, %v2023, 0.0
      %2060 = vadd.xlane.f32.xlu0 %v2059
      %v2061 = vpop.xlane.xlu0 %2060
      %v2062 = vsel %vm672, %v2024, 0.0
      %2063 = vadd.xlane.f32.xlu0 %v2062
      %v2064 = vpop.xlane.xlu0 %2063
      %v2065 = vsel %vm672, %v2025, 0.0
      %2066 = vadd.xlane.f32.xlu0 %v2065
      %v2067 = vpop.xlane.xlu0 %2066
      %v2068 = vsel %vm672, %v2026, 0.0
      %2069 = vadd.xlane.f32.xlu0 %v2068
      %v2070 = vpop.xlane.xlu0 %2069
      %v2071 = vsel %vm672, %v2027, 0.0
      %2072 = vadd.xlane.f32.xlu0 %v2071
      %v2073 = vpop.xlane.xlu0 %2072
      %v2074 = vsel %vm672, %v2028, 0.0
      %2075 = vadd.xlane.f32.xlu0 %v2074
      %v2076 = vpop.xlane.xlu0 %2075
      %v2077 = vmul.f32 %v2031, %v1366
      %v2078 = vmul.f32 %v2034, %v1366
      %v2079 = vmul.f32 %v2037, %v1366
      %v2080 = vmul.f32 %v2040, %v1366
      %v2081 = vmul.f32 %v2043, %v1366
      %v2082 = vmul.f32 %v2046, %v1366
      %v2083 = vmul.f32 %v2049, %v1366
      %v2084 = vmul.f32 %v2052, %v1366
      %v2085 = vmul.f32 %v2055, %v1366
      %v2086 = vmul.f32 %v2058, %v1366
      %v2087 = vmul.f32 %v2061, %v1366
      %v2088 = vmul.f32 %v2064, %v1366
      %v2089 = vmul.f32 %v2067, %v1366
      %v2090 = vmul.f32 %v2070, %v1366
      %v2091 = vmul.f32 %v2073, %v1366
      %v2092 = vmul.f32 %v2076, %v1366
      %v2093 = vadd.f32 %v2077, 1e-05
      %v2094 = vadd.f32 %v2078, 1e-05
      %v2095 = vadd.f32 %v2079, 1e-05
      %v2096 = vadd.f32 %v2080, 1e-05
      %v2097 = vadd.f32 %v2081, 1e-05
      %v2098 = vadd.f32 %v2082, 1e-05
      %v2099 = vadd.f32 %v2083, 1e-05
      %v2100 = vadd.f32 %v2084, 1e-05
      %v2101 = vadd.f32 %v2085, 1e-05
      %v2102 = vadd.f32 %v2086, 1e-05
      %v2103 = vadd.f32 %v2087, 1e-05
      %v2104 = vadd.f32 %v2088, 1e-05
      %v2105 = vadd.f32 %v2089, 1e-05
      %v2106 = vadd.f32 %v2090, 1e-05
      %v2107 = vadd.f32 %v2091, 1e-05
      %v2108 = vadd.f32 %v2092, 1e-05
      %v2109 = vrsqrt.pop %v2093
      %v2110 = vrsqrt.pop %v2094
      %v2111 = vrsqrt.pop %v2095
      %v2112 = vrsqrt.pop %v2096
      %v2113 = vrsqrt.pop %v2097
      %v2114 = vrsqrt.pop %v2098
      %v2115 = vrsqrt.pop %v2099
      %v2116 = vrsqrt.pop %v2100
      %v2117 = vrsqrt.pop %v2101
      %v2118 = vrsqrt.pop %v2102
      %v2119 = vrsqrt.pop %v2103
      %v2120 = vrsqrt.pop %v2104
      %v2121 = vrsqrt.pop %v2105
      %v2122 = vrsqrt.pop %v2106
      %v2123 = vrsqrt.pop %v2107
      %v2124 = vrsqrt.pop %v2108
      %v2125 = vmul.f32 %v1997, %v2109
      %v2126 = vmul.f32 %v1998, %v2110
      %v2127 = vmul.f32 %v1999, %v2111
      %v2128 = vmul.f32 %v2000, %v2112
      %v2129 = vmul.f32 %v2001, %v2113
      %v2130 = vmul.f32 %v2002, %v2114
      %v2131 = vmul.f32 %v2003, %v2115
      %v2132 = vmul.f32 %v2004, %v2116
      %v2133 = vmul.f32 %v2005, %v2117
      %v2134 = vmul.f32 %v2006, %v2118
      %v2135 = vmul.f32 %v2007, %v2119
      %v2136 = vmul.f32 %v2008, %v2120
      %v2137 = vmul.f32 %v2009, %v2121
      %v2138 = vmul.f32 %v2010, %v2122
      %v2139 = vmul.f32 %v2011, %v2123
      %v2140 = vmul.f32 %v2012, %v2124
      %v2142 = vlaneseq
      %v2143 = vshrl.u32 %v2142, 7
      %v2144 = vsub.s32 0, %v2143
      %v2145 = vrot.slane %v1931, %v2144
      %v2147 = vmul.f32 %v2125, %v2145
      %v2148 = vmul.f32 %v2126, %v2145
      %v2149 = vmul.f32 %v2127, %v2145
      %v2150 = vmul.f32 %v2128, %v2145
      %v2151 = vmul.f32 %v2129, %v2145
      %v2152 = vmul.f32 %v2130, %v2145
      %v2153 = vmul.f32 %v2131, %v2145
      %v2154 = vmul.f32 %v2132, %v2145
      %v2155 = vmul.f32 %v2133, %v2145
      %v2156 = vmul.f32 %v2134, %v2145
      %v2157 = vmul.f32 %v2135, %v2145
      %v2158 = vmul.f32 %v2136, %v2145
      %v2159 = vmul.f32 %v2137, %v2145
      %v2160 = vmul.f32 %v2138, %v2145
      %v2161 = vmul.f32 %v2139, %v2145
      %v2162 = vmul.f32 %v2140, %v2145
      %v2164 = vlaneseq
      %v2165 = vshrl.u32 %v2164, 7
      %v2166 = vsub.s32 0, %v2165
      %v2167 = vrot.slane %v1932, %v2166
      %v2169 = vadd.f32 %v2147, %v2167
      %v2170 = vadd.f32 %v2148, %v2167
      %v2171 = vadd.f32 %v2149, %v2167
      %v2172 = vadd.f32 %v2150, %v2167
      %v2173 = vadd.f32 %v2151, %v2167
      %v2174 = vadd.f32 %v2152, %v2167
      %v2175 = vadd.f32 %v2153, %v2167
      %v2176 = vadd.f32 %v2154, %v2167
      %v2177 = vadd.f32 %v2155, %v2167
      %v2178 = vadd.f32 %v2156, %v2167
      %v2179 = vadd.f32 %v2157, %v2167
      %v2180 = vadd.f32 %v2158, %v2167
      %v2181 = vadd.f32 %v2159, %v2167
      %v2182 = vadd.f32 %v2160, %v2167
      %v2183 = vadd.f32 %v2161, %v2167
      %v2184 = vadd.f32 %v2162, %v2167
      %2185 = vst.msk [vmem:[#allocation2] sm:$0xff] %vm672, %v2169
      %2186 = vst.msk [vmem:[#allocation2 + $0x8] sm:$0xff] %vm672, %v2170
      %2187 = vst.msk [vmem:[#allocation2 + $0x10] sm:$0xff] %vm672, %v2171
      %2188 = vst.msk [vmem:[#allocation2 + $0x18] sm:$0xff] %vm672, %v2172
      %2189 = vst.msk [vmem:[#allocation2 + $0x20] sm:$0xff] %vm672, %v2173
      %2190 = vst.msk [vmem:[#allocation2 + $0x28] sm:$0xff] %vm672, %v2174
      %2191 = vst.msk [vmem:[#allocation2 + $0x30] sm:$0xff] %vm672, %v2175
      %2192 = vst.msk [vmem:[#allocation2 + $0x38] sm:$0xff] %vm672, %v2176
      %2193 = vst.msk [vmem:[#allocation2 + $0x40] sm:$0xff] %vm672, %v2177
      %2194 = vst.msk [vmem:[#allocation2 + $0x48] sm:$0xff] %vm672, %v2178
      %2195 = vst.msk [vmem:[#allocation2 + $0x50] sm:$0xff] %vm672, %v2179
      %2196 = vst.msk [vmem:[#allocation2 + $0x58] sm:$0xff] %vm672, %v2180
      %2197 = vst.msk [vmem:[#allocation2 + $0x60] sm:$0xff] %vm672, %v2181
      %2198 = vst.msk [vmem:[#allocation2 + $0x68] sm:$0xff] %vm672, %v2182
      %2199 = vst.msk [vmem:[#allocation2 + $0x70] sm:$0xff] %vm672, %v2183
      %2200 = vst.msk [vmem:[#allocation2 + $0x78] sm:$0xff] %vm672, %v2184
      %p2201 = scmp.eq.s32.totalorder %s28, 1
      // Predicated region
      $region73: #{stisan_forward.4} parent=67 // pred_check
        %p2202 = pneg %p2201
      $region74: #{stisan_forward.4} parent=67 // pred_check_branch
        %2204 = sbr.rel (%p2202) target = $region76
      $region75: #{stisan_forward.4} parent=67 // pred_region
        %2205 = vst.msk [vmem:[%s585] sm:$0xff] %vm672, %v2169
        %2206 = vst.msk [vmem:[%s585 + $0x8] sm:$0xff] %vm672, %v2170
        %2207 = vst.msk [vmem:[%s585 + $0x10] sm:$0xff] %vm672, %v2171
        %2208 = vst.msk [vmem:[%s585 + $0x18] sm:$0xff] %vm672, %v2172
        %2209 = vst.msk [vmem:[%s585 + $0x20] sm:$0xff] %vm672, %v2173
        %2210 = vst.msk [vmem:[%s585 + $0x28] sm:$0xff] %vm672, %v2174
        %2211 = vst.msk [vmem:[%s585 + $0x30] sm:$0xff] %vm672, %v2175
        %2212 = vst.msk [vmem:[%s585 + $0x38] sm:$0xff] %vm672, %v2176
        %2213 = vst.msk [vmem:[%s585 + $0x40] sm:$0xff] %vm672, %v2177
        %2214 = vst.msk [vmem:[%s585 + $0x48] sm:$0xff] %vm672, %v2178
        %2215 = vst.msk [vmem:[%s585 + $0x50] sm:$0xff] %vm672, %v2179
        %2216 = vst.msk [vmem:[%s585 + $0x58] sm:$0xff] %vm672, %v2180
        %2217 = vst.msk [vmem:[%s585 + $0x60] sm:$0xff] %vm672, %v2181
        %2218 = vst.msk [vmem:[%s585 + $0x68] sm:$0xff] %vm672, %v2182
        %2219 = vst.msk [vmem:[%s585 + $0x70] sm:$0xff] %vm672, %v2183
        %2220 = vst.msk [vmem:[%s585 + $0x78] sm:$0xff] %vm672, %v2184
      $region76: #{stisan_forward.4} parent=67 // pred_fallthru
        _
      %s2221 = smul.u32 16, %s27
      %p2222 = scmp.lt.s32.totalorder %s2221, 15
      %s2223 = scalar_select %p2222, %s2221, 15
      %s2224 = smul.addr %s2223, 8
      %s2225 = scalar_lea.vmem %s12, %s2224
      // Predicated region
      $region77: #{stisan_forward.4} parent=67 // pred_check
        %p2226 = pneg %p360
      $region78: #{stisan_forward.4} parent=67 // pred_check_branch
        %2228 = sbr.rel (%p2226) target = $region80
      $region79: #{stisan_forward.4} parent=67 // pred_region
        %s2229 = smul.u32 16, %s27
      $region80: #{stisan_forward.4} parent=67 // pred_fallthru
        _
      // Predicated region
      $region81: #{stisan_forward.4} parent=67 // pred_check
        %p2230 = pneg %p360
      $region82: #{stisan_forward.4} parent=67 // pred_check_branch
        %2232 = sbr.rel (%p2230) target = $region84
      $region83: #{stisan_forward.4} parent=67 // pred_region
        %s2233 = smul.u32 16, %s27
        %p2234 = scmp.lt.s32.totalorder %s2233, 15
        %s2235 = scalar_select %p2234, %s2233, 15
        %s2236 = smul.addr %s2235, 8
        %s2237 = scalar_lea.vmem %s12, %s2236
      $region84: #{stisan_forward.4} parent=67 // pred_fallthru
        _
    $region68: #{stisan_forward.4} parent=5 // pred_fallthru
      _
    %p2238 = scmp.le.s32.totalorder 2, %s18
    // Predicated region
    $region85: #{stisan_forward.4} parent=5 // pred_check
      %p2239 = pneg %p2238
    $region86: #{stisan_forward.4} parent=5 // pred_check_branch
      %2241 = sbr.rel (%p2239) target = $region88
    $region87: #{stisan_forward.4} parent=5 // pred_region
      %s2242 = ssub.s32 %s18, 2
    $region88: #{stisan_forward.4} parent=5 // pred_fallthru
      _
  $region6: #{stisan_forward.4} parent=0 // loop_footer
    %s22 = sadd.s32 1, %s18
  $region7: #{stisan_forward.4} parent=0 // loop_footer_branch
    %17 = sbr.rel target = $region3
  $region8: #{stisan_forward.4} parent=0 // loop_exit
    _

// kernel: stisan_forward.7
$region0: #{stisan_forward.7}
  #allocation0 [shape = 'u32[]', space=smem, size = 0x4, offset = 0x4, fixed_abs, tag = 'smem constant byte address 0x4 - core index']
  #allocation1 [shape = 'u32[144,128]{1,0:T(1,128)}', space=vmem, size = 0x12000, scoped, tag = 'internal scratch']
  %s0 = inlined_call_operand.vmem [shape: f32[2,8,64], index: 0, kind: input, shape index: {}]
  %s1 = inlined_call_operand.vmem [shape: f32[2,8,64], index: 1, kind: input, shape index: {}]
  %s2 = inlined_call_operand.vmem [shape: f32[2,8,8], index: 2, kind: input, shape index: {}]
  %s3 = inlined_call_operand.vmem [shape: bf16[64,64], index: 3, kind: input, shape index: {}]
  %s4 = inlined_call_operand.vmem [shape: f32[1,64], index: 4, kind: input, shape index: {}]
  %s5 = inlined_call_operand.vmem [shape: bf16[64,128], index: 5, kind: input, shape index: {}]
  %s6 = inlined_call_operand.vmem [shape: f32[1,128], index: 6, kind: input, shape index: {}]
  %s7 = inlined_call_operand.vmem [shape: f32[1,64], index: 7, kind: input, shape index: {}]
  %s8 = inlined_call_operand.vmem [shape: f32[1,64], index: 8, kind: input, shape index: {}]
  %s9 = inlined_call_operand.hbm [shape: f32[2,1,8], index: 9, kind: output, shape index: {}]
  %s10 = sld [smem:[#allocation0]]
  $region69: #{stisan_forward.7} parent=0
    _
  %s12 = ssub.s32 1, %s10
  %s13 = scalar_select 0, %s12, %s10
  $region1: #{stisan_forward.7} parent=0
    #allocation2 [shape = 'u8[1024]{0}', space=vmem, size = 0x400, scoped, tag = 'output window, operand 0']
    #allocation3 [shape = 's32[2]{0}', space=sflag, size = 0x8, scoped, tag = 'scoped memory for stisan_forward.7']
    %14 = vsyncpa [#allocation3], 0
    %s15 = scalar_lea.sflag [#allocation3], 1
    %16 = vsyncpa %s15, 0
    loop: start=0, step=1, limit=4
    $region2: #{stisan_forward.7} parent=1 // loop_pre_header
      _
    $region3: #{stisan_forward.7} parent=1 // loop_header
      %s18 = sphi 0, %s22
      %p19 = scmp.ge.s32.totalorder %s18, 4
      %s28 = sphi 0, %s30
      %s31 = sphi 0, %s28
      %s32 = sphi 0, %s31
      %s48 = sphi 0, %s32
      %s54 = sphi 0, %s56
      %s57 = sphi 0, %s54
      %s58 = sphi 0, %s57
      %s74 = sphi 0, %s58
      %s80 = sphi 0, %s82
      %s83 = sphi 0, %s80
      %s84 = sphi 0, %s83
      %s100 = sphi 0, %s84
      %s104 = sphi 0, %s104
      %s106 = sphi 0, %s104
      %s107 = sphi 0, %s106
      %s121 = sphi 0, %s107
      %s125 = sphi 0, %s125
      %s127 = sphi 0, %s125
      %s128 = sphi 0, %s127
      %s142 = sphi 0, %s128
      %s146 = sphi 0, %s146
      %s148 = sphi 0, %s146
      %s149 = sphi 0, %s148
      %s163 = sphi 0, %s149
      %s167 = sphi 0, %s167
      %s169 = sphi 0, %s167
      %s170 = sphi 0, %s169
      %s184 = sphi 0, %s170
      %s188 = sphi 0, %s188
      %s190 = sphi 0, %s188
      %s191 = sphi 0, %s190
      %s205 = sphi 0, %s191
      %s209 = sphi 0, %s209
      %s211 = sphi 0, %s209
      %s212 = sphi 0, %s211
      %s226 = sphi 0, %s212
      %s232 = sphi 0, %s234
      %s235 = sphi 0, %s232
      %s236 = sphi 0, %s235
      %s252 = sphi 0, %s236
    $region4: #{stisan_forward.7} parent=1 // loop_header_branch
      %21 = sbr.rel (%p19) target = $region8
    $region5: #{stisan_forward.7} parent=1 // loop_body
      %s23 = ssub.s32 %s18, 1
      %s24 = ssub.s32 %s18, 2
      %s25 = sadd.s32 %s18, 1
      %s26 = ssub.s32 %s18, %s25
      %p27 = scmp.eq.s32.totalorder %s26, 0
      %s29 = sadd.s32 %s28, 1
      %s30 = scalar_select %p27, %s28, %s29
      %p33 = pneg %p27
      %p34 = scmp.eq.s32.totalorder %s18, 1
      %p35 = por %p33, %p34
      %p36 = scmp.ne.s32.totalorder %s28, %s31
      %p37 = scmp.eq.s32.totalorder %s18, 0
      %p38 = por %p36, %p37
      %p39 = scmp.ne.s32.totalorder %s28, %s31
      %p40 = scmp.eq.s32.totalorder %s23, 1
      %p41 = por %p39, %p40
      %p42 = scmp.ne.s32.totalorder %s31, %s32
      %p43 = scmp.eq.s32.totalorder %s23, 0
      %p44 = por %p42, %p43
      %p45 = scmp.ne.s32.totalorder %s31, %s32
      %p46 = scmp.eq.s32.totalorder %s24, 1
      %p47 = por %p45, %p46
      %p49 = scmp.ne.s32.totalorder %s32, %s48
      %p50 = scmp.eq.s32.totalorder %s24, 0
      %p51 = por %p49, %p50
      %s52 = ssub.s32 %s18, %s25
      %p53 = scmp.eq.s32.totalorder %s52, 0
      %s55 = sadd.s32 %s54, 1
      %s56 = scalar_select %p53, %s54, %s55
      %p59 = pneg %p53
      %p60 = scmp.eq.s32.totalorder %s18, 1
      %p61 = por %p59, %p60
      %p62 = scmp.ne.s32.totalorder %s54, %s57
      %p63 = scmp.eq.s32.totalorder %s18, 0
      %p64 = por %p62, %p63
      %p65 = scmp.ne.s32.totalorder %s54, %s57
      %p66 = scmp.eq.s32.totalorder %s23, 1
      %p67 = por %p65, %p66
      %p68 = scmp.ne.s32.totalorder %s57, %s58
      %p69 = scmp.eq.s32.totalorder %s23, 0
      %p70 = por %p68, %p69
      %p71 = scmp.ne.s32.totalorder %s57, %s58
      %p72 = scmp.eq.s32.totalorder %s24, 1
      %p73 = por %p71, %p72
      %p75 = scmp.ne.s32.totalorder %s58, %s74
      %p76 = scmp.eq.s32.totalorder %s24, 0
      %p77 = por %p75, %p76
      %s78 = ssub.s32 %s18, %s25
      %p79 = scmp.eq.s32.totalorder %s78, 0
      %s81 = sadd.s32 %s80, 1
      %s82 = scalar_select %p79, %s80, %s81
      %p85 = pneg %p79
      %p86 = scmp.eq.s32.totalorder %s18, 1
      %p87 = por %p85, %p86
      %p88 = scmp.ne.s32.totalorder %s80, %s83
      %p89 = scmp.eq.s32.totalorder %s18, 0
      %p90 = por %p88, %p89
      %p91 = scmp.ne.s32.totalorder %s80, %s83
      %p92 = scmp.eq.s32.totalorder %s23, 1
      %p93 = por %p91, %p92
      %p94 = scmp.ne.s32.totalorder %s83, %s84
      %p95 = scmp.eq.s32.totalorder %s23, 0
      %p96 = por %p94, %p95
      %p97 = scmp.ne.s32.totalorder %s83, %s84
      %p98 = scmp.eq.s32.totalorder %s24, 1
      %p99 = por %p97, %p98
      %p101 = scmp.ne.s32.totalorder %s84, %s100
      %p102 = scmp.eq.s32.totalorder %s24, 0
      %p103 = por %p101, %p102
      %s105 = sadd.s32 %s104, 1
      %p108 = scmp.eq.s32.totalorder %s18, 1
      %p109 = scmp.ne.s32.totalorder %s104, %s106
      %p110 = scmp.eq.s32.totalorder %s18, 0
      %p111 = por %p109, %p110
      %p112 = scmp.ne.s32.totalorder %s104, %s106
      %p113 = scmp.eq.s32.totalorder %s23, 1
      %p114 = por %p112, %p113
      %p115 = scmp.ne.s32.totalorder %s106, %s107
      %p116 = scmp.eq.s32.totalorder %s23, 0
      %p117 = por %p115, %p116
      %p118 = scmp.ne.s32.totalorder %s106, %s107
      %p119 = scmp.eq.s32.totalorder %s24, 1
      %p120 = por %p118, %p119
      %p122 = scmp.ne.s32.totalorder %s107, %s121
      %p123 = scmp.eq.s32.totalorder %s24, 0
      %p124 = por %p122, %p123
      %s126 = sadd.s32 %s125, 1
      %p129 = scmp.eq.s32.totalorder %s18, 1
      %p130 = scmp.ne.s32.totalorder %s125, %s127
      %p131 = scmp.eq.s32.totalorder %s18, 0
      %p132 = por %p130, %p131
      %p133 = scmp.ne.s32.totalorder %s125, %s127
      %p134 = scmp.eq.s32.totalorder %s23, 1
      %p135 = por %p133, %p134
      %p136 = scmp.ne.s32.totalorder %s127, %s128
      %p137 = scmp.eq.s32.totalorder %s23, 0
      %p138 = por %p136, %p137
      %p139 = scmp.ne.s32.totalorder %s127, %s128
      %p140 = scmp.eq.s32.totalorder %s24, 1
      %p141 = por %p139, %p140
      %p143 = scmp.ne.s32.totalorder %s128, %s142
      %p144 = scmp.eq.s32.totalorder %s24, 0
      %p145 = por %p143, %p144
      %s147 = sadd.s32 %s146, 1
      %p150 = scmp.eq.s32.totalorder %s18, 1
      %p151 = scmp.ne.s32.totalorder %s146, %s148
      %p152 = scmp.eq.s32.totalorder %s18, 0
      %p153 = por %p151, %p152
      %p154 = scmp.ne.s32.totalorder %s146, %s148
      %p155 = scmp.eq.s32.totalorder %s23, 1
      %p156 = por %p154, %p155
      %p157 = scmp.ne.s32.totalorder %s148, %s149
      %p158 = scmp.eq.s32.totalorder %s23, 0
      %p159 = por %p157, %p158
      %p160 = scmp.ne.s32.totalorder %s148, %s149
      %p161 = scmp.eq.s32.totalorder %s24, 1
      %p162 = por %p160, %p161
      %p164 = scmp.ne.s32.totalorder %s149, %s163
      %p165 = scmp.eq.s32.totalorder %s24, 0
      %p166 = por %p164, %p165
      %s168 = sadd.s32 %s167, 1
      %p171 = scmp.eq.s32.totalorder %s18, 1
      %p172 = scmp.ne.s32.totalorder %s167, %s169
      %p173 = scmp.eq.s32.totalorder %s18, 0
      %p174 = por %p172, %p173
      %p175 = scmp.ne.s32.totalorder %s167, %s169
      %p176 = scmp.eq.s32.totalorder %s23, 1
      %p177 = por %p175, %p176
      %p178 = scmp.ne.s32.totalorder %s169, %s170
      %p179 = scmp.eq.s32.totalorder %s23, 0
      %p180 = por %p178, %p179
      %p181 = scmp.ne.s32.totalorder %s169, %s170
      %p182 = scmp.eq.s32.totalorder %s24, 1
      %p183 = por %p181, %p182
      %p185 = scmp.ne.s32.totalorder %s170, %s184
      %p186 = scmp.eq.s32.totalorder %s24, 0
      %p187 = por %p185, %p186
      %s189 = sadd.s32 %s188, 1
      %p192 = scmp.eq.s32.totalorder %s18, 1
      %p193 = scmp.ne.s32.totalorder %s188, %s190
      %p194 = scmp.eq.s32.totalorder %s18, 0
      %p195 = por %p193, %p194
      %p196 = scmp.ne.s32.totalorder %s188, %s190
      %p197 = scmp.eq.s32.totalorder %s23, 1
      %p198 = por %p196, %p197
      %p199 = scmp.ne.s32.totalorder %s190, %s191
      %p200 = scmp.eq.s32.totalorder %s23, 0
      %p201 = por %p199, %p200
      %p202 = scmp.ne.s32.totalorder %s190, %s191
      %p203 = scmp.eq.s32.totalorder %s24, 1
      %p204 = por %p202, %p203
      %p206 = scmp.ne.s32.totalorder %s191, %s205
      %p207 = scmp.eq.s32.totalorder %s24, 0
      %p208 = por %p206, %p207
      %s210 = sadd.s32 %s209, 1
      %p213 = scmp.eq.s32.totalorder %s18, 1
      %p214 = scmp.ne.s32.totalorder %s209, %s211
      %p215 = scmp.eq.s32.totalorder %s18, 0
      %p216 = por %p214, %p215
      %p217 = scmp.ne.s32.totalorder %s209, %s211
      %p218 = scmp.eq.s32.totalorder %s23, 1
      %p219 = por %p217, %p218
      %p220 = scmp.ne.s32.totalorder %s211, %s212
      %p221 = scmp.eq.s32.totalorder %s23, 0
      %p222 = por %p220, %p221
      %p223 = scmp.ne.s32.totalorder %s211, %s212
      %p224 = scmp.eq.s32.totalorder %s24, 1
      %p225 = por %p223, %p224
      %p227 = scmp.ne.s32.totalorder %s212, %s226
      %p228 = scmp.eq.s32.totalorder %s24, 0
      %p229 = por %p227, %p228
      %s230 = ssub.s32 %s18, %s25
      %p231 = scmp.eq.s32.totalorder %s230, 0
      %s233 = sadd.s32 %s232, 1
      %s234 = scalar_select %p231, %s232, %s233
      %p237 = pneg %p231
      %p238 = scmp.eq.s32.totalorder %s18, 1
      %p239 = por %p237, %p238
      %p240 = scmp.ne.s32.totalorder %s232, %s235
      %p241 = scmp.eq.s32.totalorder %s18, 0
      %p242 = por %p240, %p241
      %p243 = scmp.ne.s32.totalorder %s232, %s235
      %p244 = scmp.eq.s32.totalorder %s23, 1
      %p245 = por %p243, %p244
      %p246 = scmp.ne.s32.totalorder %s235, %s236
      %p247 = scmp.eq.s32.totalorder %s23, 0
      %p248 = por %p246, %p247
      %p249 = scmp.ne.s32.totalorder %s235, %s236
      %p250 = scmp.eq.s32.totalorder %s24, 1
      %p251 = por %p249, %p250
      %p253 = scmp.ne.s32.totalorder %s236, %s252
      %p254 = scmp.eq.s32.totalorder %s24, 0
      %p255 = por %p253, %p254
      %p256 = scmp.le.s32.totalorder 1, %s18
      %p257 = scmp.lt.s32.totalorder %s18, 3
      %p258 = pnand %p256, %p257
      %p259 = pneg %p258
      // Predicated region
      $region9: #{stisan_forward.7} parent=5 // pred_check
        _
      $region10: #{stisan_forward.7} parent=5 // pred_check_branch
        %261 = sbr.rel (%p258) target = $region12
      $region11: #{stisan_forward.7} parent=5 // pred_region
        %s262 = ssub.s32 %s18, 1
        // Predicated region
        $region13: #{stisan_forward.7} parent=11 // pred_check
          %p263 = pneg %p117
        $region14: #{stisan_forward.7} parent=11 // pred_check_branch
          %265 = sbr.rel (%p263) target = $region16
        $region15: #{stisan_forward.7} parent=11 // pred_region
          _
        $region16: #{stisan_forward.7} parent=11 // pred_fallthru
          _
        // Predicated region
        $region17: #{stisan_forward.7} parent=11 // pred_check
          %p266 = pneg %p138
        $region18: #{stisan_forward.7} parent=11 // pred_check_branch
          %268 = sbr.rel (%p266) target = $region20
        $region19: #{stisan_forward.7} parent=11 // pred_region
          _
        $region20: #{stisan_forward.7} parent=11 // pred_fallthru
          _
        // Predicated region
        $region21: #{stisan_forward.7} parent=11 // pred_check
          %p269 = pneg %p159
        $region22: #{stisan_forward.7} parent=11 // pred_check_branch
          %271 = sbr.rel (%p269) target = $region24
        $region23: #{stisan_forward.7} parent=11 // pred_region
          _
        $region24: #{stisan_forward.7} parent=11 // pred_fallthru
          _
        // Predicated region
        $region25: #{stisan_forward.7} parent=11 // pred_check
          %p272 = pneg %p180
        $region26: #{stisan_forward.7} parent=11 // pred_check_branch
          %274 = sbr.rel (%p272) target = $region28
        $region27: #{stisan_forward.7} parent=11 // pred_region
          _
        $region28: #{stisan_forward.7} parent=11 // pred_fallthru
          _
        // Predicated region
        $region29: #{stisan_forward.7} parent=11 // pred_check
          %p275 = pneg %p201
        $region30: #{stisan_forward.7} parent=11 // pred_check_branch
          %277 = sbr.rel (%p275) target = $region32
        $region31: #{stisan_forward.7} parent=11 // pred_region
          _
        $region32: #{stisan_forward.7} parent=11 // pred_fallthru
          _
        // Predicated region
        $region33: #{stisan_forward.7} parent=11 // pred_check
          %p278 = pneg %p222
        $region34: #{stisan_forward.7} parent=11 // pred_check_branch
          %280 = sbr.rel (%p278) target = $region36
        $region35: #{stisan_forward.7} parent=11 // pred_region
          _
        $region36: #{stisan_forward.7} parent=11 // pred_fallthru
          _
      $region12: #{stisan_forward.7} parent=5 // pred_fallthru
        _
      %p281 = scmp.lt.s32.totalorder %s18, 2
      // Predicated region
      $region37: #{stisan_forward.7} parent=5 // pred_check
        %p282 = pneg %p281
      $region38: #{stisan_forward.7} parent=5 // pred_check_branch
        %284 = sbr.rel (%p282) target = $region40
      $region39: #{stisan_forward.7} parent=5 // pred_region
        // Predicated region
        $region41: #{stisan_forward.7} parent=39 // pred_check
          %p285 = pneg %p38
        $region42: #{stisan_forward.7} parent=39 // pred_check_branch
          %287 = sbr.rel (%p285) target = $region44
        $region43: #{stisan_forward.7} parent=39 // pred_region
          %p288 = scmp.lt.s32.totalorder %s18, 1
          %s289 = scalar_select %p288, %s18, 1
          %s290 = smul.addr %s289, 8
          %s291 = scalar_lea.vmem %s0, %s290
        $region44: #{stisan_forward.7} parent=39 // pred_fallthru
          _
        // Predicated region
        $region45: #{stisan_forward.7} parent=39 // pred_check
          %p292 = pneg %p64
        $region46: #{stisan_forward.7} parent=39 // pred_check_branch
          %294 = sbr.rel (%p292) target = $region48
        $region47: #{stisan_forward.7} parent=39 // pred_region
          %p295 = scmp.lt.s32.totalorder %s18, 1
          %s296 = scalar_select %p295, %s18, 1
          %s297 = smul.addr %s296, 8
          %s298 = scalar_lea.vmem %s1, %s297
        $region48: #{stisan_forward.7} parent=39 // pred_fallthru
          _
        // Predicated region
        $region49: #{stisan_forward.7} parent=39 // pred_check
          %p299 = pneg %p90
        $region50: #{stisan_forward.7} parent=39 // pred_check_branch
          %301 = sbr.rel (%p299) target = $region52
        $region51: #{stisan_forward.7} parent=39 // pred_region
          %p302 = scmp.lt.s32.totalorder %s18, 1
          %s303 = scalar_select %p302, %s18, 1
          %s304 = smul.addr %s303, 8
          %s305 = scalar_lea.vmem %s2, %s304
        $region52: #{stisan_forward.7} parent=39 // pred_fallthru
          _
      $region40: #{stisan_forward.7} parent=5 // pred_fallthru
        _
      %p306 = scmp.le.s32.totalorder 1, %s18
      %p307 = scmp.lt.s32.totalorder %s18, 3
      %p308 = pnand %p306, %p307
      %p309 = pneg %p308
      // Predicated region
      $region53: #{stisan_forward.7} parent=5 // pred_check
        _
      $region54: #{stisan_forward.7} parent=5 // pred_check_branch
        %311 = sbr.rel (%p308) target = $region56
      $region55: #{stisan_forward.7} parent=5 // pred_region
        %s312 = ssub.s32 %s18, 1
        %p313 = scmp.lt.s32.totalorder %s23, 1
        %s314 = scalar_select %p313, %s23, 1
        %s315 = smul.addr %s314, 8
        %s316 = scalar_lea.vmem %s0, %s315
        %p317 = pneg %p44
        %p318 = pneg %p41
        %p319 = scmp.lt.s32.totalorder %s23, 1
        %s320 = scalar_select %p319, %s23, 1
        %s321 = smul.addr %s320, 8
        %s322 = scalar_lea.vmem %s1, %s321
        %p323 = pneg %p70
        %p324 = pneg %p67
        %p325 = scmp.lt.s32.totalorder %s23, 1
        %s326 = scalar_select %p325, %s23, 1
        %s327 = smul.addr %s326, 8
        %s328 = scalar_lea.vmem %s2, %s327
        %p329 = pneg %p96
        %p330 = pneg %p93
        %p331 = pneg %p117
        %p332 = pneg %p114
        %p333 = pneg %p138
        %p334 = pneg %p135
        %p335 = pneg %p159
        %p336 = pneg %p156
        %p337 = pneg %p180
        %p338 = pneg %p177
        %p339 = pneg %p201
        %p340 = pneg %p198
        %p341 = pneg %p222
        %p342 = pneg %p219
        %p343 = pneg %p248
        %p344 = pneg %p245
        %s345 = sand.u32 %s235, 1
        %s346 = scalar_lea.sflag [#allocation3], %s345
        %s347 = sand.u32 %s235, 1
        %s348 = scalar_lea.vmem [#allocation2], %s347
        %p349 = scmp.lt.s32.totalorder %s23, 1
        %s350 = scalar_select %p349, %s23, 1
        %s351 = smul.addr %s350, 8
        %s352 = scalar_lea.vmem %s0, %s351
        %p353 = scmp.lt.s32.totalorder %s23, 1
        %s354 = scalar_select %p353, %s23, 1
        %s355 = smul.addr %s354, 8
        %s356 = scalar_lea.vmem %s1, %s355
        %p357 = scmp.lt.s32.totalorder %s23, 1
        %s358 = scalar_select %p357, %s23, 1
        %s359 = smul.addr %s358, 8
        %s360 = scalar_lea.vmem %s2, %s359
        %v362 = vld [vmem:[%s352] sm:$0xff]
        %v363 = vld [vmem:[%s356] sm:$0xff]
        %v364 = vpack.c.bf16 %v363, %v363
        %v365 = vld [vmem:[%s3] sm:$0xf]
        %v366 = vld [vmem:[%s3 + $0x4] sm:$0xf]
        %v367 = vld [vmem:[%s3 + $0x8] sm:$0xf]
        %v368 = vld [vmem:[%s3 + $0xc] sm:$0xf]
        %v369 = vld [vmem:[%s3 + $0x10] sm:$0xf]
        %v370 = vld [vmem:[%s3 + $0x14] sm:$0xf]
        %v371 = vld [vmem:[%s3 + $0x18] sm:$0xf]
        %v372 = vld [vmem:[%s3 + $0x1c] sm:$0xf]
        %v373 = vld [vmem:[%s4] sm:$0x1]
        %v375 = vlaneseq
        %v376 = vshrl.u32 %v375, 7
        %v377 = vsub.s32 0, %v376
        %v378 = vrot.slane %v373, %v377
        %v388 = vunpack.c.l.b16 %v365
        %v389 = vunpack.c.l.b16 %v366
        %v390 = vunpack.c.l.b16 %v367
        %v391 = vunpack.c.l.b16 %v368
        %v392 = vunpack.c.l.b16 %v369
        %v393 = vunpack.c.l.b16 %v370
        %v394 = vunpack.c.l.b16 %v371
        %v395 = vunpack.c.l.b16 %v372
        %v396 = vpack.c.b16 %v389, %v388
        %v397 = vpack.c.b16 %v391, %v390
        %v398 = vpack.c.b16 %v393, %v392
        %v399 = vpack.c.b16 %v395, %v394
        %vm404 = vcmask 523264
        %v406 = vsel %vm404, %v364, 0
        %408 = vmatprep.subr.bf16.mxu0 0
        %409 = vmatpush1.bf16.msra.mxu0 0
        %410 = vmatprep.subr.bf16.mxu0 0
        %411 = vmatpush1.bf16.msra.mxu0 0
        %412 = vmatprep.subr.bf16.mxu0 0
        %413 = vmatpush1.bf16.msra.mxu0 0
        %414 = vmatprep.subr.bf16.mxu0 0
        %415 = vmatpush1.bf16.msra.mxu0 0
        %416 = vmatprep.subr.bf16.mxu0 0
        %417 = vmatpush1.bf16.msra.mxu0 %v399
        %418 = vmatprep.subr.bf16.mxu0 0
        %419 = vmatpush1.bf16.msra.mxu0 %v398
        %420 = vmatprep.subr.bf16.mxu0 0
        %421 = vmatpush1.bf16.msra.mxu0 %v397
        %422 = vmatprep.subr.bf16.mxu0 0
        %423 = vmatpush1.bf16.msra.mxu0 %v396
        %424 = vmatprep.subr.bf16.mxu0 0
        %425 = vmatpush2.bf16.msra.mxu0 0
        %426 = vmatprep.subr.bf16.mxu0 0
        %427 = vmatpush2.bf16.msra.mxu0 0
        %428 = vmatprep.subr.bf16.mxu0 0
        %429 = vmatpush2.bf16.msra.mxu0 0
        %430 = vmatprep.subr.bf16.mxu0 0
        %431 = vmatpush2.bf16.msra.mxu0 0
        %432 = vmatprep.subr.bf16.mxu0 0
        %433 = vmatpush2.bf16.msra.mxu0 0
        %434 = vmatprep.subr.bf16.mxu0 0
        %435 = vmatpush2.bf16.msra.mxu0 0
        %436 = vmatprep.subr.bf16.mxu0 0
        %437 = vmatpush2.bf16.msra.mxu0 0
        %438 = vmatprep.subr.bf16.mxu0 0
        %439 = vmatpush2.bf16.msra.mxu0 0
        %440 = vmatprep.mubr.bf16.mxu0 0
        %441 = vmatmul.mubr.bf16.gmra.mxu0 %v406
        %v442 = vpop.f32.mrf.mxu0
        %v443 = vadd.f32 %v378, %v442
        %v444 = vpop.f32.mrf.mxu0
        %v445 = vpop.f32.mrf.mxu0
        %v446 = vpop.f32.mrf.mxu0
        %447 = vdwg.mxu0
        %v448 = vpack.c.bf16 %v362, %v362
        %v449 = vld [vmem:[%s5] sm:$0xf]
        %v450 = vld [vmem:[%s5 + $0x4] sm:$0xf]
        %v451 = vld [vmem:[%s5 + $0x8] sm:$0xf]
        %v452 = vld [vmem:[%s5 + $0xc] sm:$0xf]
        %v453 = vld [vmem:[%s5 + $0x10] sm:$0xf]
        %v454 = vld [vmem:[%s5 + $0x14] sm:$0xf]
        %v455 = vld [vmem:[%s5 + $0x18] sm:$0xf]
        %v456 = vld [vmem:[%s5 + $0x1c] sm:$0xf]
        %v457 = vld [vmem:[%s6] sm:$0x1]
        %v459 = vlaneseq
        %v460 = vshrl.u32 %v459, 7
        %v461 = vsub.s32 0, %v460
        %v462 = vrot.slane %v457, %v461
        %v472 = vunpack.c.l.b16 %v449
        %v473 = vunpack.c.l.b16 %v450
        %v474 = vunpack.c.l.b16 %v451
        %v475 = vunpack.c.l.b16 %v452
        %v476 = vunpack.c.l.b16 %v453
        %v477 = vunpack.c.l.b16 %v454
        %v478 = vunpack.c.l.b16 %v455
        %v479 = vunpack.c.l.b16 %v456
        %v480 = vpack.c.b16 %v473, %v472
        %v481 = vpack.c.b16 %v475, %v474
        %v482 = vpack.c.b16 %v477, %v476
        %v483 = vpack.c.b16 %v479, %v478
        %v489 = vsel %vm404, %v448, 0
        %491 = vmatprep.subr.bf16.mxu0 0
        %492 = vmatpush1.bf16.msra.mxu0 0
        %493 = vmatprep.subr.bf16.mxu0 0
        %494 = vmatpush1.bf16.msra.mxu0 0
        %495 = vmatprep.subr.bf16.mxu0 0
        %496 = vmatpush1.bf16.msra.mxu0 0
        %497 = vmatprep.subr.bf16.mxu0 0
        %498 = vmatpush1.bf16.msra.mxu0 0
        %499 = vmatprep.subr.bf16.mxu0 0
        %500 = vmatpush1.bf16.msra.mxu0 %v483
        %501 = vmatprep.subr.bf16.mxu0 0
        %502 = vmatpush1.bf16.msra.mxu0 %v482
        %503 = vmatprep.subr.bf16.mxu0 0
        %504 = vmatpush1.bf16.msra.mxu0 %v481
        %505 = vmatprep.subr.bf16.mxu0 0
        %506 = vmatpush1.bf16.msra.mxu0 %v480
        %507 = vmatprep.subr.bf16.mxu0 0
        %508 = vmatpush2.bf16.msra.mxu0 0
        %509 = vmatprep.subr.bf16.mxu0 0
        %510 = vmatpush2.bf16.msra.mxu0 0
        %511 = vmatprep.subr.bf16.mxu0 0
        %512 = vmatpush2.bf16.msra.mxu0 0
        %513 = vmatprep.subr.bf16.mxu0 0
        %514 = vmatpush2.bf16.msra.mxu0 0
        %515 = vmatprep.subr.bf16.mxu0 0
        %516 = vmatpush2.bf16.msra.mxu0 0
        %517 = vmatprep.subr.bf16.mxu0 0
        %518 = vmatpush2.bf16.msra.mxu0 0
        %519 = vmatprep.subr.bf16.mxu0 0
        %520 = vmatpush2.bf16.msra.mxu0 0
        %521 = vmatprep.subr.bf16.mxu0 0
        %522 = vmatpush2.bf16.msra.mxu0 0
        %523 = vmatprep.mubr.bf16.mxu0 0
        %524 = vmatmul.mubr.bf16.gmra.mxu0 %v489
        %v525 = vpop.f32.mrf.mxu0
        %v526 = vadd.f32 %v462, %v525
        %v527 = vpop.f32.mrf.mxu0
        %v528 = vpop.f32.mrf.mxu0
        %v529 = vpop.f32.mrf.mxu0
        %530 = vdwg.mxu0
        %v531 = vpack.c.bf16 %v443, %v443
        %v532 = vpack.c.bf16 %v526, %v526
        %v534 = vsel %vm404, %v531, 0
        %v537 = vsel %vm404, %v532, 0
        %539 = vmatprep.subr.bf16.mxu0 0
        %540 = vmatpush1.bf16.xpose.msra.mxu0 0
        %541 = vmatprep.subr.bf16.mxu0 0
        %542 = vmatpush1.bf16.xpose.msra.mxu0 0
        %543 = vmatprep.subr.bf16.mxu0 0
        %544 = vmatpush1.bf16.xpose.msra.mxu0 0
        %545 = vmatprep.subr.bf16.mxu0 0
        %546 = vmatpush1.bf16.xpose.msra.mxu0 0
        %547 = vmatprep.subr.bf16.mxu0 0
        %548 = vmatpush1.bf16.xpose.msra.mxu0 0
        %549 = vmatprep.subr.bf16.mxu0 0
        %550 = vmatpush1.bf16.xpose.msra.mxu0 0
        %551 = vmatprep.subr.bf16.mxu0 0
        %552 = vmatpush1.bf16.xpose.msra.mxu0 0
        %553 = vmatprep.subr.bf16.mxu0 0
        %554 = vmatpush1.bf16.xpose.msra.mxu0 %v537
        %555 = vmatprep.subr.bf16.mxu0 0
        %556 = vmatpush2.bf16.xpose.msra.mxu0 0
        %557 = vmatprep.subr.bf16.mxu0 0
        %558 = vmatpush2.bf16.xpose.msra.mxu0 0
        %559 = vmatprep.subr.bf16.mxu0 0
        %560 = vmatpush2.bf16.xpose.msra.mxu0 0
        %561 = vmatprep.subr.bf16.mxu0 0
        %562 = vmatpush2.bf16.xpose.msra.mxu0 0
        %563 = vmatprep.subr.bf16.mxu0 0
        %564 = vmatpush2.bf16.xpose.msra.mxu0 0
        %565 = vmatprep.subr.bf16.mxu0 0
        %566 = vmatpush2.bf16.xpose.msra.mxu0 0
        %567 = vmatprep.subr.bf16.mxu0 0
        %568 = vmatpush2.bf16.xpose.msra.mxu0 0
        %569 = vmatprep.subr.bf16.mxu0 0
        %570 = vmatpush2.bf16.xpose.msra.mxu0 0
        %571 = vmatprep.mubr.bf16.mxu0 0
        %572 = vmatmul.mubr.bf16.gmra.mxu0 %v534
        %v573 = vpop.f32.mrf.mxu0
        %v574 = vadd.f32 0.0, %v573
        %v575 = vpop.f32.mrf.mxu0
        %v576 = vpop.f32.mrf.mxu0
        %v577 = vpop.f32.mrf.mxu0
        %578 = vdwg.mxu0
        %v579 = vmul.f32 %v574, 0.125
        %v580 = vld [vmem:[%s360] sm:$0xff]
        %v581 = vadd.f32 %v579, %v580
        %vm582 = vcmask 64512
        %v583 = vsel %vm582, %v581, -inf
        %584 = vmax.xlane.f32.xlu0 %v583
        %v585 = vpop.xlane.xlu0 %584
        %v586 = vsub.f32 %v581, %v585
        %v587 = vpack.c.bf16 %v586, %v586
        %v589 = vmul.bf16 %v587, 1069105081
        %v590 = vpow.bf16.pop %v589
        %v591 = vunpack.c.l.bf16 %v590
        %v592 = vsel %vm582, %v591, 0.0
        %593 = vadd.xlane.f32.xlu0 %v592
        %v594 = vpop.xlane.xlu0 %593
        %v595 = vrcp.pop %v594
        %597 = vrot.lane.b32.xlu0 %v532, 64
        %v598 = vpop.permute.xlu0 %597
        %v600 = vsel %vm582, %v590, 0
        %vm602 = vcmask 1043456
        %v604 = vsel %vm602, %v598, 0
        %606 = vmatprep.subr.bf16.mxu0 0
        %607 = vmatpush1.bf16.msra.mxu0 0
        %608 = vmatprep.subr.bf16.mxu0 0
        %609 = vmatpush1.bf16.msra.mxu0 0
        %610 = vmatprep.subr.bf16.mxu0 0
        %611 = vmatpush1.bf16.msra.mxu0 0
        %612 = vmatprep.subr.bf16.mxu0 0
        %613 = vmatpush1.bf16.msra.mxu0 0
        %614 = vmatprep.subr.bf16.mxu0 0
        %615 = vmatpush1.bf16.msra.mxu0 0
        %616 = vmatprep.subr.bf16.mxu0 0
        %617 = vmatpush1.bf16.msra.mxu0 0
        %618 = vmatprep.subr.bf16.mxu0 0
        %619 = vmatpush1.bf16.msra.mxu0 0
        %620 = vmatprep.subr.bf16.mxu0 0
        %621 = vmatpush1.bf16.msra.mxu0 %v604
        %622 = vmatprep.subr.bf16.mxu0 0
        %623 = vmatpush2.bf16.msra.mxu0 0
        %624 = vmatprep.subr.bf16.mxu0 0
        %625 = vmatpush2.bf16.msra.mxu0 0
        %626 = vmatprep.subr.bf16.mxu0 0
        %627 = vmatpush2.bf16.msra.mxu0 0
        %628 = vmatprep.subr.bf16.mxu0 0
        %629 = vmatpush2.bf16.msra.mxu0 0
        %630 = vmatprep.subr.bf16.mxu0 0
        %631 = vmatpush2.bf16.msra.mxu0 0
        %632 = vmatprep.subr.bf16.mxu0 0
        %633 = vmatpush2.bf16.msra.mxu0 0
        %634 = vmatprep.subr.bf16.mxu0 0
        %635 = vmatpush2.bf16.msra.mxu0 0
        %636 = vmatprep.subr.bf16.mxu0 0
        %637 = vmatpush2.bf16.msra.mxu0 0
        %638 = vmatprep.mubr.bf16.mxu0 0
        %639 = vmatmul.mubr.bf16.gmra.mxu0 %v600
        %v640 = vpop.f32.mrf.mxu0
        %v641 = vadd.f32 0.0, %v640
        %v642 = vpop.f32.mrf.mxu0
        %v643 = vpop.f32.mrf.mxu0
        %v644 = vpop.f32.mrf.mxu0
        %645 = vdwg.mxu0
        %v646 = vmul.f32 %v641, %v595
        %v647 = vadd.f32 %v362, %v646
        %v648 = vld [vmem:[%s7] sm:$0x1]
        %v649 = vld [vmem:[%s8] sm:$0x1]
        %v650 = vsel %vm404, %v647, 0.0
        %651 = vadd.xlane.f32.xlu0 %v650
        %v652 = vpop.xlane.xlu0 %651
        %v653 = vrcp.pop 64.0
        %v654 = vmul.f32 %v652, %v653
        %v655 = vsub.f32 %v647, %v654
        %v656 = vmul.f32 %v655, %v655
        %v657 = vsel %vm404, %v656, 0.0
        %658 = vadd.xlane.f32.xlu0 %v657
        %v659 = vpop.xlane.xlu0 %658
        %v660 = vmul.f32 %v659, %v653
        %v661 = vadd.f32 %v660, 1e-05
        %v662 = vrsqrt.pop %v661
        %v663 = vmul.f32 %v655, %v662
        %v665 = vlaneseq
        %v666 = vshrl.u32 %v665, 7
        %v667 = vsub.s32 0, %v666
        %v668 = vrot.slane %v648, %v667
        %v670 = vmul.f32 %v663, %v668
        %v672 = vlaneseq
        %v673 = vshrl.u32 %v672, 7
        %v674 = vsub.s32 0, %v673
        %v675 = vrot.slane %v649, %v674
        %v677 = vadd.f32 %v670, %v675
        %v678 = vmul.f32 %v677, %v363
        %v679 = vsel %vm404, %v678, 0.0
        %680 = vadd.xlane.f32.xlu0 %v679
        %v681 = vpop.xlane.xlu0 %680
        %v683 = vlaneseq
        %v684 = vand.u32 %v683, 127
        %v685 = vlaneseq
        %v686 = vshrl.u32 %v685, 7
        %v687 = vsub.s32 %v684, %v686
        %v688 = vrot.slane %v681, %v687
        %vm690 = vcmask 57344
        %691 = vst.msk [vmem:[%s348] sm:$0x1] %vm690, %v688
        %s692 = sand.u32 %s235, 1
        %s693 = scalar_lea.sflag [#allocation3], %s692
        %s694 = sand.u32 %s235, 1
        %s695 = scalar_lea.vmem [#allocation2], %s694
        // Predicated region
        $region57: #{stisan_forward.7} parent=55 // pred_check
          %p696 = pneg %p245
        $region58: #{stisan_forward.7} parent=55 // pred_check_branch
          %698 = sbr.rel (%p696) target = $region60
        $region59: #{stisan_forward.7} parent=55 // pred_region
          %s700 = ssub.s32 16, 16
          %701 = vsyncadd %s693, %s700
          %s702 = smul.addr %s23, 16
          %s703 = scalar_lea.hbm %s9, %s702
          %s705 = sshll.u32 %s695, 4
          %s706 = int_to_ptr.vmem [resolvable:$true] %s705
          %708 = dma.vmem_to_hbm [thread:$0]  %s706, 16, %s703, %s693
        $region60: #{stisan_forward.7} parent=55 // pred_fallthru
          _
      $region56: #{stisan_forward.7} parent=5 // pred_fallthru
        _
      %p709 = scmp.le.s32.totalorder 2, %s18
      // Predicated region
      $region61: #{stisan_forward.7} parent=5 // pred_check
        %p710 = pneg %p709
      $region62: #{stisan_forward.7} parent=5 // pred_check_branch
        %712 = sbr.rel (%p710) target = $region64
      $region63: #{stisan_forward.7} parent=5 // pred_region
        %s713 = ssub.s32 %s18, 2
        // Predicated region
        $region65: #{stisan_forward.7} parent=63 // pred_check
          %p714 = pneg %p251
        $region66: #{stisan_forward.7} parent=63 // pred_check_branch
          %716 = sbr.rel (%p714) target = $region68
        $region67: #{stisan_forward.7} parent=63 // pred_region
          %s717 = sand.u32 %s236, 1
          %s718 = scalar_lea.sflag [#allocation3], %s717
          %s719 = sand.u32 %s236, 1
          %s720 = scalar_lea.vmem [#allocation2], %s719
          %721 = dma.done %s718, 16
        $region68: #{stisan_forward.7} parent=63 // pred_fallthru
          _
      $region64: #{stisan_forward.7} parent=5 // pred_fallthru
        _
    $region6: #{stisan_forward.7} parent=1 // loop_footer
      %s22 = sadd.s32 1, %s18
    $region7: #{stisan_forward.7} parent=1 // loop_footer_branch
      %17 = sbr.rel target = $region3
    $region8: #{stisan_forward.7} parent=1 // loop_exit
      _
    %722 = vsyncpa [#allocation3], 1
    %s723 = scalar_lea.sflag [#allocation3], 1
    %724 = vsyncpa %s723, 1

</llo_original>
